<compile_context>
chip_gen: v7x
topology: tpu7x:2x2x1
jax: 0.10.0
libtpu: 0.0.40
codegen_flags: <defaults>
</compile_context>

<pallas_src>
import functools

import jax
import jax.numpy as jnp
from jax import lax
from jax.experimental import pallas as pl
from jax.experimental.pallas import tpu as pltpu


def _round_up(x, m):
    return ((x + m - 1) // m) * m


# --------------------------- kernel 1: word LSTM -----------------------------


def _word_lstm_kernel(x_ref, wl_ref, wih_ref, whh_ref, b_ref,
                      hlast_ref, h_ref, c_ref, hl_ref, xg_ref, *, Wt, H):
    """One (row_tile, W_tile) grid step of the word-level LSTM.

    x_ref    : (Wt, Nt, D) bf16 word embeddings, time-major, rows p*B + b
    wl_ref   : (Nt, 1) int32 words_lengths
    wih_ref  : (D, 4H) bf16, whh_ref: (H, 4H) bf16, b_ref: (1, 4H) f32;
               gate columns pre-ordered [i, f, o, g]
    hlast_ref: (Nt, H) f32 OUTPUT -- hidden at the last valid word of each row
    h_ref/c_ref/hl_ref : (Nt, H) f32 scratch carried across W-tiles
    xg_ref   : (Wt, Nt, 4H) f32 scratch -- staged batched input projection
    """
    Nt = h_ref.shape[0]

    @pl.when(pl.program_id(1) == 0)
    def _():
        h_ref[...] = jnp.zeros_like(h_ref)
        c_ref[...] = jnp.zeros_like(c_ref)
        hl_ref[...] = jnp.zeros_like(hl_ref)

    # Batched input projection for this W-tile: one MXU pass over Wt*Nt rows.
    x_flat = x_ref[...].reshape(Wt * Nt, x_ref.shape[2])
    xg = jnp.dot(x_flat, wih_ref[...], preferred_element_type=jnp.float32)
    xg_ref[...] = (xg + b_ref[...]).reshape(Wt, Nt, 4 * H)

    wl = wl_ref[...]                          # (Nt, 1) int32
    whh = whh_ref[...]                        # (H, 4H) bf16, loop-invariant
    t0 = pl.program_id(1) * Wt                # global time offset of this tile

    def step(t, carry):
        h, c, hl = carry
        gates = xg_ref[t] + jnp.dot(h.astype(jnp.bfloat16), whh,
                                    preferred_element_type=jnp.float32)
        # Gate order [i, f, o, g]: one sigmoid over (Nt, 3H), one tanh (Nt, H).
        sig = jax.nn.sigmoid(gates[:, :3 * H])
        i = sig[:, 0 * H:1 * H]
        f = sig[:, 1 * H:2 * H]
        o = sig[:, 2 * H:3 * H]
        g = jnp.tanh(gates[:, 3 * H:])
        c_new = f * c + i * g
        h_new = o * jnp.tanh(c_new)
        # Capture the hidden state at the last valid word of each post.
        hl = jnp.where(wl == t0 + t + 1, h_new, hl)
        return h_new, c_new, hl

    h, c, hl = lax.fori_loop(
        0, Wt, step, (h_ref[...], c_ref[...], hl_ref[...]), unroll=True)
    h_ref[...] = h
    c_ref[...] = c
    hl_ref[...] = hl

    @pl.when(pl.program_id(1) == pl.num_programs(1) - 1)
    def _():
        hlast_ref[...] = hl_ref[...]


# --------------------------- kernel 2: post LSTM ------------------------------


def _post_lstm_kernel(hlast_ref, plen_ref, wih_ref, whh_ref, b_ref, out_ref,
                      *, P, B, H):
    """Post-level LSTM over P steps of B threads + pad_packed zero mask.

    hlast_ref: (N_pad, H1) f32, rows p*B + b (already time-major for this LSTM)
    plen_ref : (B, 1) int32 posts_lengths
    out_ref  : (P*B, H2) f32 masked hidden states
    """
    # Batched input projection (padded rows are projected but never read).
    hg = (jnp.dot(hlast_ref[...].astype(jnp.bfloat16), wih_ref[...],
                  preferred_element_type=jnp.float32) + b_ref[...])
    whh = whh_ref[...]
    plen = plen_ref[...]                      # (B, 1) int32

    h = jnp.zeros((B, H), jnp.float32)
    c = jnp.zeros((B, H), jnp.float32)
    for p in range(P):                        # static, small
        gates = hg[p * B:(p + 1) * B, :] + jnp.dot(
            h.astype(jnp.bfloat16), whh, preferred_element_type=jnp.float32)
        sig = jax.nn.sigmoid(gates[:, :3 * H])
        i = sig[:, 0 * H:1 * H]
        f = sig[:, 1 * H:2 * H]
        o = sig[:, 2 * H:3 * H]
        g = jnp.tanh(gates[:, 3 * H:])
        c = f * c + i * g
        h = o * jnp.tanh(c)
        # pad_packed_sequence: zero positions past each thread's posts_length.
        out_ref[pl.ds(p * B, B), :] = jnp.where(p < plen, h, 0.0)


# ------------------------------ full forward ---------------------------------


def _reorder_gates(m):
    """Reorder PyTorch LSTM gate blocks [i, f, g, o] -> [i, f, o, g] (axis 0)."""
    i, f, g, o = jnp.split(m, 4, axis=0)
    return jnp.concatenate([i, f, o, g], axis=0)


def _prep_lstm(w_ih, w_hh, b_ih, b_hh, H):
    wih = jnp.transpose(_reorder_gates(w_ih)).astype(jnp.bfloat16)   # (in, 4H)
    whh = jnp.transpose(_reorder_gates(w_hh)).astype(jnp.bfloat16)   # (H, 4H)
    b = _reorder_gates((b_ih + b_hh).reshape(4, H)).reshape(1, 4 * H)
    return wih, whh, b.astype(jnp.float32)


def hierarchical_forward(params, inputs, words_lengths, posts_lengths,
                         *, w_tile=8, row_tile=256):
    """Eval-mode forward: (B, P, W) int ids -> (B, P, output_dim) float32."""
    B, P, W = inputs.shape
    emb = params["embedding"]
    D = emb.shape[1]
    H1 = params["lstm1_w_hh"].shape[1]
    H2 = params["lstm2_w_hh"].shape[1]
    O = params["fc_w"].shape[0]
    N = B * P

    # ---- tiling / padding (16-sublane alignment so bf16 blocks stay tiled) --
    SUB = 16
    Nt = min(_round_up(N, SUB), max(SUB, (row_tile // SUB) * SUB))
    N_pad = _round_up(N, Nt)
    n_row_tiles = N_pad // Nt

    Wt = max(1, min(w_tile, W))
    W_pad = _round_up(W, Wt)
    n_w_tiles = W_pad // Wt

    # Embedding lookup (XLA glue).  Row order p*B + b so the word-LSTM output
    # is directly the time-major input of the post-level LSTM.
    # TODO(synk): fuse the gather into kernel 1 (emb in pl.ANY + DMA row gather)
    tok = jnp.transpose(inputs, (2, 1, 0)).reshape(W, N)          # (W, N)
    tok = jnp.pad(tok, ((0, W_pad - W), (0, N_pad - N)))
    x = emb[tok].astype(jnp.bfloat16)                             # (W_pad, N_pad, D)

    wl = jnp.transpose(words_lengths, (1, 0)).reshape(N).astype(jnp.int32)
    # NOTE: zero-length posts are clamped to length 1 (they consume the t=0
    # pad token); packed PyTorch would never run such a row.
    wl = jnp.clip(wl, 1, W)
    wl = jnp.pad(wl, (0, N_pad - N)).reshape(N_pad, 1)   # pad rows: never captured
    plen = posts_lengths.reshape(B, 1).astype(jnp.int32)

    wih1, whh1, b1 = _prep_lstm(params["lstm1_w_ih"], params["lstm1_w_hh"],
                                params["lstm1_b_ih"], params["lstm1_b_hh"], H1)
    wih2, whh2, b2 = _prep_lstm(params["lstm2_w_ih"], params["lstm2_w_hh"],
                                params["lstm2_b_ih"], params["lstm2_b_hh"], H2)

    # ---- kernel 1: word-level LSTM, streamed over W, parallel over rows -----
    word_kernel = functools.partial(_word_lstm_kernel, Wt=Wt, H=H1)
    h_last = pl.pallas_call(
        word_kernel,
        out_shape=jax.ShapeDtypeStruct((N_pad, H1), jnp.float32),
        grid=(n_row_tiles, n_w_tiles),
        in_specs=[
            pl.BlockSpec((Wt, Nt, D), lambda n, w: (w, n, 0)),     # x (streamed)
            pl.BlockSpec((Nt, 1), lambda n, w: (n, 0)),            # words_lengths
            pl.BlockSpec((D, 4 * H1), lambda n, w: (0, 0)),        # wih1
            pl.BlockSpec((H1, 4 * H1), lambda n, w: (0, 0)),       # whh1
            pl.BlockSpec((1, 4 * H1), lambda n, w: (0, 0)),        # b1
        ],
        out_specs=pl.BlockSpec((Nt, H1), lambda n, w: (n, 0)),
        scratch_shapes=[
            pltpu.VMEM((Nt, H1), jnp.float32),          # h1
            pltpu.VMEM((Nt, H1), jnp.float32),          # c1
            pltpu.VMEM((Nt, H1), jnp.float32),          # h_last accumulator
            pltpu.VMEM((Wt, Nt, 4 * H1), jnp.float32),  # staged input projection
        ],
        compiler_params=pltpu.CompilerParams(
            dimension_semantics=("parallel", "arbitrary"),
            vmem_limit_bytes=64 * 1024 * 1024),
    )(x, wl, wih1, whh1, b1)

    # ---- kernel 2: post-level LSTM + pad_packed zero mask -------------------
    post_kernel = functools.partial(_post_lstm_kernel, P=P, B=B, H=H2)
    h2 = pl.pallas_call(
        post_kernel,
        out_shape=jax.ShapeDtypeStruct((N, H2), jnp.float32),
        grid=(1,),
        in_specs=[
            pl.BlockSpec((N_pad, H1), lambda i: (0, 0)),
            pl.BlockSpec((B, 1), lambda i: (0, 0)),
            pl.BlockSpec((H1, 4 * H2), lambda i: (0, 0)),
            pl.BlockSpec((H2, 4 * H2), lambda i: (0, 0)),
            pl.BlockSpec((1, 4 * H2), lambda i: (0, 0)),
        ],
        out_specs=pl.BlockSpec((N, H2), lambda i: (0, 0)),
        compiler_params=pltpu.CompilerParams(
            dimension_semantics=("arbitrary",)),
    )(h_last, plen, wih2, whh2, b2)

    # ---- dropout (inference identity) + FC + sigmoid (wrapper-side so the
    # kernel output stays a dense (N, H2) block instead of an (N, 1) one). ----
    fcw = jnp.transpose(params["fc_w"]).astype(jnp.float32)       # (H2, O)
    fcb = params["fc_b"].reshape(1, O).astype(jnp.float32)
    y = jax.nn.sigmoid(h2 @ fcw + fcb)                            # (N, O)

    # Rows are p*B + b -> (P, B, O) -> (B, P, O).
    return jnp.transpose(y.reshape(P, B, O), (1, 0, 2))


# --------------------------------- params ------------------------------------


def init_params(key, vocab, input_dim, hidden_dim1, hidden_dim2, output_dim):
    ks = jax.random.split(key, 12)
    s = 0.1

    def rnd(k, shape):
        return (s * jax.random.normal(k, shape)).astype(jnp.float32)

    return {
        "embedding": rnd(ks[0], (vocab, input_dim)),
        "lstm1_w_ih": rnd(ks[1], (4 * hidden_dim1, input_dim)),
        "lstm1_w_hh": rnd(ks[2], (4 * hidden_dim1, hidden_dim1)),
        "lstm1_b_ih": rnd(ks[3], (4 * hidden_dim1,)),
        "lstm1_b_hh": rnd(ks[4], (4 * hidden_dim1,)),
        "lstm2_w_ih": rnd(ks[5], (4 * hidden_dim2, hidden_dim1)),
        "lstm2_w_hh": rnd(ks[6], (4 * hidden_dim2, hidden_dim2)),
        "lstm2_b_ih": rnd(ks[7], (4 * hidden_dim2,)),
        "lstm2_b_hh": rnd(ks[8], (4 * hidden_dim2,)),
        "fc_w": rnd(ks[9], (output_dim, hidden_dim2)),
        "fc_b": rnd(ks[10], (output_dim,)),
    }


if __name__ == "__main__":
    # Small deterministic shapes.
    B, P, W = 2, 16, 16        # batch, max_posts, max_words
    VOCAB = 64
    INPUT_DIM = 16             # embedding dim
    H1, H2 = 32, 32
    OUTPUT_DIM = 1

    key = jax.random.PRNGKey(0)
    kp, ki, kw, kpl = jax.random.split(key, 4)

    params = init_params(kp, VOCAB, INPUT_DIM, H1, H2, OUTPUT_DIM)

    inputs = jax.random.randint(ki, (B, P, W), 0, VOCAB, dtype=jnp.int32)
    words_lengths = jax.random.randint(kw, (B, P), 1, W + 1, dtype=jnp.int32)
    posts_lengths = jax.random.randint(kpl, (B,), 1, P + 1, dtype=jnp.int32)

    fwd = jax.jit(hierarchical_forward, static_argnames=("w_tile", "row_tile"))
    # w_tile=8 -> 2 streamed W-tiles; row_tile=16 -> 2 parallel row tiles.
    out = fwd(params, inputs, words_lengths, posts_lengths,
              w_tile=8, row_tile=16)
    out = jax.block_until_ready(out)

    assert out.shape == (B, P, OUTPUT_DIM), out.shape
    assert bool(jnp.all(jnp.isfinite(out)))
    assert bool(jnp.all((out >= 0.0) & (out <= 1.0)))
    print("KERNEL_OK")
</pallas_src>

<mosaic_0001>
module attributes {stable_mosaic.version = 11 : i64} {
  func.func @_word_lstm_kernel(%arg0: i32, %arg1: i32, %arg2: memref<8x16x16xbf16, #tpu.memory_space<vmem>>, %arg3: memref<16x1xi32, #tpu.memory_space<vmem>>, %arg4: memref<16x128xbf16, #tpu.memory_space<vmem>>, %arg5: memref<32x128xbf16, #tpu.memory_space<vmem>>, %arg6: memref<1x128xf32, #tpu.memory_space<vmem>>, %arg7: memref<16x32xf32, #tpu.memory_space<vmem>>, %arg8: memref<16x32xf32, #tpu.memory_space<vmem>>, %arg9: memref<16x32xf32, #tpu.memory_space<vmem>>, %arg10: memref<16x32xf32, #tpu.memory_space<vmem>>, %arg11: memref<8x16x128xf32, #tpu.memory_space<vmem>>) attributes {dimension_semantics = [#tpu.dimension_semantics<parallel>, #tpu.dimension_semantics<arbitrary>], iteration_bounds = array<i64: 2, 2>, scalar_prefetch = 0 : i64, scratch_operands = 4 : i64, tpu.core_type = #tpu.core_type<tc>, window_params = [{transform_indices = @transform_0, window_bounds = array<i64: 8, 16, 16>}, {transform_indices = @transform_1, window_bounds = array<i64: 16, 1>}, {pipeline_mode = #tpu.pipeline_mode<synchronous>, transform_indices = @transform_2, window_bounds = array<i64: 16, 128>}, {pipeline_mode = #tpu.pipeline_mode<synchronous>, transform_indices = @transform_3, window_bounds = array<i64: 32, 128>}, {pipeline_mode = #tpu.pipeline_mode<synchronous>, transform_indices = @transform_4, window_bounds = array<i64: 1, 128>}, {transform_indices = @transform_5, window_bounds = array<i64: 16, 32>}]} {
    %c0_i32 = arith.constant 0 : i32
    %0 = arith.cmpi eq, %arg1, %c0_i32 : i32
    %1 = arith.extui %0 : i1 to i32
    %c0_i32_0 = arith.constant 0 : i32
    %2 = arith.cmpi ne, %1, %c0_i32_0 : i32
    scf.if %2 {
      %cst_70 = arith.constant 0.000000e+00 : f32
      %256 = vector.broadcast %cst_70 : f32 to vector<16x32xf32>
      %c0_71 = arith.constant 0 : index
      %c0_72 = arith.constant 0 : index
      %257 = vector.load %arg8[%c0_71, %c0_72] : memref<16x32xf32, #tpu.memory_space<vmem>>, vector<16x32xf32>
      tpu.vector_store %arg8[%c0_71, %c0_72], %256 {strides = array<i32>} : memref<16x32xf32, #tpu.memory_space<vmem>>, vector<16x32xf32>,
      %cst_73 = arith.constant 0.000000e+00 : f32
      %258 = vector.broadcast %cst_73 : f32 to vector<16x32xf32>
      %c0_74 = arith.constant 0 : index
      %c0_75 = arith.constant 0 : index
      %259 = vector.load %arg9[%c0_74, %c0_75] : memref<16x32xf32, #tpu.memory_space<vmem>>, vector<16x32xf32>
      tpu.vector_store %arg9[%c0_74, %c0_75], %258 {strides = array<i32>} : memref<16x32xf32, #tpu.memory_space<vmem>>, vector<16x32xf32>,
      %cst_76 = arith.constant 0.000000e+00 : f32
      %260 = vector.broadcast %cst_76 : f32 to vector<16x32xf32>
      %c0_77 = arith.constant 0 : index
      %c0_78 = arith.constant 0 : index
      %261 = vector.load %arg10[%c0_77, %c0_78] : memref<16x32xf32, #tpu.memory_space<vmem>>, vector<16x32xf32>
      tpu.vector_store %arg10[%c0_77, %c0_78], %260 {strides = array<i32>} : memref<16x32xf32, #tpu.memory_space<vmem>>, vector<16x32xf32>,
    } else {
    }
    %c0 = arith.constant 0 : index
    %c0_1 = arith.constant 0 : index
    %c0_2 = arith.constant 0 : index
    %3 = vector.load %arg2[%c0, %c0_1, %c0_2] : memref<8x16x16xbf16, #tpu.memory_space<vmem>>, vector<8x16x16xbf16>
    %4 = vector.shape_cast %3 : vector<8x16x16xbf16> to vector<128x16xbf16>
    %c0_3 = arith.constant 0 : index
    %c0_4 = arith.constant 0 : index
    %5 = vector.load %arg4[%c0_3, %c0_4] : memref<16x128xbf16, #tpu.memory_space<vmem>>, vector<16x128xbf16>
    %cst = arith.constant dense<0.000000e+00> : vector<128x128xf32>
    %6 = tpu.matmul %4, %5, %cst {dimension_numbers = #tpu.dot_dimension_numbers<[1], [0], [0], [1], [0, 0, 1, 1], [], []>} : vector<128x16xbf16>, vector<16x128xbf16>, vector<128x128xf32> -> vector<128x128xf32>
    %c0_5 = arith.constant 0 : index
    %c0_6 = arith.constant 0 : index
    %7 = vector.load %arg6[%c0_5, %c0_6] : memref<1x128xf32, #tpu.memory_space<vmem>>, vector<1x128xf32>
    %8 = vector.broadcast %7 : vector<1x128xf32> to vector<128x128xf32>
    %9 = arith.addf %6, %8 : vector<128x128xf32>
    %10 = vector.shape_cast %9 : vector<128x128xf32> to vector<8x16x128xf32>
    %c0_7 = arith.constant 0 : index
    %c0_8 = arith.constant 0 : index
    %c0_9 = arith.constant 0 : index
    %11 = vector.load %arg11[%c0_7, %c0_8, %c0_9] : memref<8x16x128xf32, #tpu.memory_space<vmem>>, vector<8x16x128xf32>
    tpu.vector_store %arg11[%c0_7, %c0_8, %c0_9], %10 {strides = array<i32>} : memref<8x16x128xf32, #tpu.memory_space<vmem>>, vector<8x16x128xf32>,
    %c0_10 = arith.constant 0 : index
    %c0_11 = arith.constant 0 : index
    %12 = vector.load %arg3[%c0_10, %c0_11] : memref<16x1xi32, #tpu.memory_space<vmem>>, vector<16x1xi32>
    %c0_12 = arith.constant 0 : index
    %c0_13 = arith.constant 0 : index
    %13 = vector.load %arg5[%c0_12, %c0_13] : memref<32x128xbf16, #tpu.memory_space<vmem>>, vector<32x128xbf16>
    %c8_i32 = arith.constant 8 : i32
    %14 = arith.muli %arg1, %c8_i32 : i32
    %c0_14 = arith.constant 0 : index
    %c0_15 = arith.constant 0 : index
    %15 = vector.load %arg8[%c0_14, %c0_15] : memref<16x32xf32, #tpu.memory_space<vmem>>, vector<16x32xf32>
    %c0_16 = arith.constant 0 : index
    %c0_17 = arith.constant 0 : index
    %16 = vector.load %arg9[%c0_16, %c0_17] : memref<16x32xf32, #tpu.memory_space<vmem>>, vector<16x32xf32>
    %c0_18 = arith.constant 0 : index
    %c0_19 = arith.constant 0 : index
    %17 = vector.load %arg10[%c0_18, %c0_19] : memref<16x32xf32, #tpu.memory_space<vmem>>, vector<16x32xf32>
    %c0_i32_20 = arith.constant 0 : i32
    %18 = arith.index_cast %c0_i32_20 : i32 to index
    %c0_21 = arith.constant 0 : index
    %c0_22 = arith.constant 0 : index
    %19 = vector.load %arg11[%18, %c0_21, %c0_22] : memref<8x16x128xf32, #tpu.memory_space<vmem>>, vector<1x16x128xf32>
    %20 = vector.shape_cast %19 : vector<1x16x128xf32> to vector<16x128xf32>
    %21 = arith.truncf %15 : vector<16x32xf32> to vector<16x32xbf16>
    %cst_23 = arith.constant dense<0.000000e+00> : vector<16x128xf32>
    %22 = tpu.matmul %21, %13, %cst_23 {dimension_numbers = #tpu.dot_dimension_numbers<[1], [0], [0], [1], [0, 0, 1, 1], [], []>} : vector<16x32xbf16>, vector<32x128xbf16>, vector<16x128xf32> -> vector<16x128xf32>
    %23 = arith.addf %20, %22 : vector<16x128xf32>
    %24 = vector.extract_strided_slice %23 {offsets = [0, 0], sizes = [16, 96], strides = [1, 1]} : vector<16x128xf32> to vector<16x96xf32>
    %25 = arith.negf %24 : vector<16x96xf32>
    %26 = math.exp %25 : vector<16x96xf32>
    %cst_24 = arith.constant 1.000000e+00 : f32
    %27 = vector.broadcast %cst_24 : f32 to vector<16x96xf32>
    %28 = arith.addf %27, %26 : vector<16x96xf32>
    %29 = arith.divf %27, %28 : vector<16x96xf32>
    %30 = vector.extract_strided_slice %29 {offsets = [0, 0], sizes = [16, 32], strides = [1, 1]} : vector<16x96xf32> to vector<16x32xf32>
    %31 = vector.extract_strided_slice %29 {offsets = [0, 32], sizes = [16, 32], strides = [1, 1]} : vector<16x96xf32> to vector<16x32xf32>
    %32 = vector.extract_strided_slice %29 {offsets = [0, 64], sizes = [16, 32], strides = [1, 1]} : vector<16x96xf32> to vector<16x32xf32>
    %33 = vector.extract_strided_slice %23 {offsets = [0, 96], sizes = [16, 32], strides = [1, 1]} : vector<16x128xf32> to vector<16x32xf32>
    %34 = math.tanh %33 : vector<16x32xf32>
    %35 = arith.mulf %31, %16 : vector<16x32xf32>
    %36 = arith.mulf %30, %34 : vector<16x32xf32>
    %37 = arith.addf %35, %36 : vector<16x32xf32>
    %38 = math.tanh %37 : vector<16x32xf32>
    %39 = arith.mulf %32, %38 : vector<16x32xf32>
    %40 = arith.addi %14, %c0_i32_20 : i32
    %c1_i32 = arith.constant 1 : i32
    %41 = arith.addi %40, %c1_i32 : i32
    %42 = vector.broadcast %41 : i32 to vector<16x1xi32>
    %43 = arith.cmpi eq, %12, %42 : vector<16x1xi32>
    %44 = vector.shape_cast %43 : vector<16x1xi1> to vector<16x1xi1>
    %45 = vector.broadcast %44 : vector<16x1xi1> to vector<16x32xi1>
    %46 = arith.select %45, %39, %17 : vector<16x32xi1>, vector<16x32xf32>
    %c1_i32_25 = arith.constant 1 : i32
    %47 = arith.index_cast %c1_i32_25 : i32 to index
    %c0_26 = arith.constant 0 : index
    %c0_27 = arith.constant 0 : index
    %48 = vector.load %arg11[%47, %c0_26, %c0_27] : memref<8x16x128xf32, #tpu.memory_space<vmem>>, vector<1x16x128xf32>
    %49 = vector.shape_cast %48 : vector<1x16x128xf32> to vector<16x128xf32>
    %50 = arith.truncf %39 : vector<16x32xf32> to vector<16x32xbf16>
    %cst_28 = arith.constant dense<0.000000e+00> : vector<16x128xf32>
    %51 = tpu.matmul %50, %13, %cst_28 {dimension_numbers = #tpu.dot_dimension_numbers<[1], [0], [0], [1], [0, 0, 1, 1], [], []>} : vector<16x32xbf16>, vector<32x128xbf16>, vector<16x128xf32> -> vector<16x128xf32>
    %52 = arith.addf %49, %51 : vector<16x128xf32>
    %53 = vector.extract_strided_slice %52 {offsets = [0, 0], sizes = [16, 96], strides = [1, 1]} : vector<16x128xf32> to vector<16x96xf32>
    %54 = arith.negf %53 : vector<16x96xf32>
    %55 = math.exp %54 : vector<16x96xf32>
    %cst_29 = arith.constant 1.000000e+00 : f32
    %56 = vector.broadcast %cst_29 : f32 to vector<16x96xf32>
    %57 = arith.addf %56, %55 : vector<16x96xf32>
    %58 = arith.divf %56, %57 : vector<16x96xf32>
    %59 = vector.extract_strided_slice %58 {offsets = [0, 0], sizes = [16, 32], strides = [1, 1]} : vector<16x96xf32> to vector<16x32xf32>
    %60 = vector.extract_strided_slice %58 {offsets = [0, 32], sizes = [16, 32], strides = [1, 1]} : vector<16x96xf32> to vector<16x32xf32>
    %61 = vector.extract_strided_slice %58 {offsets = [0, 64], sizes = [16, 32], strides = [1, 1]} : vector<16x96xf32> to vector<16x32xf32>
    %62 = vector.extract_strided_slice %52 {offsets = [0, 96], sizes = [16, 32], strides = [1, 1]} : vector<16x128xf32> to vector<16x32xf32>
    %63 = math.tanh %62 : vector<16x32xf32>
    %64 = arith.mulf %60, %37 : vector<16x32xf32>
    %65 = arith.mulf %59, %63 : vector<16x32xf32>
    %66 = arith.addf %64, %65 : vector<16x32xf32>
    %67 = math.tanh %66 : vector<16x32xf32>
    %68 = arith.mulf %61, %67 : vector<16x32xf32>
    %69 = arith.addi %14, %c1_i32_25 : i32
    %c1_i32_30 = arith.constant 1 : i32
    %70 = arith.addi %69, %c1_i32_30 : i32
    %71 = vector.broadcast %70 : i32 to vector<16x1xi32>
    %72 = arith.cmpi eq, %12, %71 : vector<16x1xi32>
    %73 = vector.shape_cast %72 : vector<16x1xi1> to vector<16x1xi1>
    %74 = vector.broadcast %73 : vector<16x1xi1> to vector<16x32xi1>
    %75 = arith.select %74, %68, %46 : vector<16x32xi1>, vector<16x32xf32>
    %c2_i32 = arith.constant 2 : i32
    %76 = arith.index_cast %c2_i32 : i32 to index
    %c0_31 = arith.constant 0 : index
    %c0_32 = arith.constant 0 : index
    %77 = vector.load %arg11[%76, %c0_31, %c0_32] : memref<8x16x128xf32, #tpu.memory_space<vmem>>, vector<1x16x128xf32>
    %78 = vector.shape_cast %77 : vector<1x16x128xf32> to vector<16x128xf32>
    %79 = arith.truncf %68 : vector<16x32xf32> to vector<16x32xbf16>
    %cst_33 = arith.constant dense<0.000000e+00> : vector<16x128xf32>
    %80 = tpu.matmul %79, %13, %cst_33 {dimension_numbers = #tpu.dot_dimension_numbers<[1], [0], [0], [1], [0, 0, 1, 1], [], []>} : vector<16x32xbf16>, vector<32x128xbf16>, vector<16x128xf32> -> vector<16x128xf32>
    %81 = arith.addf %78, %80 : vector<16x128xf32>
    %82 = vector.extract_strided_slice %81 {offsets = [0, 0], sizes = [16, 96], strides = [1, 1]} : vector<16x128xf32> to vector<16x96xf32>
    %83 = arith.negf %82 : vector<16x96xf32>
    %84 = math.exp %83 : vector<16x96xf32>
    %cst_34 = arith.constant 1.000000e+00 : f32
    %85 = vector.broadcast %cst_34 : f32 to vector<16x96xf32>
    %86 = arith.addf %85, %84 : vector<16x96xf32>
    %87 = arith.divf %85, %86 : vector<16x96xf32>
    %88 = vector.extract_strided_slice %87 {offsets = [0, 0], sizes = [16, 32], strides = [1, 1]} : vector<16x96xf32> to vector<16x32xf32>
    %89 = vector.extract_strided_slice %87 {offsets = [0, 32], sizes = [16, 32], strides = [1, 1]} : vector<16x96xf32> to vector<16x32xf32>
    %90 = vector.extract_strided_slice %87 {offsets = [0, 64], sizes = [16, 32], strides = [1, 1]} : vector<16x96xf32> to vector<16x32xf32>
    %91 = vector.extract_strided_slice %81 {offsets = [0, 96], sizes = [16, 32], strides = [1, 1]} : vector<16x128xf32> to vector<16x32xf32>
    %92 = math.tanh %91 : vector<16x32xf32>
    %93 = arith.mulf %89, %66 : vector<16x32xf32>
    %94 = arith.mulf %88, %92 : vector<16x32xf32>
    %95 = arith.addf %93, %94 : vector<16x32xf32>
    %96 = math.tanh %95 : vector<16x32xf32>
    %97 = arith.mulf %90, %96 : vector<16x32xf32>
    %98 = arith.addi %14, %c2_i32 : i32
    %c1_i32_35 = arith.constant 1 : i32
    %99 = arith.addi %98, %c1_i32_35 : i32
    %100 = vector.broadcast %99 : i32 to vector<16x1xi32>
    %101 = arith.cmpi eq, %12, %100 : vector<16x1xi32>
    %102 = vector.shape_cast %101 : vector<16x1xi1> to vector<16x1xi1>
    %103 = vector.broadcast %102 : vector<16x1xi1> to vector<16x32xi1>
    %104 = arith.select %103, %97, %75 : vector<16x32xi1>, vector<16x32xf32>
    %c3_i32 = arith.constant 3 : i32
    %105 = arith.index_cast %c3_i32 : i32 to index
    %c0_36 = arith.constant 0 : index
    %c0_37 = arith.constant 0 : index
    %106 = vector.load %arg11[%105, %c0_36, %c0_37] : memref<8x16x128xf32, #tpu.memory_space<vmem>>, vector<1x16x128xf32>
    %107 = vector.shape_cast %106 : vector<1x16x128xf32> to vector<16x128xf32>
    %108 = arith.truncf %97 : vector<16x32xf32> to vector<16x32xbf16>
    %cst_38 = arith.constant dense<0.000000e+00> : vector<16x128xf32>
    %109 = tpu.matmul %108, %13, %cst_38 {dimension_numbers = #tpu.dot_dimension_numbers<[1], [0], [0], [1], [0, 0, 1, 1], [], []>} : vector<16x32xbf16>, vector<32x128xbf16>, vector<16x128xf32> -> vector<16x128xf32>
    %110 = arith.addf %107, %109 : vector<16x128xf32>
    %111 = vector.extract_strided_slice %110 {offsets = [0, 0], sizes = [16, 96], strides = [1, 1]} : vector<16x128xf32> to vector<16x96xf32>
    %112 = arith.negf %111 : vector<16x96xf32>
    %113 = math.exp %112 : vector<16x96xf32>
    %cst_39 = arith.constant 1.000000e+00 : f32
    %114 = vector.broadcast %cst_39 : f32 to vector<16x96xf32>
    %115 = arith.addf %114, %113 : vector<16x96xf32>
    %116 = arith.divf %114, %115 : vector<16x96xf32>
    %117 = vector.extract_strided_slice %116 {offsets = [0, 0], sizes = [16, 32], strides = [1, 1]} : vector<16x96xf32> to vector<16x32xf32>
    %118 = vector.extract_strided_slice %116 {offsets = [0, 32], sizes = [16, 32], strides = [1, 1]} : vector<16x96xf32> to vector<16x32xf32>
    %119 = vector.extract_strided_slice %116 {offsets = [0, 64], sizes = [16, 32], strides = [1, 1]} : vector<16x96xf32> to vector<16x32xf32>
    %120 = vector.extract_strided_slice %110 {offsets = [0, 96], sizes = [16, 32], strides = [1, 1]} : vector<16x128xf32> to vector<16x32xf32>
    %121 = math.tanh %120 : vector<16x32xf32>
    %122 = arith.mulf %118, %95 : vector<16x32xf32>
    %123 = arith.mulf %117, %121 : vector<16x32xf32>
    %124 = arith.addf %122, %123 : vector<16x32xf32>
    %125 = math.tanh %124 : vector<16x32xf32>
    %126 = arith.mulf %119, %125 : vector<16x32xf32>
    %127 = arith.addi %14, %c3_i32 : i32
    %c1_i32_40 = arith.constant 1 : i32
    %128 = arith.addi %127, %c1_i32_40 : i32
    %129 = vector.broadcast %128 : i32 to vector<16x1xi32>
    %130 = arith.cmpi eq, %12, %129 : vector<16x1xi32>
    %131 = vector.shape_cast %130 : vector<16x1xi1> to vector<16x1xi1>
    %132 = vector.broadcast %131 : vector<16x1xi1> to vector<16x32xi1>
    %133 = arith.select %132, %126, %104 : vector<16x32xi1>, vector<16x32xf32>
    %c4_i32 = arith.constant 4 : i32
    %134 = arith.index_cast %c4_i32 : i32 to index
    %c0_41 = arith.constant 0 : index
    %c0_42 = arith.constant 0 : index
    %135 = vector.load %arg11[%134, %c0_41, %c0_42] : memref<8x16x128xf32, #tpu.memory_space<vmem>>, vector<1x16x128xf32>
    %136 = vector.shape_cast %135 : vector<1x16x128xf32> to vector<16x128xf32>
    %137 = arith.truncf %126 : vector<16x32xf32> to vector<16x32xbf16>
    %cst_43 = arith.constant dense<0.000000e+00> : vector<16x128xf32>
    %138 = tpu.matmul %137, %13, %cst_43 {dimension_numbers = #tpu.dot_dimension_numbers<[1], [0], [0], [1], [0, 0, 1, 1], [], []>} : vector<16x32xbf16>, vector<32x128xbf16>, vector<16x128xf32> -> vector<16x128xf32>
    %139 = arith.addf %136, %138 : vector<16x128xf32>
    %140 = vector.extract_strided_slice %139 {offsets = [0, 0], sizes = [16, 96], strides = [1, 1]} : vector<16x128xf32> to vector<16x96xf32>
    %141 = arith.negf %140 : vector<16x96xf32>
    %142 = math.exp %141 : vector<16x96xf32>
    %cst_44 = arith.constant 1.000000e+00 : f32
    %143 = vector.broadcast %cst_44 : f32 to vector<16x96xf32>
    %144 = arith.addf %143, %142 : vector<16x96xf32>
    %145 = arith.divf %143, %144 : vector<16x96xf32>
    %146 = vector.extract_strided_slice %145 {offsets = [0, 0], sizes = [16, 32], strides = [1, 1]} : vector<16x96xf32> to vector<16x32xf32>
    %147 = vector.extract_strided_slice %145 {offsets = [0, 32], sizes = [16, 32], strides = [1, 1]} : vector<16x96xf32> to vector<16x32xf32>
    %148 = vector.extract_strided_slice %145 {offsets = [0, 64], sizes = [16, 32], strides = [1, 1]} : vector<16x96xf32> to vector<16x32xf32>
    %149 = vector.extract_strided_slice %139 {offsets = [0, 96], sizes = [16, 32], strides = [1, 1]} : vector<16x128xf32> to vector<16x32xf32>
    %150 = math.tanh %149 : vector<16x32xf32>
    %151 = arith.mulf %147, %124 : vector<16x32xf32>
    %152 = arith.mulf %146, %150 : vector<16x32xf32>
    %153 = arith.addf %151, %152 : vector<16x32xf32>
    %154 = math.tanh %153 : vector<16x32xf32>
    %155 = arith.mulf %148, %154 : vector<16x32xf32>
    %156 = arith.addi %14, %c4_i32 : i32
    %c1_i32_45 = arith.constant 1 : i32
    %157 = arith.addi %156, %c1_i32_45 : i32
    %158 = vector.broadcast %157 : i32 to vector<16x1xi32>
    %159 = arith.cmpi eq, %12, %158 : vector<16x1xi32>
    %160 = vector.shape_cast %159 : vector<16x1xi1> to vector<16x1xi1>
    %161 = vector.broadcast %160 : vector<16x1xi1> to vector<16x32xi1>
    %162 = arith.select %161, %155, %133 : vector<16x32xi1>, vector<16x32xf32>
    %c5_i32 = arith.constant 5 : i32
    %163 = arith.index_cast %c5_i32 : i32 to index
    %c0_46 = arith.constant 0 : index
    %c0_47 = arith.constant 0 : index
    %164 = vector.load %arg11[%163, %c0_46, %c0_47] : memref<8x16x128xf32, #tpu.memory_space<vmem>>, vector<1x16x128xf32>
    %165 = vector.shape_cast %164 : vector<1x16x128xf32> to vector<16x128xf32>
    %166 = arith.truncf %155 : vector<16x32xf32> to vector<16x32xbf16>
    %cst_48 = arith.constant dense<0.000000e+00> : vector<16x128xf32>
    %167 = tpu.matmul %166, %13, %cst_48 {dimension_numbers = #tpu.dot_dimension_numbers<[1], [0], [0], [1], [0, 0, 1, 1], [], []>} : vector<16x32xbf16>, vector<32x128xbf16>, vector<16x128xf32> -> vector<16x128xf32>
    %168 = arith.addf %165, %167 : vector<16x128xf32>
    %169 = vector.extract_strided_slice %168 {offsets = [0, 0], sizes = [16, 96], strides = [1, 1]} : vector<16x128xf32> to vector<16x96xf32>
    %170 = arith.negf %169 : vector<16x96xf32>
    %171 = math.exp %170 : vector<16x96xf32>
    %cst_49 = arith.constant 1.000000e+00 : f32
    %172 = vector.broadcast %cst_49 : f32 to vector<16x96xf32>
    %173 = arith.addf %172, %171 : vector<16x96xf32>
    %174 = arith.divf %172, %173 : vector<16x96xf32>
    %175 = vector.extract_strided_slice %174 {offsets = [0, 0], sizes = [16, 32], strides = [1, 1]} : vector<16x96xf32> to vector<16x32xf32>
    %176 = vector.extract_strided_slice %174 {offsets = [0, 32], sizes = [16, 32], strides = [1, 1]} : vector<16x96xf32> to vector<16x32xf32>
    %177 = vector.extract_strided_slice %174 {offsets = [0, 64], sizes = [16, 32], strides = [1, 1]} : vector<16x96xf32> to vector<16x32xf32>
    %178 = vector.extract_strided_slice %168 {offsets = [0, 96], sizes = [16, 32], strides = [1, 1]} : vector<16x128xf32> to vector<16x32xf32>
    %179 = math.tanh %178 : vector<16x32xf32>
    %180 = arith.mulf %176, %153 : vector<16x32xf32>
    %181 = arith.mulf %175, %179 : vector<16x32xf32>
    %182 = arith.addf %180, %181 : vector<16x32xf32>
    %183 = math.tanh %182 : vector<16x32xf32>
    %184 = arith.mulf %177, %183 : vector<16x32xf32>
    %185 = arith.addi %14, %c5_i32 : i32
    %c1_i32_50 = arith.constant 1 : i32
    %186 = arith.addi %185, %c1_i32_50 : i32
    %187 = vector.broadcast %186 : i32 to vector<16x1xi32>
    %188 = arith.cmpi eq, %12, %187 : vector<16x1xi32>
    %189 = vector.shape_cast %188 : vector<16x1xi1> to vector<16x1xi1>
    %190 = vector.broadcast %189 : vector<16x1xi1> to vector<16x32xi1>
    %191 = arith.select %190, %184, %162 : vector<16x32xi1>, vector<16x32xf32>
    %c6_i32 = arith.constant 6 : i32
    %192 = arith.index_cast %c6_i32 : i32 to index
    %c0_51 = arith.constant 0 : index
    %c0_52 = arith.constant 0 : index
    %193 = vector.load %arg11[%192, %c0_51, %c0_52] : memref<8x16x128xf32, #tpu.memory_space<vmem>>, vector<1x16x128xf32>
    %194 = vector.shape_cast %193 : vector<1x16x128xf32> to vector<16x128xf32>
    %195 = arith.truncf %184 : vector<16x32xf32> to vector<16x32xbf16>
    %cst_53 = arith.constant dense<0.000000e+00> : vector<16x128xf32>
    %196 = tpu.matmul %195, %13, %cst_53 {dimension_numbers = #tpu.dot_dimension_numbers<[1], [0], [0], [1], [0, 0, 1, 1], [], []>} : vector<16x32xbf16>, vector<32x128xbf16>, vector<16x128xf32> -> vector<16x128xf32>
    %197 = arith.addf %194, %196 : vector<16x128xf32>
    %198 = vector.extract_strided_slice %197 {offsets = [0, 0], sizes = [16, 96], strides = [1, 1]} : vector<16x128xf32> to vector<16x96xf32>
    %199 = arith.negf %198 : vector<16x96xf32>
    %200 = math.exp %199 : vector<16x96xf32>
    %cst_54 = arith.constant 1.000000e+00 : f32
    %201 = vector.broadcast %cst_54 : f32 to vector<16x96xf32>
    %202 = arith.addf %201, %200 : vector<16x96xf32>
    %203 = arith.divf %201, %202 : vector<16x96xf32>
    %204 = vector.extract_strided_slice %203 {offsets = [0, 0], sizes = [16, 32], strides = [1, 1]} : vector<16x96xf32> to vector<16x32xf32>
    %205 = vector.extract_strided_slice %203 {offsets = [0, 32], sizes = [16, 32], strides = [1, 1]} : vector<16x96xf32> to vector<16x32xf32>
    %206 = vector.extract_strided_slice %203 {offsets = [0, 64], sizes = [16, 32], strides = [1, 1]} : vector<16x96xf32> to vector<16x32xf32>
    %207 = vector.extract_strided_slice %197 {offsets = [0, 96], sizes = [16, 32], strides = [1, 1]} : vector<16x128xf32> to vector<16x32xf32>
    %208 = math.tanh %207 : vector<16x32xf32>
    %209 = arith.mulf %205, %182 : vector<16x32xf32>
    %210 = arith.mulf %204, %208 : vector<16x32xf32>
    %211 = arith.addf %209, %210 : vector<16x32xf32>
    %212 = math.tanh %211 : vector<16x32xf32>
    %213 = arith.mulf %206, %212 : vector<16x32xf32>
    %214 = arith.addi %14, %c6_i32 : i32
    %c1_i32_55 = arith.constant 1 : i32
    %215 = arith.addi %214, %c1_i32_55 : i32
    %216 = vector.broadcast %215 : i32 to vector<16x1xi32>
    %217 = arith.cmpi eq, %12, %216 : vector<16x1xi32>
    %218 = vector.shape_cast %217 : vector<16x1xi1> to vector<16x1xi1>
    %219 = vector.broadcast %218 : vector<16x1xi1> to vector<16x32xi1>
    %220 = arith.select %219, %213, %191 : vector<16x32xi1>, vector<16x32xf32>
    %c7_i32 = arith.constant 7 : i32
    %221 = arith.index_cast %c7_i32 : i32 to index
    %c0_56 = arith.constant 0 : index
    %c0_57 = arith.constant 0 : index
    %222 = vector.load %arg11[%221, %c0_56, %c0_57] : memref<8x16x128xf32, #tpu.memory_space<vmem>>, vector<1x16x128xf32>
    %223 = vector.shape_cast %222 : vector<1x16x128xf32> to vector<16x128xf32>
    %224 = arith.truncf %213 : vector<16x32xf32> to vector<16x32xbf16>
    %cst_58 = arith.constant dense<0.000000e+00> : vector<16x128xf32>
    %225 = tpu.matmul %224, %13, %cst_58 {dimension_numbers = #tpu.dot_dimension_numbers<[1], [0], [0], [1], [0, 0, 1, 1], [], []>} : vector<16x32xbf16>, vector<32x128xbf16>, vector<16x128xf32> -> vector<16x128xf32>
    %226 = arith.addf %223, %225 : vector<16x128xf32>
    %227 = vector.extract_strided_slice %226 {offsets = [0, 0], sizes = [16, 96], strides = [1, 1]} : vector<16x128xf32> to vector<16x96xf32>
    %228 = arith.negf %227 : vector<16x96xf32>
    %229 = math.exp %228 : vector<16x96xf32>
    %cst_59 = arith.constant 1.000000e+00 : f32
    %230 = vector.broadcast %cst_59 : f32 to vector<16x96xf32>
    %231 = arith.addf %230, %229 : vector<16x96xf32>
    %232 = arith.divf %230, %231 : vector<16x96xf32>
    %233 = vector.extract_strided_slice %232 {offsets = [0, 0], sizes = [16, 32], strides = [1, 1]} : vector<16x96xf32> to vector<16x32xf32>
    %234 = vector.extract_strided_slice %232 {offsets = [0, 32], sizes = [16, 32], strides = [1, 1]} : vector<16x96xf32> to vector<16x32xf32>
    %235 = vector.extract_strided_slice %232 {offsets = [0, 64], sizes = [16, 32], strides = [1, 1]} : vector<16x96xf32> to vector<16x32xf32>
    %236 = vector.extract_strided_slice %226 {offsets = [0, 96], sizes = [16, 32], strides = [1, 1]} : vector<16x128xf32> to vector<16x32xf32>
    %237 = math.tanh %236 : vector<16x32xf32>
    %238 = arith.mulf %234, %211 : vector<16x32xf32>
    %239 = arith.mulf %233, %237 : vector<16x32xf32>
    %240 = arith.addf %238, %239 : vector<16x32xf32>
    %241 = math.tanh %240 : vector<16x32xf32>
    %242 = arith.mulf %235, %241 : vector<16x32xf32>
    %243 = arith.addi %14, %c7_i32 : i32
    %c1_i32_60 = arith.constant 1 : i32
    %244 = arith.addi %243, %c1_i32_60 : i32
    %245 = vector.broadcast %244 : i32 to vector<16x1xi32>
    %246 = arith.cmpi eq, %12, %245 : vector<16x1xi32>
    %247 = vector.shape_cast %246 : vector<16x1xi1> to vector<16x1xi1>
    %248 = vector.broadcast %247 : vector<16x1xi1> to vector<16x32xi1>
    %249 = arith.select %248, %242, %220 : vector<16x32xi1>, vector<16x32xf32>
    %c8_i32_61 = arith.constant 8 : i32
    %c0_62 = arith.constant 0 : index
    %c0_63 = arith.constant 0 : index
    %250 = vector.load %arg8[%c0_62, %c0_63] : memref<16x32xf32, #tpu.memory_space<vmem>>, vector<16x32xf32>
    tpu.vector_store %arg8[%c0_62, %c0_63], %242 {strides = array<i32>} : memref<16x32xf32, #tpu.memory_space<vmem>>, vector<16x32xf32>,
    %c0_64 = arith.constant 0 : index
    %c0_65 = arith.constant 0 : index
    %251 = vector.load %arg9[%c0_64, %c0_65] : memref<16x32xf32, #tpu.memory_space<vmem>>, vector<16x32xf32>
    tpu.vector_store %arg9[%c0_64, %c0_65], %240 {strides = array<i32>} : memref<16x32xf32, #tpu.memory_space<vmem>>, vector<16x32xf32>,
    %c0_66 = arith.constant 0 : index
    %c0_67 = arith.constant 0 : index
    %252 = vector.load %arg10[%c0_66, %c0_67] : memref<16x32xf32, #tpu.memory_space<vmem>>, vector<16x32xf32>
    tpu.vector_store %arg10[%c0_66, %c0_67], %249 {strides = array<i32>} : memref<16x32xf32, #tpu.memory_space<vmem>>, vector<16x32xf32>,
    %c1_i32_68 = arith.constant 1 : i32
    %253 = arith.cmpi eq, %arg1, %c1_i32_68 : i32
    %254 = arith.extui %253 : i1 to i32
    %c0_i32_69 = arith.constant 0 : i32
    %255 = arith.cmpi ne, %254, %c0_i32_69 : i32
    scf.if %255 {
      %c0_70 = arith.constant 0 : index
      %c0_71 = arith.constant 0 : index
      %256 = vector.load %arg10[%c0_70, %c0_71] : memref<16x32xf32, #tpu.memory_space<vmem>>, vector<16x32xf32>
      %c0_72 = arith.constant 0 : index
      %c0_73 = arith.constant 0 : index
      %257 = vector.load %arg7[%c0_72, %c0_73] : memref<16x32xf32, #tpu.memory_space<vmem>>, vector<16x32xf32>
      tpu.vector_store %arg7[%c0_72, %c0_73], %256 {strides = array<i32>} : memref<16x32xf32, #tpu.memory_space<vmem>>, vector<16x32xf32>,
    } else {
    }
    return
  }
  func.func @transform_0(%arg0: i32, %arg1: i32) -> (i32, i32, i32) {
    %c0_i32 = arith.constant 0 : i32
    %c0_i32_0 = arith.constant 0 : i32
    return %arg1, %arg0, %c0_i32 : i32, i32, i32
  }
  func.func @transform_1(%arg0: i32, %arg1: i32) -> (i32, i32) {
    %c0_i32 = arith.constant 0 : i32
    %c0_i32_0 = arith.constant 0 : i32
    return %arg0, %c0_i32 : i32, i32
  }
  func.func @transform_2(%arg0: i32, %arg1: i32) -> (i32, i32) {
    %c0_i32 = arith.constant 0 : i32
    %c0_i32_0 = arith.constant 0 : i32
    %c0_i32_1 = arith.constant 0 : i32
    return %c0_i32, %c0_i32_0 : i32, i32
  }
  func.func @transform_3(%arg0: i32, %arg1: i32) -> (i32, i32) {
    %c0_i32 = arith.constant 0 : i32
    %c0_i32_0 = arith.constant 0 : i32
    %c0_i32_1 = arith.constant 0 : i32
    return %c0_i32, %c0_i32_0 : i32, i32
  }
  func.func @transform_4(%arg0: i32, %arg1: i32) -> (i32, i32) {
    %c0_i32 = arith.constant 0 : i32
    %c0_i32_0 = arith.constant 0 : i32
    %c0_i32_1 = arith.constant 0 : i32
    return %c0_i32, %c0_i32_0 : i32, i32
  }
  func.func @transform_5(%arg0: i32, %arg1: i32) -> (i32, i32) {
    %c0_i32 = arith.constant 0 : i32
    %c0_i32_0 = arith.constant 0 : i32
    return %arg0, %c0_i32 : i32, i32
  }
}

module attributes {stable_mosaic.version = 11 : i64} {
  func.func @_post_lstm_kernel(%arg0: i32, %arg1: memref<32x32xf32, #tpu.memory_space<vmem>>, %arg2: memref<2x1xi32, #tpu.memory_space<vmem>>, %arg3: memref<32x128xbf16, #tpu.memory_space<vmem>>, %arg4: memref<32x128xbf16, #tpu.memory_space<vmem>>, %arg5: memref<1x128xf32, #tpu.memory_space<vmem>>, %arg6: memref<32x32xf32, #tpu.memory_space<vmem>>) attributes {dimension_semantics = [#tpu.dimension_semantics<arbitrary>], iteration_bounds = array<i64: 1>, scalar_prefetch = 0 : i64, scratch_operands = 0 : i64, tpu.core_type = #tpu.core_type<tc>, window_params = [{pipeline_mode = #tpu.pipeline_mode<synchronous>, transform_indices = @transform_0, window_bounds = array<i64: 32, 32>}, {pipeline_mode = #tpu.pipeline_mode<synchronous>, transform_indices = @transform_1, window_bounds = array<i64: 2, 1>}, {pipeline_mode = #tpu.pipeline_mode<synchronous>, transform_indices = @transform_2, window_bounds = array<i64: 32, 128>}, {pipeline_mode = #tpu.pipeline_mode<synchronous>, transform_indices = @transform_3, window_bounds = array<i64: 32, 128>}, {pipeline_mode = #tpu.pipeline_mode<synchronous>, transform_indices = @transform_4, window_bounds = array<i64: 1, 128>}, {pipeline_mode = #tpu.pipeline_mode<synchronous>, transform_indices = @transform_5, window_bounds = array<i64: 32, 32>}]} {
    %c0 = arith.constant 0 : index
    %c0_0 = arith.constant 0 : index
    %0 = vector.load %arg1[%c0, %c0_0] : memref<32x32xf32, #tpu.memory_space<vmem>>, vector<32x32xf32>
    %1 = arith.truncf %0 : vector<32x32xf32> to vector<32x32xbf16>
    %c0_1 = arith.constant 0 : index
    %c0_2 = arith.constant 0 : index
    %2 = vector.load %arg3[%c0_1, %c0_2] : memref<32x128xbf16, #tpu.memory_space<vmem>>, vector<32x128xbf16>
    %cst = arith.constant dense<0.000000e+00> : vector<32x128xf32>
    %3 = tpu.matmul %1, %2, %cst {dimension_numbers = #tpu.dot_dimension_numbers<[1], [0], [0], [1], [0, 0, 1, 1], [], []>} : vector<32x32xbf16>, vector<32x128xbf16>, vector<32x128xf32> -> vector<32x128xf32>
    %c0_3 = arith.constant 0 : index
    %c0_4 = arith.constant 0 : index
    %4 = vector.load %arg5[%c0_3, %c0_4] : memref<1x128xf32, #tpu.memory_space<vmem>>, vector<1x128xf32>
    %5 = vector.broadcast %4 : vector<1x128xf32> to vector<32x128xf32>
    %6 = arith.addf %3, %5 : vector<32x128xf32>
    %c0_5 = arith.constant 0 : index
    %c0_6 = arith.constant 0 : index
    %7 = vector.load %arg4[%c0_5, %c0_6] : memref<32x128xbf16, #tpu.memory_space<vmem>>, vector<32x128xbf16>
    %c0_7 = arith.constant 0 : index
    %c0_8 = arith.constant 0 : index
    %8 = vector.load %arg2[%c0_7, %c0_8] : memref<2x1xi32, #tpu.memory_space<vmem>>, vector<2x1xi32>
    %cst_9 = arith.constant 0.000000e+00 : f32
    %9 = vector.broadcast %cst_9 : f32 to vector<2x32xf32>
    %cst_10 = arith.constant 0.000000e+00 : f32
    %10 = vector.broadcast %cst_10 : f32 to vector<2x32xf32>
    %11 = vector.extract_strided_slice %6 {offsets = [0, 0], sizes = [2, 128], strides = [1, 1]} : vector<32x128xf32> to vector<2x128xf32>
    %12 = arith.truncf %9 : vector<2x32xf32> to vector<2x32xbf16>
    %cst_11 = arith.constant dense<0.000000e+00> : vector<2x128xf32>
    %13 = tpu.matmul %12, %7, %cst_11 {dimension_numbers = #tpu.dot_dimension_numbers<[1], [0], [0], [1], [0, 0, 1, 1], [], []>} : vector<2x32xbf16>, vector<32x128xbf16>, vector<2x128xf32> -> vector<2x128xf32>
    %14 = arith.addf %11, %13 : vector<2x128xf32>
    %15 = vector.extract_strided_slice %14 {offsets = [0, 0], sizes = [2, 96], strides = [1, 1]} : vector<2x128xf32> to vector<2x96xf32>
    %16 = arith.negf %15 : vector<2x96xf32>
    %17 = math.exp %16 : vector<2x96xf32>
    %cst_12 = arith.constant 1.000000e+00 : f32
    %18 = vector.broadcast %cst_12 : f32 to vector<2x96xf32>
    %19 = arith.addf %18, %17 : vector<2x96xf32>
    %20 = arith.divf %18, %19 : vector<2x96xf32>
    %21 = vector.extract_strided_slice %20 {offsets = [0, 0], sizes = [2, 32], strides = [1, 1]} : vector<2x96xf32> to vector<2x32xf32>
    %22 = vector.extract_strided_slice %20 {offsets = [0, 32], sizes = [2, 32], strides = [1, 1]} : vector<2x96xf32> to vector<2x32xf32>
    %23 = vector.extract_strided_slice %20 {offsets = [0, 64], sizes = [2, 32], strides = [1, 1]} : vector<2x96xf32> to vector<2x32xf32>
    %24 = vector.extract_strided_slice %14 {offsets = [0, 96], sizes = [2, 32], strides = [1, 1]} : vector<2x128xf32> to vector<2x32xf32>
    %25 = math.tanh %24 : vector<2x32xf32>
    %26 = arith.mulf %22, %10 : vector<2x32xf32>
    %27 = arith.mulf %21, %25 : vector<2x32xf32>
    %28 = arith.addf %26, %27 : vector<2x32xf32>
    %29 = math.tanh %28 : vector<2x32xf32>
    %30 = arith.mulf %23, %29 : vector<2x32xf32>
    %c0_i32 = arith.constant 0 : i32
    %31 = vector.broadcast %c0_i32 : i32 to vector<2x1xi32>
    %32 = arith.cmpi sgt, %8, %31 : vector<2x1xi32>
    %cst_13 = arith.constant 0.000000e+00 : f32
    %33 = vector.shape_cast %32 : vector<2x1xi1> to vector<2x1xi1>
    %34 = vector.broadcast %33 : vector<2x1xi1> to vector<2x32xi1>
    %35 = vector.broadcast %cst_13 : f32 to vector<2x32xf32>
    %36 = arith.select %34, %30, %35 : vector<2x32xi1>, vector<2x32xf32>
    %c0_14 = arith.constant 0 : index
    %c0_15 = arith.constant 0 : index
    %37 = vector.load %arg6[%c0_14, %c0_15] : memref<32x32xf32, #tpu.memory_space<vmem>>, vector<2x32xf32>
    tpu.vector_store %arg6[%c0_14, %c0_15], %36 {strides = array<i32>} : memref<32x32xf32, #tpu.memory_space<vmem>>, vector<2x32xf32>,
    %38 = vector.extract_strided_slice %6 {offsets = [2, 0], sizes = [2, 128], strides = [1, 1]} : vector<32x128xf32> to vector<2x128xf32>
    %39 = arith.truncf %30 : vector<2x32xf32> to vector<2x32xbf16>
    %cst_16 = arith.constant dense<0.000000e+00> : vector<2x128xf32>
    %40 = tpu.matmul %39, %7, %cst_16 {dimension_numbers = #tpu.dot_dimension_numbers<[1], [0], [0], [1], [0, 0, 1, 1], [], []>} : vector<2x32xbf16>, vector<32x128xbf16>, vector<2x128xf32> -> vector<2x128xf32>
    %41 = arith.addf %38, %40 : vector<2x128xf32>
    %42 = vector.extract_strided_slice %41 {offsets = [0, 0], sizes = [2, 96], strides = [1, 1]} : vector<2x128xf32> to vector<2x96xf32>
    %43 = arith.negf %42 : vector<2x96xf32>
    %44 = math.exp %43 : vector<2x96xf32>
    %cst_17 = arith.constant 1.000000e+00 : f32
    %45 = vector.broadcast %cst_17 : f32 to vector<2x96xf32>
    %46 = arith.addf %45, %44 : vector<2x96xf32>
    %47 = arith.divf %45, %46 : vector<2x96xf32>
    %48 = vector.extract_strided_slice %47 {offsets = [0, 0], sizes = [2, 32], strides = [1, 1]} : vector<2x96xf32> to vector<2x32xf32>
    %49 = vector.extract_strided_slice %47 {offsets = [0, 32], sizes = [2, 32], strides = [1, 1]} : vector<2x96xf32> to vector<2x32xf32>
    %50 = vector.extract_strided_slice %47 {offsets = [0, 64], sizes = [2, 32], strides = [1, 1]} : vector<2x96xf32> to vector<2x32xf32>
    %51 = vector.extract_strided_slice %41 {offsets = [0, 96], sizes = [2, 32], strides = [1, 1]} : vector<2x128xf32> to vector<2x32xf32>
    %52 = math.tanh %51 : vector<2x32xf32>
    %53 = arith.mulf %49, %28 : vector<2x32xf32>
    %54 = arith.mulf %48, %52 : vector<2x32xf32>
    %55 = arith.addf %53, %54 : vector<2x32xf32>
    %56 = math.tanh %55 : vector<2x32xf32>
    %57 = arith.mulf %50, %56 : vector<2x32xf32>
    %c1_i32 = arith.constant 1 : i32
    %58 = vector.broadcast %c1_i32 : i32 to vector<2x1xi32>
    %59 = arith.cmpi sgt, %8, %58 : vector<2x1xi32>
    %cst_18 = arith.constant 0.000000e+00 : f32
    %60 = vector.shape_cast %59 : vector<2x1xi1> to vector<2x1xi1>
    %61 = vector.broadcast %60 : vector<2x1xi1> to vector<2x32xi1>
    %62 = vector.broadcast %cst_18 : f32 to vector<2x32xf32>
    %63 = arith.select %61, %57, %62 : vector<2x32xi1>, vector<2x32xf32>
    %c2 = arith.constant 2 : index
    %c0_19 = arith.constant 0 : index
    %64 = vector.load %arg6[%c2, %c0_19] : memref<32x32xf32, #tpu.memory_space<vmem>>, vector<2x32xf32>
    tpu.vector_store %arg6[%c2, %c0_19], %63 {strides = array<i32>} : memref<32x32xf32, #tpu.memory_space<vmem>>, vector<2x32xf32>,
    %65 = vector.extract_strided_slice %6 {offsets = [4, 0], sizes = [2, 128], strides = [1, 1]} : vector<32x128xf32> to vector<2x128xf32>
    %66 = arith.truncf %57 : vector<2x32xf32> to vector<2x32xbf16>
    %cst_20 = arith.constant dense<0.000000e+00> : vector<2x128xf32>
    %67 = tpu.matmul %66, %7, %cst_20 {dimension_numbers = #tpu.dot_dimension_numbers<[1], [0], [0], [1], [0, 0, 1, 1], [], []>} : vector<2x32xbf16>, vector<32x128xbf16>, vector<2x128xf32> -> vector<2x128xf32>
    %68 = arith.addf %65, %67 : vector<2x128xf32>
    %69 = vector.extract_strided_slice %68 {offsets = [0, 0], sizes = [2, 96], strides = [1, 1]} : vector<2x128xf32> to vector<2x96xf32>
    %70 = arith.negf %69 : vector<2x96xf32>
    %71 = math.exp %70 : vector<2x96xf32>
    %cst_21 = arith.constant 1.000000e+00 : f32
    %72 = vector.broadcast %cst_21 : f32 to vector<2x96xf32>
    %73 = arith.addf %72, %71 : vector<2x96xf32>
    %74 = arith.divf %72, %73 : vector<2x96xf32>
    %75 = vector.extract_strided_slice %74 {offsets = [0, 0], sizes = [2, 32], strides = [1, 1]} : vector<2x96xf32> to vector<2x32xf32>
    %76 = vector.extract_strided_slice %74 {offsets = [0, 32], sizes = [2, 32], strides = [1, 1]} : vector<2x96xf32> to vector<2x32xf32>
    %77 = vector.extract_strided_slice %74 {offsets = [0, 64], sizes = [2, 32], strides = [1, 1]} : vector<2x96xf32> to vector<2x32xf32>
    %78 = vector.extract_strided_slice %68 {offsets = [0, 96], sizes = [2, 32], strides = [1, 1]} : vector<2x128xf32> to vector<2x32xf32>
    %79 = math.tanh %78 : vector<2x32xf32>
    %80 = arith.mulf %76, %55 : vector<2x32xf32>
    %81 = arith.mulf %75, %79 : vector<2x32xf32>
    %82 = arith.addf %80, %81 : vector<2x32xf32>
    %83 = math.tanh %82 : vector<2x32xf32>
    %84 = arith.mulf %77, %83 : vector<2x32xf32>
    %c2_i32 = arith.constant 2 : i32
    %85 = vector.broadcast %c2_i32 : i32 to vector<2x1xi32>
    %86 = arith.cmpi sgt, %8, %85 : vector<2x1xi32>
    %cst_22 = arith.constant 0.000000e+00 : f32
    %87 = vector.shape_cast %86 : vector<2x1xi1> to vector<2x1xi1>
    %88 = vector.broadcast %87 : vector<2x1xi1> to vector<2x32xi1>
    %89 = vector.broadcast %cst_22 : f32 to vector<2x32xf32>
    %90 = arith.select %88, %84, %89 : vector<2x32xi1>, vector<2x32xf32>
    %c4 = arith.constant 4 : index
    %c0_23 = arith.constant 0 : index
    %91 = vector.load %arg6[%c4, %c0_23] : memref<32x32xf32, #tpu.memory_space<vmem>>, vector<2x32xf32>
    tpu.vector_store %arg6[%c4, %c0_23], %90 {strides = array<i32>} : memref<32x32xf32, #tpu.memory_space<vmem>>, vector<2x32xf32>,
    %92 = vector.extract_strided_slice %6 {offsets = [6, 0], sizes = [2, 128], strides = [1, 1]} : vector<32x128xf32> to vector<2x128xf32>
    %93 = arith.truncf %84 : vector<2x32xf32> to vector<2x32xbf16>
    %cst_24 = arith.constant dense<0.000000e+00> : vector<2x128xf32>
    %94 = tpu.matmul %93, %7, %cst_24 {dimension_numbers = #tpu.dot_dimension_numbers<[1], [0], [0], [1], [0, 0, 1, 1], [], []>} : vector<2x32xbf16>, vector<32x128xbf16>, vector<2x128xf32> -> vector<2x128xf32>
    %95 = arith.addf %92, %94 : vector<2x128xf32>
    %96 = vector.extract_strided_slice %95 {offsets = [0, 0], sizes = [2, 96], strides = [1, 1]} : vector<2x128xf32> to vector<2x96xf32>
    %97 = arith.negf %96 : vector<2x96xf32>
    %98 = math.exp %97 : vector<2x96xf32>
    %cst_25 = arith.constant 1.000000e+00 : f32
    %99 = vector.broadcast %cst_25 : f32 to vector<2x96xf32>
    %100 = arith.addf %99, %98 : vector<2x96xf32>
    %101 = arith.divf %99, %100 : vector<2x96xf32>
    %102 = vector.extract_strided_slice %101 {offsets = [0, 0], sizes = [2, 32], strides = [1, 1]} : vector<2x96xf32> to vector<2x32xf32>
    %103 = vector.extract_strided_slice %101 {offsets = [0, 32], sizes = [2, 32], strides = [1, 1]} : vector<2x96xf32> to vector<2x32xf32>
    %104 = vector.extract_strided_slice %101 {offsets = [0, 64], sizes = [2, 32], strides = [1, 1]} : vector<2x96xf32> to vector<2x32xf32>
    %105 = vector.extract_strided_slice %95 {offsets = [0, 96], sizes = [2, 32], strides = [1, 1]} : vector<2x128xf32> to vector<2x32xf32>
    %106 = math.tanh %105 : vector<2x32xf32>
    %107 = arith.mulf %103, %82 : vector<2x32xf32>
    %108 = arith.mulf %102, %106 : vector<2x32xf32>
    %109 = arith.addf %107, %108 : vector<2x32xf32>
    %110 = math.tanh %109 : vector<2x32xf32>
    %111 = arith.mulf %104, %110 : vector<2x32xf32>
    %c3_i32 = arith.constant 3 : i32
    %112 = vector.broadcast %c3_i32 : i32 to vector<2x1xi32>
    %113 = arith.cmpi sgt, %8, %112 : vector<2x1xi32>
    %cst_26 = arith.constant 0.000000e+00 : f32
    %114 = vector.shape_cast %113 : vector<2x1xi1> to vector<2x1xi1>
    %115 = vector.broadcast %114 : vector<2x1xi1> to vector<2x32xi1>
    %116 = vector.broadcast %cst_26 : f32 to vector<2x32xf32>
    %117 = arith.select %115, %111, %116 : vector<2x32xi1>, vector<2x32xf32>
    %c6 = arith.constant 6 : index
    %c0_27 = arith.constant 0 : index
    %118 = vector.load %arg6[%c6, %c0_27] : memref<32x32xf32, #tpu.memory_space<vmem>>, vector<2x32xf32>
    tpu.vector_store %arg6[%c6, %c0_27], %117 {strides = array<i32>} : memref<32x32xf32, #tpu.memory_space<vmem>>, vector<2x32xf32>,
    %119 = vector.extract_strided_slice %6 {offsets = [8, 0], sizes = [2, 128], strides = [1, 1]} : vector<32x128xf32> to vector<2x128xf32>
    %120 = arith.truncf %111 : vector<2x32xf32> to vector<2x32xbf16>
    %cst_28 = arith.constant dense<0.000000e+00> : vector<2x128xf32>
    %121 = tpu.matmul %120, %7, %cst_28 {dimension_numbers = #tpu.dot_dimension_numbers<[1], [0], [0], [1], [0, 0, 1, 1], [], []>} : vector<2x32xbf16>, vector<32x128xbf16>, vector<2x128xf32> -> vector<2x128xf32>
    %122 = arith.addf %119, %121 : vector<2x128xf32>
    %123 = vector.extract_strided_slice %122 {offsets = [0, 0], sizes = [2, 96], strides = [1, 1]} : vector<2x128xf32> to vector<2x96xf32>
    %124 = arith.negf %123 : vector<2x96xf32>
    %125 = math.exp %124 : vector<2x96xf32>
    %cst_29 = arith.constant 1.000000e+00 : f32
    %126 = vector.broadcast %cst_29 : f32 to vector<2x96xf32>
    %127 = arith.addf %126, %125 : vector<2x96xf32>
    %128 = arith.divf %126, %127 : vector<2x96xf32>
    %129 = vector.extract_strided_slice %128 {offsets = [0, 0], sizes = [2, 32], strides = [1, 1]} : vector<2x96xf32> to vector<2x32xf32>
    %130 = vector.extract_strided_slice %128 {offsets = [0, 32], sizes = [2, 32], strides = [1, 1]} : vector<2x96xf32> to vector<2x32xf32>
    %131 = vector.extract_strided_slice %128 {offsets = [0, 64], sizes = [2, 32], strides = [1, 1]} : vector<2x96xf32> to vector<2x32xf32>
    %132 = vector.extract_strided_slice %122 {offsets = [0, 96], sizes = [2, 32], strides = [1, 1]} : vector<2x128xf32> to vector<2x32xf32>
    %133 = math.tanh %132 : vector<2x32xf32>
    %134 = arith.mulf %130, %109 : vector<2x32xf32>
    %135 = arith.mulf %129, %133 : vector<2x32xf32>
    %136 = arith.addf %134, %135 : vector<2x32xf32>
    %137 = math.tanh %136 : vector<2x32xf32>
    %138 = arith.mulf %131, %137 : vector<2x32xf32>
    %c4_i32 = arith.constant 4 : i32
    %139 = vector.broadcast %c4_i32 : i32 to vector<2x1xi32>
    %140 = arith.cmpi sgt, %8, %139 : vector<2x1xi32>
    %cst_30 = arith.constant 0.000000e+00 : f32
    %141 = vector.shape_cast %140 : vector<2x1xi1> to vector<2x1xi1>
    %142 = vector.broadcast %141 : vector<2x1xi1> to vector<2x32xi1>
    %143 = vector.broadcast %cst_30 : f32 to vector<2x32xf32>
    %144 = arith.select %142, %138, %143 : vector<2x32xi1>, vector<2x32xf32>
    %c8 = arith.constant 8 : index
    %c0_31 = arith.constant 0 : index
    %145 = vector.load %arg6[%c8, %c0_31] : memref<32x32xf32, #tpu.memory_space<vmem>>, vector<2x32xf32>
    tpu.vector_store %arg6[%c8, %c0_31], %144 {strides = array<i32>} : memref<32x32xf32, #tpu.memory_space<vmem>>, vector<2x32xf32>,
    %146 = vector.extract_strided_slice %6 {offsets = [10, 0], sizes = [2, 128], strides = [1, 1]} : vector<32x128xf32> to vector<2x128xf32>
    %147 = arith.truncf %138 : vector<2x32xf32> to vector<2x32xbf16>
    %cst_32 = arith.constant dense<0.000000e+00> : vector<2x128xf32>
    %148 = tpu.matmul %147, %7, %cst_32 {dimension_numbers = #tpu.dot_dimension_numbers<[1], [0], [0], [1], [0, 0, 1, 1], [], []>} : vector<2x32xbf16>, vector<32x128xbf16>, vector<2x128xf32> -> vector<2x128xf32>
    %149 = arith.addf %146, %148 : vector<2x128xf32>
    %150 = vector.extract_strided_slice %149 {offsets = [0, 0], sizes = [2, 96], strides = [1, 1]} : vector<2x128xf32> to vector<2x96xf32>
    %151 = arith.negf %150 : vector<2x96xf32>
    %152 = math.exp %151 : vector<2x96xf32>
    %cst_33 = arith.constant 1.000000e+00 : f32
    %153 = vector.broadcast %cst_33 : f32 to vector<2x96xf32>
    %154 = arith.addf %153, %152 : vector<2x96xf32>
    %155 = arith.divf %153, %154 : vector<2x96xf32>
    %156 = vector.extract_strided_slice %155 {offsets = [0, 0], sizes = [2, 32], strides = [1, 1]} : vector<2x96xf32> to vector<2x32xf32>
    %157 = vector.extract_strided_slice %155 {offsets = [0, 32], sizes = [2, 32], strides = [1, 1]} : vector<2x96xf32> to vector<2x32xf32>
    %158 = vector.extract_strided_slice %155 {offsets = [0, 64], sizes = [2, 32], strides = [1, 1]} : vector<2x96xf32> to vector<2x32xf32>
    %159 = vector.extract_strided_slice %149 {offsets = [0, 96], sizes = [2, 32], strides = [1, 1]} : vector<2x128xf32> to vector<2x32xf32>
    %160 = math.tanh %159 : vector<2x32xf32>
    %161 = arith.mulf %157, %136 : vector<2x32xf32>
    %162 = arith.mulf %156, %160 : vector<2x32xf32>
    %163 = arith.addf %161, %162 : vector<2x32xf32>
    %164 = math.tanh %163 : vector<2x32xf32>
    %165 = arith.mulf %158, %164 : vector<2x32xf32>
    %c5_i32 = arith.constant 5 : i32
    %166 = vector.broadcast %c5_i32 : i32 to vector<2x1xi32>
    %167 = arith.cmpi sgt, %8, %166 : vector<2x1xi32>
    %cst_34 = arith.constant 0.000000e+00 : f32
    %168 = vector.shape_cast %167 : vector<2x1xi1> to vector<2x1xi1>
    %169 = vector.broadcast %168 : vector<2x1xi1> to vector<2x32xi1>
    %170 = vector.broadcast %cst_34 : f32 to vector<2x32xf32>
    %171 = arith.select %169, %165, %170 : vector<2x32xi1>, vector<2x32xf32>
    %c10 = arith.constant 10 : index
    %c0_35 = arith.constant 0 : index
    %172 = vector.load %arg6[%c10, %c0_35] : memref<32x32xf32, #tpu.memory_space<vmem>>, vector<2x32xf32>
    tpu.vector_store %arg6[%c10, %c0_35], %171 {strides = array<i32>} : memref<32x32xf32, #tpu.memory_space<vmem>>, vector<2x32xf32>,
    %173 = vector.extract_strided_slice %6 {offsets = [12, 0], sizes = [2, 128], strides = [1, 1]} : vector<32x128xf32> to vector<2x128xf32>
    %174 = arith.truncf %165 : vector<2x32xf32> to vector<2x32xbf16>
    %cst_36 = arith.constant dense<0.000000e+00> : vector<2x128xf32>
    %175 = tpu.matmul %174, %7, %cst_36 {dimension_numbers = #tpu.dot_dimension_numbers<[1], [0], [0], [1], [0, 0, 1, 1], [], []>} : vector<2x32xbf16>, vector<32x128xbf16>, vector<2x128xf32> -> vector<2x128xf32>
    %176 = arith.addf %173, %175 : vector<2x128xf32>
    %177 = vector.extract_strided_slice %176 {offsets = [0, 0], sizes = [2, 96], strides = [1, 1]} : vector<2x128xf32> to vector<2x96xf32>
    %178 = arith.negf %177 : vector<2x96xf32>
    %179 = math.exp %178 : vector<2x96xf32>
    %cst_37 = arith.constant 1.000000e+00 : f32
    %180 = vector.broadcast %cst_37 : f32 to vector<2x96xf32>
    %181 = arith.addf %180, %179 : vector<2x96xf32>
    %182 = arith.divf %180, %181 : vector<2x96xf32>
    %183 = vector.extract_strided_slice %182 {offsets = [0, 0], sizes = [2, 32], strides = [1, 1]} : vector<2x96xf32> to vector<2x32xf32>
    %184 = vector.extract_strided_slice %182 {offsets = [0, 32], sizes = [2, 32], strides = [1, 1]} : vector<2x96xf32> to vector<2x32xf32>
    %185 = vector.extract_strided_slice %182 {offsets = [0, 64], sizes = [2, 32], strides = [1, 1]} : vector<2x96xf32> to vector<2x32xf32>
    %186 = vector.extract_strided_slice %176 {offsets = [0, 96], sizes = [2, 32], strides = [1, 1]} : vector<2x128xf32> to vector<2x32xf32>
    %187 = math.tanh %186 : vector<2x32xf32>
    %188 = arith.mulf %184, %163 : vector<2x32xf32>
    %189 = arith.mulf %183, %187 : vector<2x32xf32>
    %190 = arith.addf %188, %189 : vector<2x32xf32>
    %191 = math.tanh %190 : vector<2x32xf32>
    %192 = arith.mulf %185, %191 : vector<2x32xf32>
    %c6_i32 = arith.constant 6 : i32
    %193 = vector.broadcast %c6_i32 : i32 to vector<2x1xi32>
    %194 = arith.cmpi sgt, %8, %193 : vector<2x1xi32>
    %cst_38 = arith.constant 0.000000e+00 : f32
    %195 = vector.shape_cast %194 : vector<2x1xi1> to vector<2x1xi1>
    %196 = vector.broadcast %195 : vector<2x1xi1> to vector<2x32xi1>
    %197 = vector.broadcast %cst_38 : f32 to vector<2x32xf32>
    %198 = arith.select %196, %192, %197 : vector<2x32xi1>, vector<2x32xf32>
    %c12 = arith.constant 12 : index
    %c0_39 = arith.constant 0 : index
    %199 = vector.load %arg6[%c12, %c0_39] : memref<32x32xf32, #tpu.memory_space<vmem>>, vector<2x32xf32>
    tpu.vector_store %arg6[%c12, %c0_39], %198 {strides = array<i32>} : memref<32x32xf32, #tpu.memory_space<vmem>>, vector<2x32xf32>,
    %200 = vector.extract_strided_slice %6 {offsets = [14, 0], sizes = [2, 128], strides = [1, 1]} : vector<32x128xf32> to vector<2x128xf32>
    %201 = arith.truncf %192 : vector<2x32xf32> to vector<2x32xbf16>
    %cst_40 = arith.constant dense<0.000000e+00> : vector<2x128xf32>
    %202 = tpu.matmul %201, %7, %cst_40 {dimension_numbers = #tpu.dot_dimension_numbers<[1], [0], [0], [1], [0, 0, 1, 1], [], []>} : vector<2x32xbf16>, vector<32x128xbf16>, vector<2x128xf32> -> vector<2x128xf32>
    %203 = arith.addf %200, %202 : vector<2x128xf32>
    %204 = vector.extract_strided_slice %203 {offsets = [0, 0], sizes = [2, 96], strides = [1, 1]} : vector<2x128xf32> to vector<2x96xf32>
    %205 = arith.negf %204 : vector<2x96xf32>
    %206 = math.exp %205 : vector<2x96xf32>
    %cst_41 = arith.constant 1.000000e+00 : f32
    %207 = vector.broadcast %cst_41 : f32 to vector<2x96xf32>
    %208 = arith.addf %207, %206 : vector<2x96xf32>
    %209 = arith.divf %207, %208 : vector<2x96xf32>
    %210 = vector.extract_strided_slice %209 {offsets = [0, 0], sizes = [2, 32], strides = [1, 1]} : vector<2x96xf32> to vector<2x32xf32>
    %211 = vector.extract_strided_slice %209 {offsets = [0, 32], sizes = [2, 32], strides = [1, 1]} : vector<2x96xf32> to vector<2x32xf32>
    %212 = vector.extract_strided_slice %209 {offsets = [0, 64], sizes = [2, 32], strides = [1, 1]} : vector<2x96xf32> to vector<2x32xf32>
    %213 = vector.extract_strided_slice %203 {offsets = [0, 96], sizes = [2, 32], strides = [1, 1]} : vector<2x128xf32> to vector<2x32xf32>
    %214 = math.tanh %213 : vector<2x32xf32>
    %215 = arith.mulf %211, %190 : vector<2x32xf32>
    %216 = arith.mulf %210, %214 : vector<2x32xf32>
    %217 = arith.addf %215, %216 : vector<2x32xf32>
    %218 = math.tanh %217 : vector<2x32xf32>
    %219 = arith.mulf %212, %218 : vector<2x32xf32>
    %c7_i32 = arith.constant 7 : i32
    %220 = vector.broadcast %c7_i32 : i32 to vector<2x1xi32>
    %221 = arith.cmpi sgt, %8, %220 : vector<2x1xi32>
    %cst_42 = arith.constant 0.000000e+00 : f32
    %222 = vector.shape_cast %221 : vector<2x1xi1> to vector<2x1xi1>
    %223 = vector.broadcast %222 : vector<2x1xi1> to vector<2x32xi1>
    %224 = vector.broadcast %cst_42 : f32 to vector<2x32xf32>
    %225 = arith.select %223, %219, %224 : vector<2x32xi1>, vector<2x32xf32>
    %c14 = arith.constant 14 : index
    %c0_43 = arith.constant 0 : index
    %226 = vector.load %arg6[%c14, %c0_43] : memref<32x32xf32, #tpu.memory_space<vmem>>, vector<2x32xf32>
    tpu.vector_store %arg6[%c14, %c0_43], %225 {strides = array<i32>} : memref<32x32xf32, #tpu.memory_space<vmem>>, vector<2x32xf32>,
    %227 = vector.extract_strided_slice %6 {offsets = [16, 0], sizes = [2, 128], strides = [1, 1]} : vector<32x128xf32> to vector<2x128xf32>
    %228 = arith.truncf %219 : vector<2x32xf32> to vector<2x32xbf16>
    %cst_44 = arith.constant dense<0.000000e+00> : vector<2x128xf32>
    %229 = tpu.matmul %228, %7, %cst_44 {dimension_numbers = #tpu.dot_dimension_numbers<[1], [0], [0], [1], [0, 0, 1, 1], [], []>} : vector<2x32xbf16>, vector<32x128xbf16>, vector<2x128xf32> -> vector<2x128xf32>
    %230 = arith.addf %227, %229 : vector<2x128xf32>
    %231 = vector.extract_strided_slice %230 {offsets = [0, 0], sizes = [2, 96], strides = [1, 1]} : vector<2x128xf32> to vector<2x96xf32>
    %232 = arith.negf %231 : vector<2x96xf32>
    %233 = math.exp %232 : vector<2x96xf32>
    %cst_45 = arith.constant 1.000000e+00 : f32
    %234 = vector.broadcast %cst_45 : f32 to vector<2x96xf32>
    %235 = arith.addf %234, %233 : vector<2x96xf32>
    %236 = arith.divf %234, %235 : vector<2x96xf32>
    %237 = vector.extract_strided_slice %236 {offsets = [0, 0], sizes = [2, 32], strides = [1, 1]} : vector<2x96xf32> to vector<2x32xf32>
    %238 = vector.extract_strided_slice %236 {offsets = [0, 32], sizes = [2, 32], strides = [1, 1]} : vector<2x96xf32> to vector<2x32xf32>
    %239 = vector.extract_strided_slice %236 {offsets = [0, 64], sizes = [2, 32], strides = [1, 1]} : vector<2x96xf32> to vector<2x32xf32>
    %240 = vector.extract_strided_slice %230 {offsets = [0, 96], sizes = [2, 32], strides = [1, 1]} : vector<2x128xf32> to vector<2x32xf32>
    %241 = math.tanh %240 : vector<2x32xf32>
    %242 = arith.mulf %238, %217 : vector<2x32xf32>
    %243 = arith.mulf %237, %241 : vector<2x32xf32>
    %244 = arith.addf %242, %243 : vector<2x32xf32>
    %245 = math.tanh %244 : vector<2x32xf32>
    %246 = arith.mulf %239, %245 : vector<2x32xf32>
    %c8_i32 = arith.constant 8 : i32
    %247 = vector.broadcast %c8_i32 : i32 to vector<2x1xi32>
    %248 = arith.cmpi sgt, %8, %247 : vector<2x1xi32>
    %cst_46 = arith.constant 0.000000e+00 : f32
    %249 = vector.shape_cast %248 : vector<2x1xi1> to vector<2x1xi1>
    %250 = vector.broadcast %249 : vector<2x1xi1> to vector<2x32xi1>
    %251 = vector.broadcast %cst_46 : f32 to vector<2x32xf32>
    %252 = arith.select %250, %246, %251 : vector<2x32xi1>, vector<2x32xf32>
    %c16 = arith.constant 16 : index
    %c0_47 = arith.constant 0 : index
    %253 = vector.load %arg6[%c16, %c0_47] : memref<32x32xf32, #tpu.memory_space<vmem>>, vector<2x32xf32>
    tpu.vector_store %arg6[%c16, %c0_47], %252 {strides = array<i32>} : memref<32x32xf32, #tpu.memory_space<vmem>>, vector<2x32xf32>,
    %254 = vector.extract_strided_slice %6 {offsets = [18, 0], sizes = [2, 128], strides = [1, 1]} : vector<32x128xf32> to vector<2x128xf32>
    %255 = arith.truncf %246 : vector<2x32xf32> to vector<2x32xbf16>
    %cst_48 = arith.constant dense<0.000000e+00> : vector<2x128xf32>
    %256 = tpu.matmul %255, %7, %cst_48 {dimension_numbers = #tpu.dot_dimension_numbers<[1], [0], [0], [1], [0, 0, 1, 1], [], []>} : vector<2x32xbf16>, vector<32x128xbf16>, vector<2x128xf32> -> vector<2x128xf32>
    %257 = arith.addf %254, %256 : vector<2x128xf32>
    %258 = vector.extract_strided_slice %257 {offsets = [0, 0], sizes = [2, 96], strides = [1, 1]} : vector<2x128xf32> to vector<2x96xf32>
    %259 = arith.negf %258 : vector<2x96xf32>
    %260 = math.exp %259 : vector<2x96xf32>
    %cst_49 = arith.constant 1.000000e+00 : f32
    %261 = vector.broadcast %cst_49 : f32 to vector<2x96xf32>
    %262 = arith.addf %261, %260 : vector<2x96xf32>
    %263 = arith.divf %261, %262 : vector<2x96xf32>
    %264 = vector.extract_strided_slice %263 {offsets = [0, 0], sizes = [2, 32], strides = [1, 1]} : vector<2x96xf32> to vector<2x32xf32>
    %265 = vector.extract_strided_slice %263 {offsets = [0, 32], sizes = [2, 32], strides = [1, 1]} : vector<2x96xf32> to vector<2x32xf32>
    %266 = vector.extract_strided_slice %263 {offsets = [0, 64], sizes = [2, 32], strides = [1, 1]} : vector<2x96xf32> to vector<2x32xf32>
    %267 = vector.extract_strided_slice %257 {offsets = [0, 96], sizes = [2, 32], strides = [1, 1]} : vector<2x128xf32> to vector<2x32xf32>
    %268 = math.tanh %267 : vector<2x32xf32>
    %269 = arith.mulf %265, %244 : vector<2x32xf32>
    %270 = arith.mulf %264, %268 : vector<2x32xf32>
    %271 = arith.addf %269, %270 : vector<2x32xf32>
    %272 = math.tanh %271 : vector<2x32xf32>
    %273 = arith.mulf %266, %272 : vector<2x32xf32>
    %c9_i32 = arith.constant 9 : i32
    %274 = vector.broadcast %c9_i32 : i32 to vector<2x1xi32>
    %275 = arith.cmpi sgt, %8, %274 : vector<2x1xi32>
    %cst_50 = arith.constant 0.000000e+00 : f32
    %276 = vector.shape_cast %275 : vector<2x1xi1> to vector<2x1xi1>
    %277 = vector.broadcast %276 : vector<2x1xi1> to vector<2x32xi1>
    %278 = vector.broadcast %cst_50 : f32 to vector<2x32xf32>
    %279 = arith.select %277, %273, %278 : vector<2x32xi1>, vector<2x32xf32>
    %c18 = arith.constant 18 : index
    %c0_51 = arith.constant 0 : index
    %280 = vector.load %arg6[%c18, %c0_51] : memref<32x32xf32, #tpu.memory_space<vmem>>, vector<2x32xf32>
    tpu.vector_store %arg6[%c18, %c0_51], %279 {strides = array<i32>} : memref<32x32xf32, #tpu.memory_space<vmem>>, vector<2x32xf32>,
    %281 = vector.extract_strided_slice %6 {offsets = [20, 0], sizes = [2, 128], strides = [1, 1]} : vector<32x128xf32> to vector<2x128xf32>
    %282 = arith.truncf %273 : vector<2x32xf32> to vector<2x32xbf16>
    %cst_52 = arith.constant dense<0.000000e+00> : vector<2x128xf32>
    %283 = tpu.matmul %282, %7, %cst_52 {dimension_numbers = #tpu.dot_dimension_numbers<[1], [0], [0], [1], [0, 0, 1, 1], [], []>} : vector<2x32xbf16>, vector<32x128xbf16>, vector<2x128xf32> -> vector<2x128xf32>
    %284 = arith.addf %281, %283 : vector<2x128xf32>
    %285 = vector.extract_strided_slice %284 {offsets = [0, 0], sizes = [2, 96], strides = [1, 1]} : vector<2x128xf32> to vector<2x96xf32>
    %286 = arith.negf %285 : vector<2x96xf32>
    %287 = math.exp %286 : vector<2x96xf32>
    %cst_53 = arith.constant 1.000000e+00 : f32
    %288 = vector.broadcast %cst_53 : f32 to vector<2x96xf32>
    %289 = arith.addf %288, %287 : vector<2x96xf32>
    %290 = arith.divf %288, %289 : vector<2x96xf32>
    %291 = vector.extract_strided_slice %290 {offsets = [0, 0], sizes = [2, 32], strides = [1, 1]} : vector<2x96xf32> to vector<2x32xf32>
    %292 = vector.extract_strided_slice %290 {offsets = [0, 32], sizes = [2, 32], strides = [1, 1]} : vector<2x96xf32> to vector<2x32xf32>
    %293 = vector.extract_strided_slice %290 {offsets = [0, 64], sizes = [2, 32], strides = [1, 1]} : vector<2x96xf32> to vector<2x32xf32>
    %294 = vector.extract_strided_slice %284 {offsets = [0, 96], sizes = [2, 32], strides = [1, 1]} : vector<2x128xf32> to vector<2x32xf32>
    %295 = math.tanh %294 : vector<2x32xf32>
    %296 = arith.mulf %292, %271 : vector<2x32xf32>
    %297 = arith.mulf %291, %295 : vector<2x32xf32>
    %298 = arith.addf %296, %297 : vector<2x32xf32>
    %299 = math.tanh %298 : vector<2x32xf32>
    %300 = arith.mulf %293, %299 : vector<2x32xf32>
    %c10_i32 = arith.constant 10 : i32
    %301 = vector.broadcast %c10_i32 : i32 to vector<2x1xi32>
    %302 = arith.cmpi sgt, %8, %301 : vector<2x1xi32>
    %cst_54 = arith.constant 0.000000e+00 : f32
    %303 = vector.shape_cast %302 : vector<2x1xi1> to vector<2x1xi1>
    %304 = vector.broadcast %303 : vector<2x1xi1> to vector<2x32xi1>
    %305 = vector.broadcast %cst_54 : f32 to vector<2x32xf32>
    %306 = arith.select %304, %300, %305 : vector<2x32xi1>, vector<2x32xf32>
    %c20 = arith.constant 20 : index
    %c0_55 = arith.constant 0 : index
    %307 = vector.load %arg6[%c20, %c0_55] : memref<32x32xf32, #tpu.memory_space<vmem>>, vector<2x32xf32>
    tpu.vector_store %arg6[%c20, %c0_55], %306 {strides = array<i32>} : memref<32x32xf32, #tpu.memory_space<vmem>>, vector<2x32xf32>,
    %308 = vector.extract_strided_slice %6 {offsets = [22, 0], sizes = [2, 128], strides = [1, 1]} : vector<32x128xf32> to vector<2x128xf32>
    %309 = arith.truncf %300 : vector<2x32xf32> to vector<2x32xbf16>
    %cst_56 = arith.constant dense<0.000000e+00> : vector<2x128xf32>
    %310 = tpu.matmul %309, %7, %cst_56 {dimension_numbers = #tpu.dot_dimension_numbers<[1], [0], [0], [1], [0, 0, 1, 1], [], []>} : vector<2x32xbf16>, vector<32x128xbf16>, vector<2x128xf32> -> vector<2x128xf32>
    %311 = arith.addf %308, %310 : vector<2x128xf32>
    %312 = vector.extract_strided_slice %311 {offsets = [0, 0], sizes = [2, 96], strides = [1, 1]} : vector<2x128xf32> to vector<2x96xf32>
    %313 = arith.negf %312 : vector<2x96xf32>
    %314 = math.exp %313 : vector<2x96xf32>
    %cst_57 = arith.constant 1.000000e+00 : f32
    %315 = vector.broadcast %cst_57 : f32 to vector<2x96xf32>
    %316 = arith.addf %315, %314 : vector<2x96xf32>
    %317 = arith.divf %315, %316 : vector<2x96xf32>
    %318 = vector.extract_strided_slice %317 {offsets = [0, 0], sizes = [2, 32], strides = [1, 1]} : vector<2x96xf32> to vector<2x32xf32>
    %319 = vector.extract_strided_slice %317 {offsets = [0, 32], sizes = [2, 32], strides = [1, 1]} : vector<2x96xf32> to vector<2x32xf32>
    %320 = vector.extract_strided_slice %317 {offsets = [0, 64], sizes = [2, 32], strides = [1, 1]} : vector<2x96xf32> to vector<2x32xf32>
    %321 = vector.extract_strided_slice %311 {offsets = [0, 96], sizes = [2, 32], strides = [1, 1]} : vector<2x128xf32> to vector<2x32xf32>
    %322 = math.tanh %321 : vector<2x32xf32>
    %323 = arith.mulf %319, %298 : vector<2x32xf32>
    %324 = arith.mulf %318, %322 : vector<2x32xf32>
    %325 = arith.addf %323, %324 : vector<2x32xf32>
    %326 = math.tanh %325 : vector<2x32xf32>
    %327 = arith.mulf %320, %326 : vector<2x32xf32>
    %c11_i32 = arith.constant 11 : i32
    %328 = vector.broadcast %c11_i32 : i32 to vector<2x1xi32>
    %329 = arith.cmpi sgt, %8, %328 : vector<2x1xi32>
    %cst_58 = arith.constant 0.000000e+00 : f32
    %330 = vector.shape_cast %329 : vector<2x1xi1> to vector<2x1xi1>
    %331 = vector.broadcast %330 : vector<2x1xi1> to vector<2x32xi1>
    %332 = vector.broadcast %cst_58 : f32 to vector<2x32xf32>
    %333 = arith.select %331, %327, %332 : vector<2x32xi1>, vector<2x32xf32>
    %c22 = arith.constant 22 : index
    %c0_59 = arith.constant 0 : index
    %334 = vector.load %arg6[%c22, %c0_59] : memref<32x32xf32, #tpu.memory_space<vmem>>, vector<2x32xf32>
    tpu.vector_store %arg6[%c22, %c0_59], %333 {strides = array<i32>} : memref<32x32xf32, #tpu.memory_space<vmem>>, vector<2x32xf32>,
    %335 = vector.extract_strided_slice %6 {offsets = [24, 0], sizes = [2, 128], strides = [1, 1]} : vector<32x128xf32> to vector<2x128xf32>
    %336 = arith.truncf %327 : vector<2x32xf32> to vector<2x32xbf16>
    %cst_60 = arith.constant dense<0.000000e+00> : vector<2x128xf32>
    %337 = tpu.matmul %336, %7, %cst_60 {dimension_numbers = #tpu.dot_dimension_numbers<[1], [0], [0], [1], [0, 0, 1, 1], [], []>} : vector<2x32xbf16>, vector<32x128xbf16>, vector<2x128xf32> -> vector<2x128xf32>
    %338 = arith.addf %335, %337 : vector<2x128xf32>
    %339 = vector.extract_strided_slice %338 {offsets = [0, 0], sizes = [2, 96], strides = [1, 1]} : vector<2x128xf32> to vector<2x96xf32>
    %340 = arith.negf %339 : vector<2x96xf32>
    %341 = math.exp %340 : vector<2x96xf32>
    %cst_61 = arith.constant 1.000000e+00 : f32
    %342 = vector.broadcast %cst_61 : f32 to vector<2x96xf32>
    %343 = arith.addf %342, %341 : vector<2x96xf32>
    %344 = arith.divf %342, %343 : vector<2x96xf32>
    %345 = vector.extract_strided_slice %344 {offsets = [0, 0], sizes = [2, 32], strides = [1, 1]} : vector<2x96xf32> to vector<2x32xf32>
    %346 = vector.extract_strided_slice %344 {offsets = [0, 32], sizes = [2, 32], strides = [1, 1]} : vector<2x96xf32> to vector<2x32xf32>
    %347 = vector.extract_strided_slice %344 {offsets = [0, 64], sizes = [2, 32], strides = [1, 1]} : vector<2x96xf32> to vector<2x32xf32>
    %348 = vector.extract_strided_slice %338 {offsets = [0, 96], sizes = [2, 32], strides = [1, 1]} : vector<2x128xf32> to vector<2x32xf32>
    %349 = math.tanh %348 : vector<2x32xf32>
    %350 = arith.mulf %346, %325 : vector<2x32xf32>
    %351 = arith.mulf %345, %349 : vector<2x32xf32>
    %352 = arith.addf %350, %351 : vector<2x32xf32>
    %353 = math.tanh %352 : vector<2x32xf32>
    %354 = arith.mulf %347, %353 : vector<2x32xf32>
    %c12_i32 = arith.constant 12 : i32
    %355 = vector.broadcast %c12_i32 : i32 to vector<2x1xi32>
    %356 = arith.cmpi sgt, %8, %355 : vector<2x1xi32>
    %cst_62 = arith.constant 0.000000e+00 : f32
    %357 = vector.shape_cast %356 : vector<2x1xi1> to vector<2x1xi1>
    %358 = vector.broadcast %357 : vector<2x1xi1> to vector<2x32xi1>
    %359 = vector.broadcast %cst_62 : f32 to vector<2x32xf32>
    %360 = arith.select %358, %354, %359 : vector<2x32xi1>, vector<2x32xf32>
    %c24 = arith.constant 24 : index
    %c0_63 = arith.constant 0 : index
    %361 = vector.load %arg6[%c24, %c0_63] : memref<32x32xf32, #tpu.memory_space<vmem>>, vector<2x32xf32>
    tpu.vector_store %arg6[%c24, %c0_63], %360 {strides = array<i32>} : memref<32x32xf32, #tpu.memory_space<vmem>>, vector<2x32xf32>,
    %362 = vector.extract_strided_slice %6 {offsets = [26, 0], sizes = [2, 128], strides = [1, 1]} : vector<32x128xf32> to vector<2x128xf32>
    %363 = arith.truncf %354 : vector<2x32xf32> to vector<2x32xbf16>
    %cst_64 = arith.constant dense<0.000000e+00> : vector<2x128xf32>
    %364 = tpu.matmul %363, %7, %cst_64 {dimension_numbers = #tpu.dot_dimension_numbers<[1], [0], [0], [1], [0, 0, 1, 1], [], []>} : vector<2x32xbf16>, vector<32x128xbf16>, vector<2x128xf32> -> vector<2x128xf32>
    %365 = arith.addf %362, %364 : vector<2x128xf32>
    %366 = vector.extract_strided_slice %365 {offsets = [0, 0], sizes = [2, 96], strides = [1, 1]} : vector<2x128xf32> to vector<2x96xf32>
    %367 = arith.negf %366 : vector<2x96xf32>
    %368 = math.exp %367 : vector<2x96xf32>
    %cst_65 = arith.constant 1.000000e+00 : f32
    %369 = vector.broadcast %cst_65 : f32 to vector<2x96xf32>
    %370 = arith.addf %369, %368 : vector<2x96xf32>
    %371 = arith.divf %369, %370 : vector<2x96xf32>
    %372 = vector.extract_strided_slice %371 {offsets = [0, 0], sizes = [2, 32], strides = [1, 1]} : vector<2x96xf32> to vector<2x32xf32>
    %373 = vector.extract_strided_slice %371 {offsets = [0, 32], sizes = [2, 32], strides = [1, 1]} : vector<2x96xf32> to vector<2x32xf32>
    %374 = vector.extract_strided_slice %371 {offsets = [0, 64], sizes = [2, 32], strides = [1, 1]} : vector<2x96xf32> to vector<2x32xf32>
    %375 = vector.extract_strided_slice %365 {offsets = [0, 96], sizes = [2, 32], strides = [1, 1]} : vector<2x128xf32> to vector<2x32xf32>
    %376 = math.tanh %375 : vector<2x32xf32>
    %377 = arith.mulf %373, %352 : vector<2x32xf32>
    %378 = arith.mulf %372, %376 : vector<2x32xf32>
    %379 = arith.addf %377, %378 : vector<2x32xf32>
    %380 = math.tanh %379 : vector<2x32xf32>
    %381 = arith.mulf %374, %380 : vector<2x32xf32>
    %c13_i32 = arith.constant 13 : i32
    %382 = vector.broadcast %c13_i32 : i32 to vector<2x1xi32>
    %383 = arith.cmpi sgt, %8, %382 : vector<2x1xi32>
    %cst_66 = arith.constant 0.000000e+00 : f32
    %384 = vector.shape_cast %383 : vector<2x1xi1> to vector<2x1xi1>
    %385 = vector.broadcast %384 : vector<2x1xi1> to vector<2x32xi1>
    %386 = vector.broadcast %cst_66 : f32 to vector<2x32xf32>
    %387 = arith.select %385, %381, %386 : vector<2x32xi1>, vector<2x32xf32>
    %c26 = arith.constant 26 : index
    %c0_67 = arith.constant 0 : index
    %388 = vector.load %arg6[%c26, %c0_67] : memref<32x32xf32, #tpu.memory_space<vmem>>, vector<2x32xf32>
    tpu.vector_store %arg6[%c26, %c0_67], %387 {strides = array<i32>} : memref<32x32xf32, #tpu.memory_space<vmem>>, vector<2x32xf32>,
    %389 = vector.extract_strided_slice %6 {offsets = [28, 0], sizes = [2, 128], strides = [1, 1]} : vector<32x128xf32> to vector<2x128xf32>
    %390 = arith.truncf %381 : vector<2x32xf32> to vector<2x32xbf16>
    %cst_68 = arith.constant dense<0.000000e+00> : vector<2x128xf32>
    %391 = tpu.matmul %390, %7, %cst_68 {dimension_numbers = #tpu.dot_dimension_numbers<[1], [0], [0], [1], [0, 0, 1, 1], [], []>} : vector<2x32xbf16>, vector<32x128xbf16>, vector<2x128xf32> -> vector<2x128xf32>
    %392 = arith.addf %389, %391 : vector<2x128xf32>
    %393 = vector.extract_strided_slice %392 {offsets = [0, 0], sizes = [2, 96], strides = [1, 1]} : vector<2x128xf32> to vector<2x96xf32>
    %394 = arith.negf %393 : vector<2x96xf32>
    %395 = math.exp %394 : vector<2x96xf32>
    %cst_69 = arith.constant 1.000000e+00 : f32
    %396 = vector.broadcast %cst_69 : f32 to vector<2x96xf32>
    %397 = arith.addf %396, %395 : vector<2x96xf32>
    %398 = arith.divf %396, %397 : vector<2x96xf32>
    %399 = vector.extract_strided_slice %398 {offsets = [0, 0], sizes = [2, 32], strides = [1, 1]} : vector<2x96xf32> to vector<2x32xf32>
    %400 = vector.extract_strided_slice %398 {offsets = [0, 32], sizes = [2, 32], strides = [1, 1]} : vector<2x96xf32> to vector<2x32xf32>
    %401 = vector.extract_strided_slice %398 {offsets = [0, 64], sizes = [2, 32], strides = [1, 1]} : vector<2x96xf32> to vector<2x32xf32>
    %402 = vector.extract_strided_slice %392 {offsets = [0, 96], sizes = [2, 32], strides = [1, 1]} : vector<2x128xf32> to vector<2x32xf32>
    %403 = math.tanh %402 : vector<2x32xf32>
    %404 = arith.mulf %400, %379 : vector<2x32xf32>
    %405 = arith.mulf %399, %403 : vector<2x32xf32>
    %406 = arith.addf %404, %405 : vector<2x32xf32>
    %407 = math.tanh %406 : vector<2x32xf32>
    %408 = arith.mulf %401, %407 : vector<2x32xf32>
    %c14_i32 = arith.constant 14 : i32
    %409 = vector.broadcast %c14_i32 : i32 to vector<2x1xi32>
    %410 = arith.cmpi sgt, %8, %409 : vector<2x1xi32>
    %cst_70 = arith.constant 0.000000e+00 : f32
    %411 = vector.shape_cast %410 : vector<2x1xi1> to vector<2x1xi1>
    %412 = vector.broadcast %411 : vector<2x1xi1> to vector<2x32xi1>
    %413 = vector.broadcast %cst_70 : f32 to vector<2x32xf32>
    %414 = arith.select %412, %408, %413 : vector<2x32xi1>, vector<2x32xf32>
    %c28 = arith.constant 28 : index
    %c0_71 = arith.constant 0 : index
    %415 = vector.load %arg6[%c28, %c0_71] : memref<32x32xf32, #tpu.memory_space<vmem>>, vector<2x32xf32>
    tpu.vector_store %arg6[%c28, %c0_71], %414 {strides = array<i32>} : memref<32x32xf32, #tpu.memory_space<vmem>>, vector<2x32xf32>,
    %416 = vector.extract_strided_slice %6 {offsets = [30, 0], sizes = [2, 128], strides = [1, 1]} : vector<32x128xf32> to vector<2x128xf32>
    %417 = arith.truncf %408 : vector<2x32xf32> to vector<2x32xbf16>
    %cst_72 = arith.constant dense<0.000000e+00> : vector<2x128xf32>
    %418 = tpu.matmul %417, %7, %cst_72 {dimension_numbers = #tpu.dot_dimension_numbers<[1], [0], [0], [1], [0, 0, 1, 1], [], []>} : vector<2x32xbf16>, vector<32x128xbf16>, vector<2x128xf32> -> vector<2x128xf32>
    %419 = arith.addf %416, %418 : vector<2x128xf32>
    %420 = vector.extract_strided_slice %419 {offsets = [0, 0], sizes = [2, 96], strides = [1, 1]} : vector<2x128xf32> to vector<2x96xf32>
    %421 = arith.negf %420 : vector<2x96xf32>
    %422 = math.exp %421 : vector<2x96xf32>
    %cst_73 = arith.constant 1.000000e+00 : f32
    %423 = vector.broadcast %cst_73 : f32 to vector<2x96xf32>
    %424 = arith.addf %423, %422 : vector<2x96xf32>
    %425 = arith.divf %423, %424 : vector<2x96xf32>
    %426 = vector.extract_strided_slice %425 {offsets = [0, 0], sizes = [2, 32], strides = [1, 1]} : vector<2x96xf32> to vector<2x32xf32>
    %427 = vector.extract_strided_slice %425 {offsets = [0, 32], sizes = [2, 32], strides = [1, 1]} : vector<2x96xf32> to vector<2x32xf32>
    %428 = vector.extract_strided_slice %425 {offsets = [0, 64], sizes = [2, 32], strides = [1, 1]} : vector<2x96xf32> to vector<2x32xf32>
    %429 = vector.extract_strided_slice %419 {offsets = [0, 96], sizes = [2, 32], strides = [1, 1]} : vector<2x128xf32> to vector<2x32xf32>
    %430 = math.tanh %429 : vector<2x32xf32>
    %431 = arith.mulf %427, %406 : vector<2x32xf32>
    %432 = arith.mulf %426, %430 : vector<2x32xf32>
    %433 = arith.addf %431, %432 : vector<2x32xf32>
    %434 = math.tanh %433 : vector<2x32xf32>
    %435 = arith.mulf %428, %434 : vector<2x32xf32>
    %c15_i32 = arith.constant 15 : i32
    %436 = vector.broadcast %c15_i32 : i32 to vector<2x1xi32>
    %437 = arith.cmpi sgt, %8, %436 : vector<2x1xi32>
    %cst_74 = arith.constant 0.000000e+00 : f32
    %438 = vector.shape_cast %437 : vector<2x1xi1> to vector<2x1xi1>
    %439 = vector.broadcast %438 : vector<2x1xi1> to vector<2x32xi1>
    %440 = vector.broadcast %cst_74 : f32 to vector<2x32xf32>
    %441 = arith.select %439, %435, %440 : vector<2x32xi1>, vector<2x32xf32>
    %c30 = arith.constant 30 : index
    %c0_75 = arith.constant 0 : index
    %442 = vector.load %arg6[%c30, %c0_75] : memref<32x32xf32, #tpu.memory_space<vmem>>, vector<2x32xf32>
    tpu.vector_store %arg6[%c30, %c0_75], %441 {strides = array<i32>} : memref<32x32xf32, #tpu.memory_space<vmem>>, vector<2x32xf32>,
    return
  }
  func.func @transform_0(%arg0: i32) -> (i32, i32) {
    %c0_i32 = arith.constant 0 : i32
    %c0_i32_0 = arith.constant 0 : i32
    %c0_i32_1 = arith.constant 0 : i32
    return %c0_i32, %c0_i32_0 : i32, i32
  }
  func.func @transform_1(%arg0: i32) -> (i32, i32) {
    %c0_i32 = arith.constant 0 : i32
    %c0_i32_0 = arith.constant 0 : i32
    %c0_i32_1 = arith.constant 0 : i32
    return %c0_i32, %c0_i32_0 : i32, i32
  }
  func.func @transform_2(%arg0: i32) -> (i32, i32) {
    %c0_i32 = arith.constant 0 : i32
    %c0_i32_0 = arith.constant 0 : i32
    %c0_i32_1 = arith.constant 0 : i32
    return %c0_i32, %c0_i32_0 : i32, i32
  }
  func.func @transform_3(%arg0: i32) -> (i32, i32) {
    %c0_i32 = arith.constant 0 : i32
    %c0_i32_0 = arith.constant 0 : i32
    %c0_i32_1 = arith.constant 0 : i32
    return %c0_i32, %c0_i32_0 : i32, i32
  }
  func.func @transform_4(%arg0: i32) -> (i32, i32) {
    %c0_i32 = arith.constant 0 : i32
    %c0_i32_0 = arith.constant 0 : i32
    %c0_i32_1 = arith.constant 0 : i32
    return %c0_i32, %c0_i32_0 : i32, i32
  }
  func.func @transform_5(%arg0: i32) -> (i32, i32) {
    %c0_i32 = arith.constant 0 : i32
    %c0_i32_0 = arith.constant 0 : i32
    %c0_i32_1 = arith.constant 0 : i32
    return %c0_i32, %c0_i32_0 : i32, i32
  }
}

</mosaic_0001>

<llo_original>
// kernel: hierarchical_forward.3
$region0: #{hierarchical_forward.3}
  #allocation0 [shape = 'u32[]', space=smem, size = 0x4, offset = 0x4, fixed_abs, tag = 'smem constant byte address 0x4 - core index']
  #allocation1 [shape = 'u32[144,128]{1,0:T(1,128)}', space=vmem, size = 0x12000, scoped, tag = 'internal scratch']
  %s0 = inlined_call_operand.vmem [shape: f32[32,32], index: 0, kind: input, shape index: {}]
  %s1 = inlined_call_operand.vmem [shape: s32[2,1], index: 1, kind: input, shape index: {}]
  %s2 = inlined_call_operand.vmem [shape: bf16[32,128], index: 2, kind: input, shape index: {}]
  %s3 = inlined_call_operand.vmem [shape: bf16[32,128], index: 3, kind: input, shape index: {}]
  %s4 = inlined_call_operand.vmem [shape: f32[1,128], index: 4, kind: input, shape index: {}]
  %s5 = inlined_call_operand.vmem [shape: f32[32,32], index: 5, kind: output, shape index: {}]
  %s6 = sld [smem:[#allocation0]]
  $region30: #{hierarchical_forward.3} parent=0
    _
  %s8 = ssub.s32 1, %s6
  %s9 = scalar_select 0, %s8, %s6
  // Predicated region
  $region2: #{hierarchical_forward.3} parent=0 // pred_check
    _
  $region3: #{hierarchical_forward.3} parent=0 // pred_check_branch
    %11 = sbr.rel (0) target = $region5
  $region4: #{hierarchical_forward.3} parent=0 // pred_region
    _
  $region5: #{hierarchical_forward.3} parent=0 // pred_fallthru
    _
  // Predicated region
  $region6: #{hierarchical_forward.3} parent=0 // pred_check
    _
  $region7: #{hierarchical_forward.3} parent=0 // pred_check_branch
    %13 = sbr.rel (0) target = $region9
  $region8: #{hierarchical_forward.3} parent=0 // pred_region
    _
  $region9: #{hierarchical_forward.3} parent=0 // pred_fallthru
    _
  // Predicated region
  $region10: #{hierarchical_forward.3} parent=0 // pred_check
    _
  $region11: #{hierarchical_forward.3} parent=0 // pred_check_branch
    %15 = sbr.rel (0) target = $region13
  $region12: #{hierarchical_forward.3} parent=0 // pred_region
    _
  $region13: #{hierarchical_forward.3} parent=0 // pred_fallthru
    _
  // Predicated region
  $region14: #{hierarchical_forward.3} parent=0 // pred_check
    _
  $region15: #{hierarchical_forward.3} parent=0 // pred_check_branch
    %17 = sbr.rel (0) target = $region17
  $region16: #{hierarchical_forward.3} parent=0 // pred_region
    _
  $region17: #{hierarchical_forward.3} parent=0 // pred_fallthru
    _
  // Predicated region
  $region18: #{hierarchical_forward.3} parent=0 // pred_check
    _
  $region19: #{hierarchical_forward.3} parent=0 // pred_check_branch
    %19 = sbr.rel (0) target = $region21
  $region20: #{hierarchical_forward.3} parent=0 // pred_region
    _
  $region21: #{hierarchical_forward.3} parent=0 // pred_fallthru
    _
  %v21 = vld [vmem:[%s0] sm:$0xff]
  %v22 = vld [vmem:[%s0 + $0x8] sm:$0xff]
  %v23 = vld [vmem:[%s0 + $0x10] sm:$0xff]
  %v24 = vld [vmem:[%s0 + $0x18] sm:$0xff]
  %v25 = vpack.c.bf16 %v22, %v21
  %v26 = vpack.c.bf16 %v24, %v23
  %v27 = vld [vmem:[%s2] sm:$0xf]
  %v28 = vld [vmem:[%s2 + $0x4] sm:$0xf]
  %v29 = vld [vmem:[%s2 + $0x8] sm:$0xf]
  %v30 = vld [vmem:[%s2 + $0xc] sm:$0xf]
  %v31 = vld [vmem:[%s4] sm:$0x1]
  %v33 = vlaneseq
  %v34 = vshrl.u32 %v33, 7
  %v35 = vsub.s32 0, %v34
  %v36 = vrot.slane %v31, %v35
  %v42 = vunpack.c.l.b16 %v27
  %v43 = vunpack.c.l.b16 %v28
  %v44 = vunpack.c.l.b16 %v29
  %v45 = vunpack.c.l.b16 %v30
  %v46 = vpack.c.b16 %v43, %v42
  %v47 = vpack.c.b16 %v45, %v44
  %vm50 = vcmask 261120
  %v52 = vsel %vm50, %v25, 0
  %v55 = vsel %vm50, %v26, 0
  %57 = vmatprep.subr.bf16.mxu0 0
  %58 = vmatpush1.bf16.msra.mxu0 %v46
  %59 = vmatprep.subr.bf16.mxu0 0
  %60 = vmatpush1.bf16.msra.mxu0 %v47
  %61 = vmatprep.subr.bf16.mxu0 0
  %62 = vmatpush1.bf16.msra.mxu0 0
  %63 = vmatprep.subr.bf16.mxu0 0
  %64 = vmatpush1.bf16.msra.mxu0 0
  %65 = vmatprep.subr.bf16.mxu0 0
  %66 = vmatpush1.bf16.msra.mxu0 0
  %67 = vmatprep.subr.bf16.mxu0 0
  %68 = vmatpush1.bf16.msra.mxu0 0
  %69 = vmatprep.subr.bf16.mxu0 0
  %70 = vmatpush1.bf16.msra.mxu0 0
  %71 = vmatprep.subr.bf16.mxu0 0
  %72 = vmatpush1.bf16.msra.mxu0 0
  %73 = vmatprep.subr.bf16.mxu0 0
  %74 = vmatpush1.bf16.msra.mxu0 0
  %75 = vmatprep.subr.bf16.mxu0 0
  %76 = vmatpush1.bf16.msra.mxu0 0
  %77 = vmatprep.subr.bf16.mxu0 0
  %78 = vmatpush1.bf16.msra.mxu0 0
  %79 = vmatprep.subr.bf16.mxu0 0
  %80 = vmatpush1.bf16.msra.mxu0 0
  %81 = vmatprep.subr.bf16.mxu0 0
  %82 = vmatpush1.bf16.msra.mxu0 0
  %83 = vmatprep.subr.bf16.mxu0 0
  %84 = vmatpush1.bf16.msra.mxu0 0
  %85 = vmatprep.subr.bf16.mxu0 0
  %86 = vmatpush1.bf16.msra.mxu0 0
  %87 = vmatprep.subr.bf16.mxu0 0
  %88 = vmatpush1.bf16.msra.mxu0 0
  %89 = vmatprep.mubr.bf16.mxu0 0
  %90 = vmatmul.mubr.bf16.gmra.mrb[0].mxu0 %v52
  %v91 = vpop.f32.mrb[0].mxu0
  %v92 = vadd.f32 %v36, %v91
  %v93 = vpop.f32.mrb[0].mxu0
  %v94 = vpop.f32.mrb[0].mxu0
  %v95 = vadd.f32 %v36, %v94
  %v96 = vpop.f32.mrb[0].mxu0
  %97 = vmatprep.mubr.bf16.mxu0 0
  %98 = vmatmul.mubr.bf16.gmra.mrb[0].mxu0 %v55
  %v99 = vpop.f32.mrb[0].mxu0
  %v100 = vadd.f32 %v36, %v99
  %v101 = vpop.f32.mrb[0].mxu0
  %v102 = vpop.f32.mrb[0].mxu0
  %v103 = vadd.f32 %v36, %v102
  %v104 = vpop.f32.mrb[0].mxu0
  %105 = vdwg.mxu0
  %v106 = vld [vmem:[%s3] sm:$0xf]
  %v107 = vld [vmem:[%s3 + $0x4] sm:$0xf]
  %v108 = vld [vmem:[%s3 + $0x8] sm:$0xf]
  %v109 = vld [vmem:[%s3 + $0xc] sm:$0xf]
  %v110 = vld [vmem:[%s1] sm:$0x3]
  %v115 = vunpack.c.l.b16 %v106
  %v116 = vunpack.c.l.b16 %v107
  %v117 = vunpack.c.l.b16 %v108
  %v118 = vunpack.c.l.b16 %v109
  %v119 = vpack.c.b16 %v116, %v115
  %v120 = vpack.c.b16 %v118, %v117
  %v124 = vsel %vm50, 0, 0
  %126 = vmatprep.subr.bf16.mxu0 0
  %127 = vmatpush1.bf16.msra.mxu0 %v119
  %128 = vmatprep.subr.bf16.mxu0 0
  %129 = vmatpush1.bf16.msra.mxu0 %v120
  %130 = vmatprep.subr.bf16.mxu0 0
  %131 = vmatpush1.bf16.msra.mxu0 0
  %132 = vmatprep.subr.bf16.mxu0 0
  %133 = vmatpush1.bf16.msra.mxu0 0
  %134 = vmatprep.subr.bf16.mxu0 0
  %135 = vmatpush1.bf16.msra.mxu0 0
  %136 = vmatprep.subr.bf16.mxu0 0
  %137 = vmatpush1.bf16.msra.mxu0 0
  %138 = vmatprep.subr.bf16.mxu0 0
  %139 = vmatpush1.bf16.msra.mxu0 0
  %140 = vmatprep.subr.bf16.mxu0 0
  %141 = vmatpush1.bf16.msra.mxu0 0
  %142 = vmatprep.subr.bf16.mxu0 0
  %143 = vmatpush1.bf16.msra.mxu0 0
  %144 = vmatprep.subr.bf16.mxu0 0
  %145 = vmatpush1.bf16.msra.mxu0 0
  %146 = vmatprep.subr.bf16.mxu0 0
  %147 = vmatpush1.bf16.msra.mxu0 0
  %148 = vmatprep.subr.bf16.mxu0 0
  %149 = vmatpush1.bf16.msra.mxu0 0
  %150 = vmatprep.subr.bf16.mxu0 0
  %151 = vmatpush1.bf16.msra.mxu0 0
  %152 = vmatprep.subr.bf16.mxu0 0
  %153 = vmatpush1.bf16.msra.mxu0 0
  %154 = vmatprep.subr.bf16.mxu0 0
  %155 = vmatpush1.bf16.msra.mxu0 0
  %156 = vmatprep.subr.bf16.mxu0 0
  %157 = vmatpush1.bf16.msra.mxu0 0
  %158 = vmatprep.mubr.bf16.mxu0 0
  %159 = vmatmul.mubr.bf16.gmra.mrb[0].mxu0 %v124
  %v160 = vpop.f32.mrb[0].mxu0
  %v161 = vadd.f32 0.0, %v160
  %v162 = vpop.f32.mrb[0].mxu0
  %v163 = vpop.f32.mrb[0].mxu0
  %v164 = vpop.f32.mrb[0].mxu0
  %165 = vdwg.mxu0
  %v166 = vadd.f32 %v92, %v161
  %v167 = vxor.u32 %v166, 2147483648
  %v168 = vmul.f32 %v167, 1.442695
  %v169 = vpow.pop %v168
  %v170 = vadd.f32 %v169, 1.0
  %v171 = vrcp.pop %v170
  %v172 = vmul.f32 1.0, %v171
  %v173 = vtanh.pop %v166
  %v174 = vmul.f32 %v172, 0.0
  %176 = vrot.lane.b32.xlu0 %v173, 32
  %v177 = vpop.permute.xlu0 %176
  %v179 = vmul.f32 %v172, %v177
  %181 = vrot.lane.b32.xlu0 %v179, 32
  %v182 = vpop.permute.xlu0 %181
  %v184 = vadd.f32 %v174, %v182
  %v185 = vtanh.pop %v184
  %187 = vrot.lane.b32.xlu0 %v185, 32
  %v188 = vpop.permute.xlu0 %187
  %v190 = vmul.f32 %v172, %v188
  %vm191 = vcmp.gt.s32.totalorder %v110, 0
  %v192 = vsel %vm191, 1, 0
  %193 = vset.pattern.permute.xlu0 0
  %194 = vperm.xlu0 %193, %v192
  %v195 = vpop.permute.xlu0 %194
  %vm196 = vcmp.eq.s32.totalorder %v195, 1
  %v197 = vsel %vm196, %v190, 0.0
  %199 = vrot.lane.b32.xlu0 %v197, 64
  %v200 = vpop.permute.xlu0 %199
  %vm202 = vcmask 254976
  %203 = vst.msk [vmem:[%s5] sm:$0x3] %vm202, %v200
  %v204 = vpack.c.bf16 %v190, %v190
  %206 = vrot.lane.b32.xlu0 %v204, 64
  %v207 = vpop.permute.xlu0 %206
  %v209 = vsel %vm50, %v207, 0
  %211 = vmatprep.subr.bf16.mxu0 0
  %212 = vmatpush1.bf16.msra.mxu0 %v119
  %213 = vmatprep.subr.bf16.mxu0 0
  %214 = vmatpush1.bf16.msra.mxu0 %v120
  %215 = vmatprep.subr.bf16.mxu0 0
  %216 = vmatpush1.bf16.msra.mxu0 0
  %217 = vmatprep.subr.bf16.mxu0 0
  %218 = vmatpush1.bf16.msra.mxu0 0
  %219 = vmatprep.subr.bf16.mxu0 0
  %220 = vmatpush1.bf16.msra.mxu0 0
  %221 = vmatprep.subr.bf16.mxu0 0
  %222 = vmatpush1.bf16.msra.mxu0 0
  %223 = vmatprep.subr.bf16.mxu0 0
  %224 = vmatpush1.bf16.msra.mxu0 0
  %225 = vmatprep.subr.bf16.mxu0 0
  %226 = vmatpush1.bf16.msra.mxu0 0
  %227 = vmatprep.subr.bf16.mxu0 0
  %228 = vmatpush1.bf16.msra.mxu0 0
  %229 = vmatprep.subr.bf16.mxu0 0
  %230 = vmatpush1.bf16.msra.mxu0 0
  %231 = vmatprep.subr.bf16.mxu0 0
  %232 = vmatpush1.bf16.msra.mxu0 0
  %233 = vmatprep.subr.bf16.mxu0 0
  %234 = vmatpush1.bf16.msra.mxu0 0
  %235 = vmatprep.subr.bf16.mxu0 0
  %236 = vmatpush1.bf16.msra.mxu0 0
  %237 = vmatprep.subr.bf16.mxu0 0
  %238 = vmatpush1.bf16.msra.mxu0 0
  %239 = vmatprep.subr.bf16.mxu0 0
  %240 = vmatpush1.bf16.msra.mxu0 0
  %241 = vmatprep.subr.bf16.mxu0 0
  %242 = vmatpush1.bf16.msra.mxu0 0
  %243 = vmatprep.mubr.bf16.mxu0 0
  %244 = vmatmul.mubr.bf16.gmra.mrb[0].mxu0 %v209
  %v245 = vpop.f32.mrb[0].mxu0
  %v246 = vadd.f32 0.0, %v245
  %v247 = vpop.f32.mrb[0].mxu0
  %v248 = vpop.f32.mrb[0].mxu0
  %v249 = vpop.f32.mrb[0].mxu0
  %250 = vdwg.mxu0
  %v252 = vrot.slane %v246, 6
  %v254 = vadd.f32 %v92, %v252
  %v255 = vxor.u32 %v254, 2147483648
  %v256 = vmul.f32 %v255, 1.442695
  %v257 = vpow.pop %v256
  %v258 = vadd.f32 %v257, 1.0
  %v259 = vrcp.pop %v258
  %v260 = vmul.f32 1.0, %v259
  %v261 = vtanh.pop %v254
  %v263 = vrot.slane %v184, 6
  %v265 = vmul.f32 %v260, %v263
  %267 = vrot.lane.b32.xlu0 %v261, 32
  %v268 = vpop.permute.xlu0 %267
  %v270 = vmul.f32 %v260, %v268
  %272 = vrot.lane.b32.xlu0 %v270, 32
  %v273 = vpop.permute.xlu0 %272
  %v275 = vadd.f32 %v265, %v273
  %v276 = vtanh.pop %v275
  %278 = vrot.lane.b32.xlu0 %v276, 32
  %v279 = vpop.permute.xlu0 %278
  %v281 = vmul.f32 %v260, %v279
  %vm282 = vcmp.gt.s32.totalorder %v110, 1
  %v283 = vsel %vm282, 1, 0
  %284 = vset.pattern.permute.xlu0 0
  %285 = vperm.xlu0 %284, %v283
  %v286 = vpop.permute.xlu0 %285
  %vm287 = vcmp.eq.s32.totalorder %v286, 1
  %v289 = vrot.slane %v281, 2
  %290 = vrot.lane.b32.xlu0 %v289, 64
  %v291 = vpop.permute.xlu0 %290
  %v293 = vsel %vm287, %v291, 0.0
  %294 = vst.msk [vmem:[%s5 + $0x2] sm:$0x3] %vm202, %v293
  %v295 = vpack.c.bf16 %v281, %v281
  %v297 = vrot.slane %v295, 1
  %298 = vrot.lane.b32.xlu0 %v297, 64
  %v299 = vpop.permute.xlu0 %298
  %v301 = vsel %vm50, %v299, 0
  %303 = vmatprep.subr.bf16.mxu0 0
  %304 = vmatpush1.bf16.msra.mxu0 %v119
  %305 = vmatprep.subr.bf16.mxu0 0
  %306 = vmatpush1.bf16.msra.mxu0 %v120
  %307 = vmatprep.subr.bf16.mxu0 0
  %308 = vmatpush1.bf16.msra.mxu0 0
  %309 = vmatprep.subr.bf16.mxu0 0
  %310 = vmatpush1.bf16.msra.mxu0 0
  %311 = vmatprep.subr.bf16.mxu0 0
  %312 = vmatpush1.bf16.msra.mxu0 0
  %313 = vmatprep.subr.bf16.mxu0 0
  %314 = vmatpush1.bf16.msra.mxu0 0
  %315 = vmatprep.subr.bf16.mxu0 0
  %316 = vmatpush1.bf16.msra.mxu0 0
  %317 = vmatprep.subr.bf16.mxu0 0
  %318 = vmatpush1.bf16.msra.mxu0 0
  %319 = vmatprep.subr.bf16.mxu0 0
  %320 = vmatpush1.bf16.msra.mxu0 0
  %321 = vmatprep.subr.bf16.mxu0 0
  %322 = vmatpush1.bf16.msra.mxu0 0
  %323 = vmatprep.subr.bf16.mxu0 0
  %324 = vmatpush1.bf16.msra.mxu0 0
  %325 = vmatprep.subr.bf16.mxu0 0
  %326 = vmatpush1.bf16.msra.mxu0 0
  %327 = vmatprep.subr.bf16.mxu0 0
  %328 = vmatpush1.bf16.msra.mxu0 0
  %329 = vmatprep.subr.bf16.mxu0 0
  %330 = vmatpush1.bf16.msra.mxu0 0
  %331 = vmatprep.subr.bf16.mxu0 0
  %332 = vmatpush1.bf16.msra.mxu0 0
  %333 = vmatprep.subr.bf16.mxu0 0
  %334 = vmatpush1.bf16.msra.mxu0 0
  %335 = vmatprep.mubr.bf16.mxu0 0
  %336 = vmatmul.mubr.bf16.gmra.mrb[0].mxu0 %v301
  %v337 = vpop.f32.mrb[0].mxu0
  %v338 = vadd.f32 0.0, %v337
  %v339 = vpop.f32.mrb[0].mxu0
  %v340 = vpop.f32.mrb[0].mxu0
  %v341 = vpop.f32.mrb[0].mxu0
  %342 = vdwg.mxu0
  %v344 = vrot.slane %v338, 4
  %v346 = vadd.f32 %v92, %v344
  %v347 = vxor.u32 %v346, 2147483648
  %v348 = vmul.f32 %v347, 1.442695
  %v349 = vpow.pop %v348
  %v350 = vadd.f32 %v349, 1.0
  %v351 = vrcp.pop %v350
  %v352 = vmul.f32 1.0, %v351
  %v353 = vtanh.pop %v346
  %v355 = vrot.slane %v275, 6
  %v357 = vmul.f32 %v352, %v355
  %359 = vrot.lane.b32.xlu0 %v353, 32
  %v360 = vpop.permute.xlu0 %359
  %v362 = vmul.f32 %v352, %v360
  %364 = vrot.lane.b32.xlu0 %v362, 32
  %v365 = vpop.permute.xlu0 %364
  %v367 = vadd.f32 %v357, %v365
  %v368 = vtanh.pop %v367
  %370 = vrot.lane.b32.xlu0 %v368, 32
  %v371 = vpop.permute.xlu0 %370
  %v373 = vmul.f32 %v352, %v371
  %vm374 = vcmp.gt.s32.totalorder %v110, 2
  %v375 = vsel %vm374, 1, 0
  %376 = vset.pattern.permute.xlu0 0
  %377 = vperm.xlu0 %376, %v375
  %v378 = vpop.permute.xlu0 %377
  %vm379 = vcmp.eq.s32.totalorder %v378, 1
  %v381 = vrot.slane %v373, 4
  %382 = vrot.lane.b32.xlu0 %v381, 64
  %v383 = vpop.permute.xlu0 %382
  %v385 = vsel %vm379, %v383, 0.0
  %386 = vst.msk [vmem:[%s5 + $0x4] sm:$0x3] %vm202, %v385
  %v387 = vpack.c.bf16 %v373, %v373
  %v389 = vrot.slane %v387, 2
  %390 = vrot.lane.b32.xlu0 %v389, 64
  %v391 = vpop.permute.xlu0 %390
  %v393 = vsel %vm50, %v391, 0
  %395 = vmatprep.subr.bf16.mxu0 0
  %396 = vmatpush1.bf16.msra.mxu0 %v119
  %397 = vmatprep.subr.bf16.mxu0 0
  %398 = vmatpush1.bf16.msra.mxu0 %v120
  %399 = vmatprep.subr.bf16.mxu0 0
  %400 = vmatpush1.bf16.msra.mxu0 0
  %401 = vmatprep.subr.bf16.mxu0 0
  %402 = vmatpush1.bf16.msra.mxu0 0
  %403 = vmatprep.subr.bf16.mxu0 0
  %404 = vmatpush1.bf16.msra.mxu0 0
  %405 = vmatprep.subr.bf16.mxu0 0
  %406 = vmatpush1.bf16.msra.mxu0 0
  %407 = vmatprep.subr.bf16.mxu0 0
  %408 = vmatpush1.bf16.msra.mxu0 0
  %409 = vmatprep.subr.bf16.mxu0 0
  %410 = vmatpush1.bf16.msra.mxu0 0
  %411 = vmatprep.subr.bf16.mxu0 0
  %412 = vmatpush1.bf16.msra.mxu0 0
  %413 = vmatprep.subr.bf16.mxu0 0
  %414 = vmatpush1.bf16.msra.mxu0 0
  %415 = vmatprep.subr.bf16.mxu0 0
  %416 = vmatpush1.bf16.msra.mxu0 0
  %417 = vmatprep.subr.bf16.mxu0 0
  %418 = vmatpush1.bf16.msra.mxu0 0
  %419 = vmatprep.subr.bf16.mxu0 0
  %420 = vmatpush1.bf16.msra.mxu0 0
  %421 = vmatprep.subr.bf16.mxu0 0
  %422 = vmatpush1.bf16.msra.mxu0 0
  %423 = vmatprep.subr.bf16.mxu0 0
  %424 = vmatpush1.bf16.msra.mxu0 0
  %425 = vmatprep.subr.bf16.mxu0 0
  %426 = vmatpush1.bf16.msra.mxu0 0
  %427 = vmatprep.mubr.bf16.mxu0 0
  %428 = vmatmul.mubr.bf16.gmra.mrb[0].mxu0 %v393
  %v429 = vpop.f32.mrb[0].mxu0
  %v430 = vadd.f32 0.0, %v429
  %v431 = vpop.f32.mrb[0].mxu0
  %v432 = vpop.f32.mrb[0].mxu0
  %v433 = vpop.f32.mrb[0].mxu0
  %434 = vdwg.mxu0
  %v436 = vrot.slane %v430, 2
  %v438 = vadd.f32 %v92, %v436
  %v439 = vxor.u32 %v438, 2147483648
  %v440 = vmul.f32 %v439, 1.442695
  %v441 = vpow.pop %v440
  %v442 = vadd.f32 %v441, 1.0
  %v443 = vrcp.pop %v442
  %v444 = vmul.f32 1.0, %v443
  %v445 = vtanh.pop %v438
  %v447 = vrot.slane %v367, 6
  %v449 = vmul.f32 %v444, %v447
  %451 = vrot.lane.b32.xlu0 %v445, 32
  %v452 = vpop.permute.xlu0 %451
  %v454 = vmul.f32 %v444, %v452
  %456 = vrot.lane.b32.xlu0 %v454, 32
  %v457 = vpop.permute.xlu0 %456
  %v459 = vadd.f32 %v449, %v457
  %v460 = vtanh.pop %v459
  %462 = vrot.lane.b32.xlu0 %v460, 32
  %v463 = vpop.permute.xlu0 %462
  %v465 = vmul.f32 %v444, %v463
  %vm466 = vcmp.gt.s32.totalorder %v110, 3
  %v467 = vsel %vm466, 1, 0
  %468 = vset.pattern.permute.xlu0 0
  %469 = vperm.xlu0 %468, %v467
  %v470 = vpop.permute.xlu0 %469
  %vm471 = vcmp.eq.s32.totalorder %v470, 1
  %v473 = vrot.slane %v465, 6
  %474 = vrot.lane.b32.xlu0 %v473, 64
  %v475 = vpop.permute.xlu0 %474
  %v477 = vsel %vm471, %v475, 0.0
  %478 = vst.msk [vmem:[%s5 + $0x6] sm:$0x3] %vm202, %v477
  %v479 = vpack.c.bf16 %v465, %v465
  %v481 = vrot.slane %v479, 3
  %482 = vrot.lane.b32.xlu0 %v481, 64
  %v483 = vpop.permute.xlu0 %482
  %v485 = vsel %vm50, %v483, 0
  %487 = vmatprep.subr.bf16.mxu0 0
  %488 = vmatpush1.bf16.msra.mxu0 %v119
  %489 = vmatprep.subr.bf16.mxu0 0
  %490 = vmatpush1.bf16.msra.mxu0 %v120
  %491 = vmatprep.subr.bf16.mxu0 0
  %492 = vmatpush1.bf16.msra.mxu0 0
  %493 = vmatprep.subr.bf16.mxu0 0
  %494 = vmatpush1.bf16.msra.mxu0 0
  %495 = vmatprep.subr.bf16.mxu0 0
  %496 = vmatpush1.bf16.msra.mxu0 0
  %497 = vmatprep.subr.bf16.mxu0 0
  %498 = vmatpush1.bf16.msra.mxu0 0
  %499 = vmatprep.subr.bf16.mxu0 0
  %500 = vmatpush1.bf16.msra.mxu0 0
  %501 = vmatprep.subr.bf16.mxu0 0
  %502 = vmatpush1.bf16.msra.mxu0 0
  %503 = vmatprep.subr.bf16.mxu0 0
  %504 = vmatpush1.bf16.msra.mxu0 0
  %505 = vmatprep.subr.bf16.mxu0 0
  %506 = vmatpush1.bf16.msra.mxu0 0
  %507 = vmatprep.subr.bf16.mxu0 0
  %508 = vmatpush1.bf16.msra.mxu0 0
  %509 = vmatprep.subr.bf16.mxu0 0
  %510 = vmatpush1.bf16.msra.mxu0 0
  %511 = vmatprep.subr.bf16.mxu0 0
  %512 = vmatpush1.bf16.msra.mxu0 0
  %513 = vmatprep.subr.bf16.mxu0 0
  %514 = vmatpush1.bf16.msra.mxu0 0
  %515 = vmatprep.subr.bf16.mxu0 0
  %516 = vmatpush1.bf16.msra.mxu0 0
  %517 = vmatprep.subr.bf16.mxu0 0
  %518 = vmatpush1.bf16.msra.mxu0 0
  %519 = vmatprep.mubr.bf16.mxu0 0
  %520 = vmatmul.mubr.bf16.gmra.mrb[0].mxu0 %v485
  %v521 = vpop.f32.mrb[0].mxu0
  %v522 = vadd.f32 0.0, %v521
  %v523 = vpop.f32.mrb[0].mxu0
  %v524 = vpop.f32.mrb[0].mxu0
  %v525 = vpop.f32.mrb[0].mxu0
  %526 = vdwg.mxu0
  %v527 = vadd.f32 %v95, %v522
  %v528 = vxor.u32 %v527, 2147483648
  %v529 = vmul.f32 %v528, 1.442695
  %v530 = vpow.pop %v529
  %v531 = vadd.f32 %v530, 1.0
  %v532 = vrcp.pop %v531
  %v533 = vmul.f32 1.0, %v532
  %v534 = vtanh.pop %v527
  %v536 = vrot.slane %v459, 6
  %v538 = vmul.f32 %v533, %v536
  %540 = vrot.lane.b32.xlu0 %v534, 32
  %v541 = vpop.permute.xlu0 %540
  %v543 = vmul.f32 %v533, %v541
  %545 = vrot.lane.b32.xlu0 %v543, 32
  %v546 = vpop.permute.xlu0 %545
  %v548 = vadd.f32 %v538, %v546
  %v549 = vtanh.pop %v548
  %551 = vrot.lane.b32.xlu0 %v549, 32
  %v552 = vpop.permute.xlu0 %551
  %v554 = vmul.f32 %v533, %v552
  %vm555 = vcmp.gt.s32.totalorder %v110, 4
  %v556 = vsel %vm555, 1, 0
  %557 = vset.pattern.permute.xlu0 0
  %558 = vperm.xlu0 %557, %v556
  %v559 = vpop.permute.xlu0 %558
  %vm560 = vcmp.eq.s32.totalorder %v559, 1
  %v561 = vsel %vm560, %v554, 0.0
  %563 = vrot.lane.b32.xlu0 %v561, 64
  %v564 = vpop.permute.xlu0 %563
  %566 = vst.msk [vmem:[%s5 + $0x8] sm:$0x3] %vm202, %v564
  %v567 = vpack.c.bf16 %v554, %v554
  %569 = vrot.lane.b32.xlu0 %v567, 64
  %v570 = vpop.permute.xlu0 %569
  %v572 = vsel %vm50, %v570, 0
  %574 = vmatprep.subr.bf16.mxu0 0
  %575 = vmatpush1.bf16.msra.mxu0 %v119
  %576 = vmatprep.subr.bf16.mxu0 0
  %577 = vmatpush1.bf16.msra.mxu0 %v120
  %578 = vmatprep.subr.bf16.mxu0 0
  %579 = vmatpush1.bf16.msra.mxu0 0
  %580 = vmatprep.subr.bf16.mxu0 0
  %581 = vmatpush1.bf16.msra.mxu0 0
  %582 = vmatprep.subr.bf16.mxu0 0
  %583 = vmatpush1.bf16.msra.mxu0 0
  %584 = vmatprep.subr.bf16.mxu0 0
  %585 = vmatpush1.bf16.msra.mxu0 0
  %586 = vmatprep.subr.bf16.mxu0 0
  %587 = vmatpush1.bf16.msra.mxu0 0
  %588 = vmatprep.subr.bf16.mxu0 0
  %589 = vmatpush1.bf16.msra.mxu0 0
  %590 = vmatprep.subr.bf16.mxu0 0
  %591 = vmatpush1.bf16.msra.mxu0 0
  %592 = vmatprep.subr.bf16.mxu0 0
  %593 = vmatpush1.bf16.msra.mxu0 0
  %594 = vmatprep.subr.bf16.mxu0 0
  %595 = vmatpush1.bf16.msra.mxu0 0
  %596 = vmatprep.subr.bf16.mxu0 0
  %597 = vmatpush1.bf16.msra.mxu0 0
  %598 = vmatprep.subr.bf16.mxu0 0
  %599 = vmatpush1.bf16.msra.mxu0 0
  %600 = vmatprep.subr.bf16.mxu0 0
  %601 = vmatpush1.bf16.msra.mxu0 0
  %602 = vmatprep.subr.bf16.mxu0 0
  %603 = vmatpush1.bf16.msra.mxu0 0
  %604 = vmatprep.subr.bf16.mxu0 0
  %605 = vmatpush1.bf16.msra.mxu0 0
  %606 = vmatprep.mubr.bf16.mxu0 0
  %607 = vmatmul.mubr.bf16.gmra.mrb[0].mxu0 %v572
  %v608 = vpop.f32.mrb[0].mxu0
  %v609 = vadd.f32 0.0, %v608
  %v610 = vpop.f32.mrb[0].mxu0
  %v611 = vpop.f32.mrb[0].mxu0
  %v612 = vpop.f32.mrb[0].mxu0
  %613 = vdwg.mxu0
  %v615 = vrot.slane %v609, 6
  %v617 = vadd.f32 %v95, %v615
  %v618 = vxor.u32 %v617, 2147483648
  %v619 = vmul.f32 %v618, 1.442695
  %v620 = vpow.pop %v619
  %v621 = vadd.f32 %v620, 1.0
  %v622 = vrcp.pop %v621
  %v623 = vmul.f32 1.0, %v622
  %v624 = vtanh.pop %v617
  %v626 = vrot.slane %v548, 6
  %v628 = vmul.f32 %v623, %v626
  %630 = vrot.lane.b32.xlu0 %v624, 32
  %v631 = vpop.permute.xlu0 %630
  %v633 = vmul.f32 %v623, %v631
  %635 = vrot.lane.b32.xlu0 %v633, 32
  %v636 = vpop.permute.xlu0 %635
  %v638 = vadd.f32 %v628, %v636
  %v639 = vtanh.pop %v638
  %641 = vrot.lane.b32.xlu0 %v639, 32
  %v642 = vpop.permute.xlu0 %641
  %v644 = vmul.f32 %v623, %v642
  %vm645 = vcmp.gt.s32.totalorder %v110, 5
  %v646 = vsel %vm645, 1, 0
  %647 = vset.pattern.permute.xlu0 0
  %648 = vperm.xlu0 %647, %v646
  %v649 = vpop.permute.xlu0 %648
  %vm650 = vcmp.eq.s32.totalorder %v649, 1
  %v652 = vrot.slane %v644, 2
  %653 = vrot.lane.b32.xlu0 %v652, 64
  %v654 = vpop.permute.xlu0 %653
  %v656 = vsel %vm650, %v654, 0.0
  %657 = vst.msk [vmem:[%s5 + $0xa] sm:$0x3] %vm202, %v656
  %v658 = vpack.c.bf16 %v644, %v644
  %v660 = vrot.slane %v658, 1
  %661 = vrot.lane.b32.xlu0 %v660, 64
  %v662 = vpop.permute.xlu0 %661
  %v664 = vsel %vm50, %v662, 0
  %666 = vmatprep.subr.bf16.mxu0 0
  %667 = vmatpush1.bf16.msra.mxu0 %v119
  %668 = vmatprep.subr.bf16.mxu0 0
  %669 = vmatpush1.bf16.msra.mxu0 %v120
  %670 = vmatprep.subr.bf16.mxu0 0
  %671 = vmatpush1.bf16.msra.mxu0 0
  %672 = vmatprep.subr.bf16.mxu0 0
  %673 = vmatpush1.bf16.msra.mxu0 0
  %674 = vmatprep.subr.bf16.mxu0 0
  %675 = vmatpush1.bf16.msra.mxu0 0
  %676 = vmatprep.subr.bf16.mxu0 0
  %677 = vmatpush1.bf16.msra.mxu0 0
  %678 = vmatprep.subr.bf16.mxu0 0
  %679 = vmatpush1.bf16.msra.mxu0 0
  %680 = vmatprep.subr.bf16.mxu0 0
  %681 = vmatpush1.bf16.msra.mxu0 0
  %682 = vmatprep.subr.bf16.mxu0 0
  %683 = vmatpush1.bf16.msra.mxu0 0
  %684 = vmatprep.subr.bf16.mxu0 0
  %685 = vmatpush1.bf16.msra.mxu0 0
  %686 = vmatprep.subr.bf16.mxu0 0
  %687 = vmatpush1.bf16.msra.mxu0 0
  %688 = vmatprep.subr.bf16.mxu0 0
  %689 = vmatpush1.bf16.msra.mxu0 0
  %690 = vmatprep.subr.bf16.mxu0 0
  %691 = vmatpush1.bf16.msra.mxu0 0
  %692 = vmatprep.subr.bf16.mxu0 0
  %693 = vmatpush1.bf16.msra.mxu0 0
  %694 = vmatprep.subr.bf16.mxu0 0
  %695 = vmatpush1.bf16.msra.mxu0 0
  %696 = vmatprep.subr.bf16.mxu0 0
  %697 = vmatpush1.bf16.msra.mxu0 0
  %698 = vmatprep.mubr.bf16.mxu0 0
  %699 = vmatmul.mubr.bf16.gmra.mrb[0].mxu0 %v664
  %v700 = vpop.f32.mrb[0].mxu0
  %v701 = vadd.f32 0.0, %v700
  %v702 = vpop.f32.mrb[0].mxu0
  %v703 = vpop.f32.mrb[0].mxu0
  %v704 = vpop.f32.mrb[0].mxu0
  %705 = vdwg.mxu0
  %v707 = vrot.slane %v701, 4
  %v709 = vadd.f32 %v95, %v707
  %v710 = vxor.u32 %v709, 2147483648
  %v711 = vmul.f32 %v710, 1.442695
  %v712 = vpow.pop %v711
  %v713 = vadd.f32 %v712, 1.0
  %v714 = vrcp.pop %v713
  %v715 = vmul.f32 1.0, %v714
  %v716 = vtanh.pop %v709
  %v718 = vrot.slane %v638, 6
  %v720 = vmul.f32 %v715, %v718
  %722 = vrot.lane.b32.xlu0 %v716, 32
  %v723 = vpop.permute.xlu0 %722
  %v725 = vmul.f32 %v715, %v723
  %727 = vrot.lane.b32.xlu0 %v725, 32
  %v728 = vpop.permute.xlu0 %727
  %v730 = vadd.f32 %v720, %v728
  %v731 = vtanh.pop %v730
  %733 = vrot.lane.b32.xlu0 %v731, 32
  %v734 = vpop.permute.xlu0 %733
  %v736 = vmul.f32 %v715, %v734
  %vm737 = vcmp.gt.s32.totalorder %v110, 6
  %v738 = vsel %vm737, 1, 0
  %739 = vset.pattern.permute.xlu0 0
  %740 = vperm.xlu0 %739, %v738
  %v741 = vpop.permute.xlu0 %740
  %vm742 = vcmp.eq.s32.totalorder %v741, 1
  %v744 = vrot.slane %v736, 4
  %745 = vrot.lane.b32.xlu0 %v744, 64
  %v746 = vpop.permute.xlu0 %745
  %v748 = vsel %vm742, %v746, 0.0
  %749 = vst.msk [vmem:[%s5 + $0xc] sm:$0x3] %vm202, %v748
  %v750 = vpack.c.bf16 %v736, %v736
  %v752 = vrot.slane %v750, 2
  %753 = vrot.lane.b32.xlu0 %v752, 64
  %v754 = vpop.permute.xlu0 %753
  %v756 = vsel %vm50, %v754, 0
  %758 = vmatprep.subr.bf16.mxu0 0
  %759 = vmatpush1.bf16.msra.mxu0 %v119
  %760 = vmatprep.subr.bf16.mxu0 0
  %761 = vmatpush1.bf16.msra.mxu0 %v120
  %762 = vmatprep.subr.bf16.mxu0 0
  %763 = vmatpush1.bf16.msra.mxu0 0
  %764 = vmatprep.subr.bf16.mxu0 0
  %765 = vmatpush1.bf16.msra.mxu0 0
  %766 = vmatprep.subr.bf16.mxu0 0
  %767 = vmatpush1.bf16.msra.mxu0 0
  %768 = vmatprep.subr.bf16.mxu0 0
  %769 = vmatpush1.bf16.msra.mxu0 0
  %770 = vmatprep.subr.bf16.mxu0 0
  %771 = vmatpush1.bf16.msra.mxu0 0
  %772 = vmatprep.subr.bf16.mxu0 0
  %773 = vmatpush1.bf16.msra.mxu0 0
  %774 = vmatprep.subr.bf16.mxu0 0
  %775 = vmatpush1.bf16.msra.mxu0 0
  %776 = vmatprep.subr.bf16.mxu0 0
  %777 = vmatpush1.bf16.msra.mxu0 0
  %778 = vmatprep.subr.bf16.mxu0 0
  %779 = vmatpush1.bf16.msra.mxu0 0
  %780 = vmatprep.subr.bf16.mxu0 0
  %781 = vmatpush1.bf16.msra.mxu0 0
  %782 = vmatprep.subr.bf16.mxu0 0
  %783 = vmatpush1.bf16.msra.mxu0 0
  %784 = vmatprep.subr.bf16.mxu0 0
  %785 = vmatpush1.bf16.msra.mxu0 0
  %786 = vmatprep.subr.bf16.mxu0 0
  %787 = vmatpush1.bf16.msra.mxu0 0
  %788 = vmatprep.subr.bf16.mxu0 0
  %789 = vmatpush1.bf16.msra.mxu0 0
  %790 = vmatprep.mubr.bf16.mxu0 0
  %791 = vmatmul.mubr.bf16.gmra.mrb[0].mxu0 %v756
  %v792 = vpop.f32.mrb[0].mxu0
  %v793 = vadd.f32 0.0, %v792
  %v794 = vpop.f32.mrb[0].mxu0
  %v795 = vpop.f32.mrb[0].mxu0
  %v796 = vpop.f32.mrb[0].mxu0
  %797 = vdwg.mxu0
  %v799 = vrot.slane %v793, 2
  %v801 = vadd.f32 %v95, %v799
  %v802 = vxor.u32 %v801, 2147483648
  %v803 = vmul.f32 %v802, 1.442695
  %v804 = vpow.pop %v803
  %v805 = vadd.f32 %v804, 1.0
  %v806 = vrcp.pop %v805
  %v807 = vmul.f32 1.0, %v806
  %v808 = vtanh.pop %v801
  %v810 = vrot.slane %v730, 6
  %v812 = vmul.f32 %v807, %v810
  %814 = vrot.lane.b32.xlu0 %v808, 32
  %v815 = vpop.permute.xlu0 %814
  %v817 = vmul.f32 %v807, %v815
  %819 = vrot.lane.b32.xlu0 %v817, 32
  %v820 = vpop.permute.xlu0 %819
  %v822 = vadd.f32 %v812, %v820
  %v823 = vtanh.pop %v822
  %825 = vrot.lane.b32.xlu0 %v823, 32
  %v826 = vpop.permute.xlu0 %825
  %v828 = vmul.f32 %v807, %v826
  %vm829 = vcmp.gt.s32.totalorder %v110, 7
  %v830 = vsel %vm829, 1, 0
  %831 = vset.pattern.permute.xlu0 0
  %832 = vperm.xlu0 %831, %v830
  %v833 = vpop.permute.xlu0 %832
  %vm834 = vcmp.eq.s32.totalorder %v833, 1
  %v836 = vrot.slane %v828, 6
  %837 = vrot.lane.b32.xlu0 %v836, 64
  %v838 = vpop.permute.xlu0 %837
  %v840 = vsel %vm834, %v838, 0.0
  %841 = vst.msk [vmem:[%s5 + $0xe] sm:$0x3] %vm202, %v840
  %v842 = vpack.c.bf16 %v828, %v828
  %v844 = vrot.slane %v842, 3
  %845 = vrot.lane.b32.xlu0 %v844, 64
  %v846 = vpop.permute.xlu0 %845
  %v848 = vsel %vm50, %v846, 0
  %850 = vmatprep.subr.bf16.mxu0 0
  %851 = vmatpush1.bf16.msra.mxu0 %v119
  %852 = vmatprep.subr.bf16.mxu0 0
  %853 = vmatpush1.bf16.msra.mxu0 %v120
  %854 = vmatprep.subr.bf16.mxu0 0
  %855 = vmatpush1.bf16.msra.mxu0 0
  %856 = vmatprep.subr.bf16.mxu0 0
  %857 = vmatpush1.bf16.msra.mxu0 0
  %858 = vmatprep.subr.bf16.mxu0 0
  %859 = vmatpush1.bf16.msra.mxu0 0
  %860 = vmatprep.subr.bf16.mxu0 0
  %861 = vmatpush1.bf16.msra.mxu0 0
  %862 = vmatprep.subr.bf16.mxu0 0
  %863 = vmatpush1.bf16.msra.mxu0 0
  %864 = vmatprep.subr.bf16.mxu0 0
  %865 = vmatpush1.bf16.msra.mxu0 0
  %866 = vmatprep.subr.bf16.mxu0 0
  %867 = vmatpush1.bf16.msra.mxu0 0
  %868 = vmatprep.subr.bf16.mxu0 0
  %869 = vmatpush1.bf16.msra.mxu0 0
  %870 = vmatprep.subr.bf16.mxu0 0
  %871 = vmatpush1.bf16.msra.mxu0 0
  %872 = vmatprep.subr.bf16.mxu0 0
  %873 = vmatpush1.bf16.msra.mxu0 0
  %874 = vmatprep.subr.bf16.mxu0 0
  %875 = vmatpush1.bf16.msra.mxu0 0
  %876 = vmatprep.subr.bf16.mxu0 0
  %877 = vmatpush1.bf16.msra.mxu0 0
  %878 = vmatprep.subr.bf16.mxu0 0
  %879 = vmatpush1.bf16.msra.mxu0 0
  %880 = vmatprep.subr.bf16.mxu0 0
  %881 = vmatpush1.bf16.msra.mxu0 0
  %882 = vmatprep.mubr.bf16.mxu0 0
  %883 = vmatmul.mubr.bf16.gmra.mrb[0].mxu0 %v848
  %v884 = vpop.f32.mrb[0].mxu0
  %v885 = vadd.f32 0.0, %v884
  %v886 = vpop.f32.mrb[0].mxu0
  %v887 = vpop.f32.mrb[0].mxu0
  %v888 = vpop.f32.mrb[0].mxu0
  %889 = vdwg.mxu0
  %v890 = vadd.f32 %v100, %v885
  %v891 = vxor.u32 %v890, 2147483648
  %v892 = vmul.f32 %v891, 1.442695
  %v893 = vpow.pop %v892
  %v894 = vadd.f32 %v893, 1.0
  %v895 = vrcp.pop %v894
  %v896 = vmul.f32 1.0, %v895
  %v897 = vtanh.pop %v890
  %v899 = vrot.slane %v822, 6
  %v901 = vmul.f32 %v896, %v899
  %903 = vrot.lane.b32.xlu0 %v897, 32
  %v904 = vpop.permute.xlu0 %903
  %v906 = vmul.f32 %v896, %v904
  %908 = vrot.lane.b32.xlu0 %v906, 32
  %v909 = vpop.permute.xlu0 %908
  %v911 = vadd.f32 %v901, %v909
  %v912 = vtanh.pop %v911
  %914 = vrot.lane.b32.xlu0 %v912, 32
  %v915 = vpop.permute.xlu0 %914
  %v917 = vmul.f32 %v896, %v915
  %vm918 = vcmp.gt.s32.totalorder %v110, 8
  %v919 = vsel %vm918, 1, 0
  %920 = vset.pattern.permute.xlu0 0
  %921 = vperm.xlu0 %920, %v919
  %v922 = vpop.permute.xlu0 %921
  %vm923 = vcmp.eq.s32.totalorder %v922, 1
  %v924 = vsel %vm923, %v917, 0.0
  %926 = vrot.lane.b32.xlu0 %v924, 64
  %v927 = vpop.permute.xlu0 %926
  %929 = vst.msk [vmem:[%s5 + $0x10] sm:$0x3] %vm202, %v927
  %v930 = vpack.c.bf16 %v917, %v917
  %932 = vrot.lane.b32.xlu0 %v930, 64
  %v933 = vpop.permute.xlu0 %932
  %v935 = vsel %vm50, %v933, 0
  %937 = vmatprep.subr.bf16.mxu0 0
  %938 = vmatpush1.bf16.msra.mxu0 %v119
  %939 = vmatprep.subr.bf16.mxu0 0
  %940 = vmatpush1.bf16.msra.mxu0 %v120
  %941 = vmatprep.subr.bf16.mxu0 0
  %942 = vmatpush1.bf16.msra.mxu0 0
  %943 = vmatprep.subr.bf16.mxu0 0
  %944 = vmatpush1.bf16.msra.mxu0 0
  %945 = vmatprep.subr.bf16.mxu0 0
  %946 = vmatpush1.bf16.msra.mxu0 0
  %947 = vmatprep.subr.bf16.mxu0 0
  %948 = vmatpush1.bf16.msra.mxu0 0
  %949 = vmatprep.subr.bf16.mxu0 0
  %950 = vmatpush1.bf16.msra.mxu0 0
  %951 = vmatprep.subr.bf16.mxu0 0
  %952 = vmatpush1.bf16.msra.mxu0 0
  %953 = vmatprep.subr.bf16.mxu0 0
  %954 = vmatpush1.bf16.msra.mxu0 0
  %955 = vmatprep.subr.bf16.mxu0 0
  %956 = vmatpush1.bf16.msra.mxu0 0
  %957 = vmatprep.subr.bf16.mxu0 0
  %958 = vmatpush1.bf16.msra.mxu0 0
  %959 = vmatprep.subr.bf16.mxu0 0
  %960 = vmatpush1.bf16.msra.mxu0 0
  %961 = vmatprep.subr.bf16.mxu0 0
  %962 = vmatpush1.bf16.msra.mxu0 0
  %963 = vmatprep.subr.bf16.mxu0 0
  %964 = vmatpush1.bf16.msra.mxu0 0
  %965 = vmatprep.subr.bf16.mxu0 0
  %966 = vmatpush1.bf16.msra.mxu0 0
  %967 = vmatprep.subr.bf16.mxu0 0
  %968 = vmatpush1.bf16.msra.mxu0 0
  %969 = vmatprep.mubr.bf16.mxu0 0
  %970 = vmatmul.mubr.bf16.gmra.mrb[0].mxu0 %v935
  %v971 = vpop.f32.mrb[0].mxu0
  %v972 = vadd.f32 0.0, %v971
  %v973 = vpop.f32.mrb[0].mxu0
  %v974 = vpop.f32.mrb[0].mxu0
  %v975 = vpop.f32.mrb[0].mxu0
  %976 = vdwg.mxu0
  %v978 = vrot.slane %v972, 6
  %v980 = vadd.f32 %v100, %v978
  %v981 = vxor.u32 %v980, 2147483648
  %v982 = vmul.f32 %v981, 1.442695
  %v983 = vpow.pop %v982
  %v984 = vadd.f32 %v983, 1.0
  %v985 = vrcp.pop %v984
  %v986 = vmul.f32 1.0, %v985
  %v987 = vtanh.pop %v980
  %v989 = vrot.slane %v911, 6
  %v991 = vmul.f32 %v986, %v989
  %993 = vrot.lane.b32.xlu0 %v987, 32
  %v994 = vpop.permute.xlu0 %993
  %v996 = vmul.f32 %v986, %v994
  %998 = vrot.lane.b32.xlu0 %v996, 32
  %v999 = vpop.permute.xlu0 %998
  %v1001 = vadd.f32 %v991, %v999
  %v1002 = vtanh.pop %v1001
  %1004 = vrot.lane.b32.xlu0 %v1002, 32
  %v1005 = vpop.permute.xlu0 %1004
  %v1007 = vmul.f32 %v986, %v1005
  %vm1008 = vcmp.gt.s32.totalorder %v110, 9
  %v1009 = vsel %vm1008, 1, 0
  %1010 = vset.pattern.permute.xlu0 0
  %1011 = vperm.xlu0 %1010, %v1009
  %v1012 = vpop.permute.xlu0 %1011
  %vm1013 = vcmp.eq.s32.totalorder %v1012, 1
  %v1015 = vrot.slane %v1007, 2
  %1016 = vrot.lane.b32.xlu0 %v1015, 64
  %v1017 = vpop.permute.xlu0 %1016
  %v1019 = vsel %vm1013, %v1017, 0.0
  %1020 = vst.msk [vmem:[%s5 + $0x12] sm:$0x3] %vm202, %v1019
  %v1021 = vpack.c.bf16 %v1007, %v1007
  %v1023 = vrot.slane %v1021, 1
  %1024 = vrot.lane.b32.xlu0 %v1023, 64
  %v1025 = vpop.permute.xlu0 %1024
  %v1027 = vsel %vm50, %v1025, 0
  %1029 = vmatprep.subr.bf16.mxu0 0
  %1030 = vmatpush1.bf16.msra.mxu0 %v119
  %1031 = vmatprep.subr.bf16.mxu0 0
  %1032 = vmatpush1.bf16.msra.mxu0 %v120
  %1033 = vmatprep.subr.bf16.mxu0 0
  %1034 = vmatpush1.bf16.msra.mxu0 0
  %1035 = vmatprep.subr.bf16.mxu0 0
  %1036 = vmatpush1.bf16.msra.mxu0 0
  %1037 = vmatprep.subr.bf16.mxu0 0
  %1038 = vmatpush1.bf16.msra.mxu0 0
  %1039 = vmatprep.subr.bf16.mxu0 0
  %1040 = vmatpush1.bf16.msra.mxu0 0
  %1041 = vmatprep.subr.bf16.mxu0 0
  %1042 = vmatpush1.bf16.msra.mxu0 0
  %1043 = vmatprep.subr.bf16.mxu0 0
  %1044 = vmatpush1.bf16.msra.mxu0 0
  %1045 = vmatprep.subr.bf16.mxu0 0
  %1046 = vmatpush1.bf16.msra.mxu0 0
  %1047 = vmatprep.subr.bf16.mxu0 0
  %1048 = vmatpush1.bf16.msra.mxu0 0
  %1049 = vmatprep.subr.bf16.mxu0 0
  %1050 = vmatpush1.bf16.msra.mxu0 0
  %1051 = vmatprep.subr.bf16.mxu0 0
  %1052 = vmatpush1.bf16.msra.mxu0 0
  %1053 = vmatprep.subr.bf16.mxu0 0
  %1054 = vmatpush1.bf16.msra.mxu0 0
  %1055 = vmatprep.subr.bf16.mxu0 0
  %1056 = vmatpush1.bf16.msra.mxu0 0
  %1057 = vmatprep.subr.bf16.mxu0 0
  %1058 = vmatpush1.bf16.msra.mxu0 0
  %1059 = vmatprep.subr.bf16.mxu0 0
  %1060 = vmatpush1.bf16.msra.mxu0 0
  %1061 = vmatprep.mubr.bf16.mxu0 0
  %1062 = vmatmul.mubr.bf16.gmra.mrb[0].mxu0 %v1027
  %v1063 = vpop.f32.mrb[0].mxu0
  %v1064 = vadd.f32 0.0, %v1063
  %v1065 = vpop.f32.mrb[0].mxu0
  %v1066 = vpop.f32.mrb[0].mxu0
  %v1067 = vpop.f32.mrb[0].mxu0
  %1068 = vdwg.mxu0
  %v1070 = vrot.slane %v1064, 4
  %v1072 = vadd.f32 %v100, %v1070
  %v1073 = vxor.u32 %v1072, 2147483648
  %v1074 = vmul.f32 %v1073, 1.442695
  %v1075 = vpow.pop %v1074
  %v1076 = vadd.f32 %v1075, 1.0
  %v1077 = vrcp.pop %v1076
  %v1078 = vmul.f32 1.0, %v1077
  %v1079 = vtanh.pop %v1072
  %v1081 = vrot.slane %v1001, 6
  %v1083 = vmul.f32 %v1078, %v1081
  %1085 = vrot.lane.b32.xlu0 %v1079, 32
  %v1086 = vpop.permute.xlu0 %1085
  %v1088 = vmul.f32 %v1078, %v1086
  %1090 = vrot.lane.b32.xlu0 %v1088, 32
  %v1091 = vpop.permute.xlu0 %1090
  %v1093 = vadd.f32 %v1083, %v1091
  %v1094 = vtanh.pop %v1093
  %1096 = vrot.lane.b32.xlu0 %v1094, 32
  %v1097 = vpop.permute.xlu0 %1096
  %v1099 = vmul.f32 %v1078, %v1097
  %vm1100 = vcmp.gt.s32.totalorder %v110, 10
  %v1101 = vsel %vm1100, 1, 0
  %1102 = vset.pattern.permute.xlu0 0
  %1103 = vperm.xlu0 %1102, %v1101
  %v1104 = vpop.permute.xlu0 %1103
  %vm1105 = vcmp.eq.s32.totalorder %v1104, 1
  %v1107 = vrot.slane %v1099, 4
  %1108 = vrot.lane.b32.xlu0 %v1107, 64
  %v1109 = vpop.permute.xlu0 %1108
  %v1111 = vsel %vm1105, %v1109, 0.0
  %1112 = vst.msk [vmem:[%s5 + $0x14] sm:$0x3] %vm202, %v1111
  %v1113 = vpack.c.bf16 %v1099, %v1099
  %v1115 = vrot.slane %v1113, 2
  %1116 = vrot.lane.b32.xlu0 %v1115, 64
  %v1117 = vpop.permute.xlu0 %1116
  %v1119 = vsel %vm50, %v1117, 0
  %1121 = vmatprep.subr.bf16.mxu0 0
  %1122 = vmatpush1.bf16.msra.mxu0 %v119
  %1123 = vmatprep.subr.bf16.mxu0 0
  %1124 = vmatpush1.bf16.msra.mxu0 %v120
  %1125 = vmatprep.subr.bf16.mxu0 0
  %1126 = vmatpush1.bf16.msra.mxu0 0
  %1127 = vmatprep.subr.bf16.mxu0 0
  %1128 = vmatpush1.bf16.msra.mxu0 0
  %1129 = vmatprep.subr.bf16.mxu0 0
  %1130 = vmatpush1.bf16.msra.mxu0 0
  %1131 = vmatprep.subr.bf16.mxu0 0
  %1132 = vmatpush1.bf16.msra.mxu0 0
  %1133 = vmatprep.subr.bf16.mxu0 0
  %1134 = vmatpush1.bf16.msra.mxu0 0
  %1135 = vmatprep.subr.bf16.mxu0 0
  %1136 = vmatpush1.bf16.msra.mxu0 0
  %1137 = vmatprep.subr.bf16.mxu0 0
  %1138 = vmatpush1.bf16.msra.mxu0 0
  %1139 = vmatprep.subr.bf16.mxu0 0
  %1140 = vmatpush1.bf16.msra.mxu0 0
  %1141 = vmatprep.subr.bf16.mxu0 0
  %1142 = vmatpush1.bf16.msra.mxu0 0
  %1143 = vmatprep.subr.bf16.mxu0 0
  %1144 = vmatpush1.bf16.msra.mxu0 0
  %1145 = vmatprep.subr.bf16.mxu0 0
  %1146 = vmatpush1.bf16.msra.mxu0 0
  %1147 = vmatprep.subr.bf16.mxu0 0
  %1148 = vmatpush1.bf16.msra.mxu0 0
  %1149 = vmatprep.subr.bf16.mxu0 0
  %1150 = vmatpush1.bf16.msra.mxu0 0
  %1151 = vmatprep.subr.bf16.mxu0 0
  %1152 = vmatpush1.bf16.msra.mxu0 0
  %1153 = vmatprep.mubr.bf16.mxu0 0
  %1154 = vmatmul.mubr.bf16.gmra.mrb[0].mxu0 %v1119
  %v1155 = vpop.f32.mrb[0].mxu0
  %v1156 = vadd.f32 0.0, %v1155
  %v1157 = vpop.f32.mrb[0].mxu0
  %v1158 = vpop.f32.mrb[0].mxu0
  %v1159 = vpop.f32.mrb[0].mxu0
  %1160 = vdwg.mxu0
  %v1162 = vrot.slane %v1156, 2
  %v1164 = vadd.f32 %v100, %v1162
  %v1165 = vxor.u32 %v1164, 2147483648
  %v1166 = vmul.f32 %v1165, 1.442695
  %v1167 = vpow.pop %v1166
  %v1168 = vadd.f32 %v1167, 1.0
  %v1169 = vrcp.pop %v1168
  %v1170 = vmul.f32 1.0, %v1169
  %v1171 = vtanh.pop %v1164
  %v1173 = vrot.slane %v1093, 6
  %v1175 = vmul.f32 %v1170, %v1173
  %1177 = vrot.lane.b32.xlu0 %v1171, 32
  %v1178 = vpop.permute.xlu0 %1177
  %v1180 = vmul.f32 %v1170, %v1178
  %1182 = vrot.lane.b32.xlu0 %v1180, 32
  %v1183 = vpop.permute.xlu0 %1182
  %v1185 = vadd.f32 %v1175, %v1183
  %v1186 = vtanh.pop %v1185
  %1188 = vrot.lane.b32.xlu0 %v1186, 32
  %v1189 = vpop.permute.xlu0 %1188
  %v1191 = vmul.f32 %v1170, %v1189
  %vm1192 = vcmp.gt.s32.totalorder %v110, 11
  %v1193 = vsel %vm1192, 1, 0
  %1194 = vset.pattern.permute.xlu0 0
  %1195 = vperm.xlu0 %1194, %v1193
  %v1196 = vpop.permute.xlu0 %1195
  %vm1197 = vcmp.eq.s32.totalorder %v1196, 1
  %v1199 = vrot.slane %v1191, 6
  %1200 = vrot.lane.b32.xlu0 %v1199, 64
  %v1201 = vpop.permute.xlu0 %1200
  %v1203 = vsel %vm1197, %v1201, 0.0
  %1204 = vst.msk [vmem:[%s5 + $0x16] sm:$0x3] %vm202, %v1203
  %v1205 = vpack.c.bf16 %v1191, %v1191
  %v1207 = vrot.slane %v1205, 3
  %1208 = vrot.lane.b32.xlu0 %v1207, 64
  %v1209 = vpop.permute.xlu0 %1208
  %v1211 = vsel %vm50, %v1209, 0
  %1213 = vmatprep.subr.bf16.mxu0 0
  %1214 = vmatpush1.bf16.msra.mxu0 %v119
  %1215 = vmatprep.subr.bf16.mxu0 0
  %1216 = vmatpush1.bf16.msra.mxu0 %v120
  %1217 = vmatprep.subr.bf16.mxu0 0
  %1218 = vmatpush1.bf16.msra.mxu0 0
  %1219 = vmatprep.subr.bf16.mxu0 0
  %1220 = vmatpush1.bf16.msra.mxu0 0
  %1221 = vmatprep.subr.bf16.mxu0 0
  %1222 = vmatpush1.bf16.msra.mxu0 0
  %1223 = vmatprep.subr.bf16.mxu0 0
  %1224 = vmatpush1.bf16.msra.mxu0 0
  %1225 = vmatprep.subr.bf16.mxu0 0
  %1226 = vmatpush1.bf16.msra.mxu0 0
  %1227 = vmatprep.subr.bf16.mxu0 0
  %1228 = vmatpush1.bf16.msra.mxu0 0
  %1229 = vmatprep.subr.bf16.mxu0 0
  %1230 = vmatpush1.bf16.msra.mxu0 0
  %1231 = vmatprep.subr.bf16.mxu0 0
  %1232 = vmatpush1.bf16.msra.mxu0 0
  %1233 = vmatprep.subr.bf16.mxu0 0
  %1234 = vmatpush1.bf16.msra.mxu0 0
  %1235 = vmatprep.subr.bf16.mxu0 0
  %1236 = vmatpush1.bf16.msra.mxu0 0
  %1237 = vmatprep.subr.bf16.mxu0 0
  %1238 = vmatpush1.bf16.msra.mxu0 0
  %1239 = vmatprep.subr.bf16.mxu0 0
  %1240 = vmatpush1.bf16.msra.mxu0 0
  %1241 = vmatprep.subr.bf16.mxu0 0
  %1242 = vmatpush1.bf16.msra.mxu0 0
  %1243 = vmatprep.subr.bf16.mxu0 0
  %1244 = vmatpush1.bf16.msra.mxu0 0
  %1245 = vmatprep.mubr.bf16.mxu0 0
  %1246 = vmatmul.mubr.bf16.gmra.mrb[0].mxu0 %v1211
  %v1247 = vpop.f32.mrb[0].mxu0
  %v1248 = vadd.f32 0.0, %v1247
  %v1249 = vpop.f32.mrb[0].mxu0
  %v1250 = vpop.f32.mrb[0].mxu0
  %v1251 = vpop.f32.mrb[0].mxu0
  %1252 = vdwg.mxu0
  %v1253 = vadd.f32 %v103, %v1248
  %v1254 = vxor.u32 %v1253, 2147483648
  %v1255 = vmul.f32 %v1254, 1.442695
  %v1256 = vpow.pop %v1255
  %v1257 = vadd.f32 %v1256, 1.0
  %v1258 = vrcp.pop %v1257
  %v1259 = vmul.f32 1.0, %v1258
  %v1260 = vtanh.pop %v1253
  %v1262 = vrot.slane %v1185, 6
  %v1264 = vmul.f32 %v1259, %v1262
  %1266 = vrot.lane.b32.xlu0 %v1260, 32
  %v1267 = vpop.permute.xlu0 %1266
  %v1269 = vmul.f32 %v1259, %v1267
  %1271 = vrot.lane.b32.xlu0 %v1269, 32
  %v1272 = vpop.permute.xlu0 %1271
  %v1274 = vadd.f32 %v1264, %v1272
  %v1275 = vtanh.pop %v1274
  %1277 = vrot.lane.b32.xlu0 %v1275, 32
  %v1278 = vpop.permute.xlu0 %1277
  %v1280 = vmul.f32 %v1259, %v1278
  %vm1281 = vcmp.gt.s32.totalorder %v110, 12
  %v1282 = vsel %vm1281, 1, 0
  %1283 = vset.pattern.permute.xlu0 0
  %1284 = vperm.xlu0 %1283, %v1282
  %v1285 = vpop.permute.xlu0 %1284
  %vm1286 = vcmp.eq.s32.totalorder %v1285, 1
  %v1287 = vsel %vm1286, %v1280, 0.0
  %1289 = vrot.lane.b32.xlu0 %v1287, 64
  %v1290 = vpop.permute.xlu0 %1289
  %1292 = vst.msk [vmem:[%s5 + $0x18] sm:$0x3] %vm202, %v1290
  %v1293 = vpack.c.bf16 %v1280, %v1280
  %1295 = vrot.lane.b32.xlu0 %v1293, 64
  %v1296 = vpop.permute.xlu0 %1295
  %v1298 = vsel %vm50, %v1296, 0
  %1300 = vmatprep.subr.bf16.mxu0 0
  %1301 = vmatpush1.bf16.msra.mxu0 %v119
  %1302 = vmatprep.subr.bf16.mxu0 0
  %1303 = vmatpush1.bf16.msra.mxu0 %v120
  %1304 = vmatprep.subr.bf16.mxu0 0
  %1305 = vmatpush1.bf16.msra.mxu0 0
  %1306 = vmatprep.subr.bf16.mxu0 0
  %1307 = vmatpush1.bf16.msra.mxu0 0
  %1308 = vmatprep.subr.bf16.mxu0 0
  %1309 = vmatpush1.bf16.msra.mxu0 0
  %1310 = vmatprep.subr.bf16.mxu0 0
  %1311 = vmatpush1.bf16.msra.mxu0 0
  %1312 = vmatprep.subr.bf16.mxu0 0
  %1313 = vmatpush1.bf16.msra.mxu0 0
  %1314 = vmatprep.subr.bf16.mxu0 0
  %1315 = vmatpush1.bf16.msra.mxu0 0
  %1316 = vmatprep.subr.bf16.mxu0 0
  %1317 = vmatpush1.bf16.msra.mxu0 0
  %1318 = vmatprep.subr.bf16.mxu0 0
  %1319 = vmatpush1.bf16.msra.mxu0 0
  %1320 = vmatprep.subr.bf16.mxu0 0
  %1321 = vmatpush1.bf16.msra.mxu0 0
  %1322 = vmatprep.subr.bf16.mxu0 0
  %1323 = vmatpush1.bf16.msra.mxu0 0
  %1324 = vmatprep.subr.bf16.mxu0 0
  %1325 = vmatpush1.bf16.msra.mxu0 0
  %1326 = vmatprep.subr.bf16.mxu0 0
  %1327 = vmatpush1.bf16.msra.mxu0 0
  %1328 = vmatprep.subr.bf16.mxu0 0
  %1329 = vmatpush1.bf16.msra.mxu0 0
  %1330 = vmatprep.subr.bf16.mxu0 0
  %1331 = vmatpush1.bf16.msra.mxu0 0
  %1332 = vmatprep.mubr.bf16.mxu0 0
  %1333 = vmatmul.mubr.bf16.gmra.mrb[0].mxu0 %v1298
  %v1334 = vpop.f32.mrb[0].mxu0
  %v1335 = vadd.f32 0.0, %v1334
  %v1336 = vpop.f32.mrb[0].mxu0
  %v1337 = vpop.f32.mrb[0].mxu0
  %v1338 = vpop.f32.mrb[0].mxu0
  %1339 = vdwg.mxu0
  %v1341 = vrot.slane %v1335, 6
  %v1343 = vadd.f32 %v103, %v1341
  %v1344 = vxor.u32 %v1343, 2147483648
  %v1345 = vmul.f32 %v1344, 1.442695
  %v1346 = vpow.pop %v1345
  %v1347 = vadd.f32 %v1346, 1.0
  %v1348 = vrcp.pop %v1347
  %v1349 = vmul.f32 1.0, %v1348
  %v1350 = vtanh.pop %v1343
  %v1352 = vrot.slane %v1274, 6
  %v1354 = vmul.f32 %v1349, %v1352
  %1356 = vrot.lane.b32.xlu0 %v1350, 32
  %v1357 = vpop.permute.xlu0 %1356
  %v1359 = vmul.f32 %v1349, %v1357
  %1361 = vrot.lane.b32.xlu0 %v1359, 32
  %v1362 = vpop.permute.xlu0 %1361
  %v1364 = vadd.f32 %v1354, %v1362
  %v1365 = vtanh.pop %v1364
  %1367 = vrot.lane.b32.xlu0 %v1365, 32
  %v1368 = vpop.permute.xlu0 %1367
  %v1370 = vmul.f32 %v1349, %v1368
  %vm1371 = vcmp.gt.s32.totalorder %v110, 13
  %v1372 = vsel %vm1371, 1, 0
  %1373 = vset.pattern.permute.xlu0 0
  %1374 = vperm.xlu0 %1373, %v1372
  %v1375 = vpop.permute.xlu0 %1374
  %vm1376 = vcmp.eq.s32.totalorder %v1375, 1
  %v1378 = vrot.slane %v1370, 2
  %1379 = vrot.lane.b32.xlu0 %v1378, 64
  %v1380 = vpop.permute.xlu0 %1379
  %v1382 = vsel %vm1376, %v1380, 0.0
  %1383 = vst.msk [vmem:[%s5 + $0x1a] sm:$0x3] %vm202, %v1382
  %v1384 = vpack.c.bf16 %v1370, %v1370
  %v1386 = vrot.slane %v1384, 1
  %1387 = vrot.lane.b32.xlu0 %v1386, 64
  %v1388 = vpop.permute.xlu0 %1387
  %v1390 = vsel %vm50, %v1388, 0
  %1392 = vmatprep.subr.bf16.mxu0 0
  %1393 = vmatpush1.bf16.msra.mxu0 %v119
  %1394 = vmatprep.subr.bf16.mxu0 0
  %1395 = vmatpush1.bf16.msra.mxu0 %v120
  %1396 = vmatprep.subr.bf16.mxu0 0
  %1397 = vmatpush1.bf16.msra.mxu0 0
  %1398 = vmatprep.subr.bf16.mxu0 0
  %1399 = vmatpush1.bf16.msra.mxu0 0
  %1400 = vmatprep.subr.bf16.mxu0 0
  %1401 = vmatpush1.bf16.msra.mxu0 0
  %1402 = vmatprep.subr.bf16.mxu0 0
  %1403 = vmatpush1.bf16.msra.mxu0 0
  %1404 = vmatprep.subr.bf16.mxu0 0
  %1405 = vmatpush1.bf16.msra.mxu0 0
  %1406 = vmatprep.subr.bf16.mxu0 0
  %1407 = vmatpush1.bf16.msra.mxu0 0
  %1408 = vmatprep.subr.bf16.mxu0 0
  %1409 = vmatpush1.bf16.msra.mxu0 0
  %1410 = vmatprep.subr.bf16.mxu0 0
  %1411 = vmatpush1.bf16.msra.mxu0 0
  %1412 = vmatprep.subr.bf16.mxu0 0
  %1413 = vmatpush1.bf16.msra.mxu0 0
  %1414 = vmatprep.subr.bf16.mxu0 0
  %1415 = vmatpush1.bf16.msra.mxu0 0
  %1416 = vmatprep.subr.bf16.mxu0 0
  %1417 = vmatpush1.bf16.msra.mxu0 0
  %1418 = vmatprep.subr.bf16.mxu0 0
  %1419 = vmatpush1.bf16.msra.mxu0 0
  %1420 = vmatprep.subr.bf16.mxu0 0
  %1421 = vmatpush1.bf16.msra.mxu0 0
  %1422 = vmatprep.subr.bf16.mxu0 0
  %1423 = vmatpush1.bf16.msra.mxu0 0
  %1424 = vmatprep.mubr.bf16.mxu0 0
  %1425 = vmatmul.mubr.bf16.gmra.mrb[0].mxu0 %v1390
  %v1426 = vpop.f32.mrb[0].mxu0
  %v1427 = vadd.f32 0.0, %v1426
  %v1428 = vpop.f32.mrb[0].mxu0
  %v1429 = vpop.f32.mrb[0].mxu0
  %v1430 = vpop.f32.mrb[0].mxu0
  %1431 = vdwg.mxu0
  %v1433 = vrot.slane %v1427, 4
  %v1435 = vadd.f32 %v103, %v1433
  %v1436 = vxor.u32 %v1435, 2147483648
  %v1437 = vmul.f32 %v1436, 1.442695
  %v1438 = vpow.pop %v1437
  %v1439 = vadd.f32 %v1438, 1.0
  %v1440 = vrcp.pop %v1439
  %v1441 = vmul.f32 1.0, %v1440
  %v1442 = vtanh.pop %v1435
  %v1444 = vrot.slane %v1364, 6
  %v1446 = vmul.f32 %v1441, %v1444
  %1448 = vrot.lane.b32.xlu0 %v1442, 32
  %v1449 = vpop.permute.xlu0 %1448
  %v1451 = vmul.f32 %v1441, %v1449
  %1453 = vrot.lane.b32.xlu0 %v1451, 32
  %v1454 = vpop.permute.xlu0 %1453
  %v1456 = vadd.f32 %v1446, %v1454
  %v1457 = vtanh.pop %v1456
  %1459 = vrot.lane.b32.xlu0 %v1457, 32
  %v1460 = vpop.permute.xlu0 %1459
  %v1462 = vmul.f32 %v1441, %v1460
  %vm1463 = vcmp.gt.s32.totalorder %v110, 14
  %v1464 = vsel %vm1463, 1, 0
  %1465 = vset.pattern.permute.xlu0 0
  %1466 = vperm.xlu0 %1465, %v1464
  %v1467 = vpop.permute.xlu0 %1466
  %vm1468 = vcmp.eq.s32.totalorder %v1467, 1
  %v1470 = vrot.slane %v1462, 4
  %1471 = vrot.lane.b32.xlu0 %v1470, 64
  %v1472 = vpop.permute.xlu0 %1471
  %v1474 = vsel %vm1468, %v1472, 0.0
  %1475 = vst.msk [vmem:[%s5 + $0x1c] sm:$0x3] %vm202, %v1474
  %v1476 = vpack.c.bf16 %v1462, %v1462
  %v1478 = vrot.slane %v1476, 2
  %1479 = vrot.lane.b32.xlu0 %v1478, 64
  %v1480 = vpop.permute.xlu0 %1479
  %v1482 = vsel %vm50, %v1480, 0
  %1484 = vmatprep.subr.bf16.mxu0 0
  %1485 = vmatpush1.bf16.msra.mxu0 %v119
  %1486 = vmatprep.subr.bf16.mxu0 0
  %1487 = vmatpush1.bf16.msra.mxu0 %v120
  %1488 = vmatprep.subr.bf16.mxu0 0
  %1489 = vmatpush1.bf16.msra.mxu0 0
  %1490 = vmatprep.subr.bf16.mxu0 0
  %1491 = vmatpush1.bf16.msra.mxu0 0
  %1492 = vmatprep.subr.bf16.mxu0 0
  %1493 = vmatpush1.bf16.msra.mxu0 0
  %1494 = vmatprep.subr.bf16.mxu0 0
  %1495 = vmatpush1.bf16.msra.mxu0 0
  %1496 = vmatprep.subr.bf16.mxu0 0
  %1497 = vmatpush1.bf16.msra.mxu0 0
  %1498 = vmatprep.subr.bf16.mxu0 0
  %1499 = vmatpush1.bf16.msra.mxu0 0
  %1500 = vmatprep.subr.bf16.mxu0 0
  %1501 = vmatpush1.bf16.msra.mxu0 0
  %1502 = vmatprep.subr.bf16.mxu0 0
  %1503 = vmatpush1.bf16.msra.mxu0 0
  %1504 = vmatprep.subr.bf16.mxu0 0
  %1505 = vmatpush1.bf16.msra.mxu0 0
  %1506 = vmatprep.subr.bf16.mxu0 0
  %1507 = vmatpush1.bf16.msra.mxu0 0
  %1508 = vmatprep.subr.bf16.mxu0 0
  %1509 = vmatpush1.bf16.msra.mxu0 0
  %1510 = vmatprep.subr.bf16.mxu0 0
  %1511 = vmatpush1.bf16.msra.mxu0 0
  %1512 = vmatprep.subr.bf16.mxu0 0
  %1513 = vmatpush1.bf16.msra.mxu0 0
  %1514 = vmatprep.subr.bf16.mxu0 0
  %1515 = vmatpush1.bf16.msra.mxu0 0
  %1516 = vmatprep.mubr.bf16.mxu0 0
  %1517 = vmatmul.mubr.bf16.gmra.mrb[0].mxu0 %v1482
  %v1518 = vpop.f32.mrb[0].mxu0
  %v1519 = vadd.f32 0.0, %v1518
  %v1520 = vpop.f32.mrb[0].mxu0
  %v1521 = vpop.f32.mrb[0].mxu0
  %v1522 = vpop.f32.mrb[0].mxu0
  %1523 = vdwg.mxu0
  %v1525 = vrot.slane %v1519, 2
  %v1527 = vadd.f32 %v103, %v1525
  %v1528 = vxor.u32 %v1527, 2147483648
  %v1529 = vmul.f32 %v1528, 1.442695
  %v1530 = vpow.pop %v1529
  %v1531 = vadd.f32 %v1530, 1.0
  %v1532 = vrcp.pop %v1531
  %v1533 = vmul.f32 1.0, %v1532
  %v1534 = vtanh.pop %v1527
  %v1536 = vrot.slane %v1456, 6
  %v1538 = vmul.f32 %v1533, %v1536
  %1540 = vrot.lane.b32.xlu0 %v1534, 32
  %v1541 = vpop.permute.xlu0 %1540
  %v1543 = vmul.f32 %v1533, %v1541
  %1545 = vrot.lane.b32.xlu0 %v1543, 32
  %v1546 = vpop.permute.xlu0 %1545
  %v1548 = vadd.f32 %v1538, %v1546
  %v1549 = vtanh.pop %v1548
  %1551 = vrot.lane.b32.xlu0 %v1549, 32
  %v1552 = vpop.permute.xlu0 %1551
  %v1554 = vmul.f32 %v1533, %v1552
  %vm1555 = vcmp.gt.s32.totalorder %v110, 15
  %v1556 = vsel %vm1555, 1, 0
  %1557 = vset.pattern.permute.xlu0 0
  %1558 = vperm.xlu0 %1557, %v1556
  %v1559 = vpop.permute.xlu0 %1558
  %vm1560 = vcmp.eq.s32.totalorder %v1559, 1
  %v1562 = vrot.slane %v1554, 6
  %1563 = vrot.lane.b32.xlu0 %v1562, 64
  %v1564 = vpop.permute.xlu0 %1563
  %v1566 = vsel %vm1560, %v1564, 0.0
  %1567 = vst.msk [vmem:[%s5 + $0x1e] sm:$0x3] %vm202, %v1566
  // Predicated region
  $region22: #{hierarchical_forward.3} parent=0 // pred_check
    _
  $region23: #{hierarchical_forward.3} parent=0 // pred_check_branch
    %1569 = sbr.rel (0) target = $region25
  $region24: #{hierarchical_forward.3} parent=0 // pred_region
    _
  $region25: #{hierarchical_forward.3} parent=0 // pred_fallthru
    _
  // Predicated region
  $region26: #{hierarchical_forward.3} parent=0 // pred_check
    _
  $region27: #{hierarchical_forward.3} parent=0 // pred_check_branch
    %1571 = sbr.rel (0) target = $region29
  $region28: #{hierarchical_forward.3} parent=0 // pred_region
    _
  $region29: #{hierarchical_forward.3} parent=0 // pred_fallthru
    _

// kernel: hierarchical_forward.2
$region0: #{hierarchical_forward.2}
  #allocation0 [shape = 'u32[]', space=smem, size = 0x4, offset = 0x4, fixed_abs, tag = 'smem constant byte address 0x4 - core index']
  #allocation1 [shape = 'u32[144,128]{1,0:T(1,128)}', space=vmem, size = 0x12000, scoped, tag = 'internal scratch']
  #allocation2 [shape = 'f32[16,32]{1,0:T(8,128)}', space=vmem, size = 0x2000, scoped, tag = 'scratch operand']
  #allocation3 [shape = 'f32[16,32]{1,0:T(8,128)}', space=vmem, size = 0x2000, scoped, tag = 'scratch operand']
  #allocation4 [shape = 'f32[16,32]{1,0:T(8,128)}', space=vmem, size = 0x2000, scoped, tag = 'scratch operand']
  #allocation5 [shape = 'f32[8,16,128]{2,1,0:T(8,128)}', space=vmem, size = 0x10000, scoped, tag = 'scratch operand']
  #allocation16 [shape = 's32[]', space=sflag, size = 0x4, offset = 0, fixed_abs, tag = 'sflag constant byte address 0x0 - dummy sync flag']
  %s0 = inlined_call_operand.hbm [shape: bf16[16,32,16], index: 0, kind: input, shape index: {}]
  %s1 = inlined_call_operand.hbm [shape: s32[32,1], index: 1, kind: input, shape index: {}]
  %s2 = inlined_call_operand.hbm [shape: bf16[16,128], index: 2, kind: input, shape index: {}]
  %s3 = inlined_call_operand.hbm [shape: bf16[32,128], index: 3, kind: input, shape index: {}]
  %s4 = inlined_call_operand.hbm [shape: f32[1,128], index: 4, kind: input, shape index: {}]
  %s5 = inlined_call_operand.hbm [shape: f32[32,32], index: 5, kind: output, shape index: {}]
  %s6 = sld [smem:[#allocation0]]
  $region81: #{hierarchical_forward.2} parent=0
    _
  %s8 = ssub.s32 1, %s6
  %s9 = scalar_select 0, %s8, %s6
  $region1: #{hierarchical_forward.2} parent=0
    #allocation6 [shape = 'u8[65536]{0}', space=vmem, size = 0x10000, scoped, tag = 'input window, operand 0']
    #allocation7 [shape = 's32[2]{0}', space=sflag, size = 0x8, scoped, tag = 'scoped memory for hierarchical_forward.2']
    #allocation8 [shape = 's32[2]{0}', space=sflag, size = 0x8, scoped, tag = 'scoped memory for hierarchical_forward.2']
    #allocation9 [shape = 'u8[16384]{0}', space=vmem, size = 0x4000, scoped, tag = 'input window, operand 1']
    #allocation10 [shape = 's32[2]{0}', space=sflag, size = 0x8, scoped, tag = 'scoped memory for hierarchical_forward.2']
    #allocation11 [shape = 'u8[4096]{0}', space=vmem, size = 0x1000, scoped, tag = 'input window, operand 2, single buffered']
    #allocation12 [shape = 'u8[8192]{0}', space=vmem, size = 0x2000, scoped, tag = 'input window, operand 3, single buffered']
    #allocation13 [shape = 's32[1]{0}', space=sflag, size = 0x4, scoped, tag = 'scoped memory for hierarchical_forward.2']
    #allocation14 [shape = 'u8[512]{0}', space=vmem, size = 0x400, scoped, tag = 'input window, operand 4, single buffered']
    #allocation15 [shape = 'u8[16384]{0}', space=vmem, size = 0x4000, scoped, tag = 'output window, operand 0']
    %10 = vsyncpa [#allocation7], 0
    %s11 = scalar_lea.sflag [#allocation7], 1
    %12 = vsyncpa %s11, 0
    %13 = vsyncpa [#allocation10], 0
    %s14 = scalar_lea.sflag [#allocation10], 1
    %15 = vsyncpa %s14, 0
    %16 = vsyncpa [#allocation13], 0
    %17 = vsyncpa [#allocation8], 0
    %s18 = scalar_lea.sflag [#allocation8], 1
    %19 = vsyncpa %s18, 0
    loop: start=0, step=1, limit=6
    $region2: #{hierarchical_forward.2} parent=1 // loop_pre_header
      _
    $region3: #{hierarchical_forward.2} parent=1 // loop_header
      %s21 = sphi 0, %s25
      %p22 = scmp.ge.s32.totalorder %s21, 6
      %s28 = sphi 0, %s40
      %s29 = sphi 0, %s36
      %s30 = sphi 0, %s28
      %s31 = sphi 0, %s29
      %s32 = sphi 0, %s30
      %s33 = sphi 0, %s31
      %s45 = sphi 0, %s47
      %s48 = sphi 0, %s45
      %s49 = sphi 0, %s48
      %s65 = sphi 0, %s49
      %s71 = sphi 0, %s73
      %s74 = sphi 0, %s71
      %s75 = sphi 0, %s74
      %s91 = sphi 0, %s75
      %s95 = sphi 0, %s95
      %s97 = sphi 0, %s95
      %s98 = sphi 0, %s97
      %s112 = sphi 0, %s98
      %s116 = sphi 0, %s116
      %s118 = sphi 0, %s116
      %s119 = sphi 0, %s118
      %s133 = sphi 0, %s119
      %s137 = sphi 0, %s137
      %s139 = sphi 0, %s137
      %s140 = sphi 0, %s139
      %s154 = sphi 0, %s140
      %s160 = sphi 0, %s162
      %s163 = sphi 0, %s160
      %s164 = sphi 0, %s163
      %s180 = sphi 0, %s164
    $region4: #{hierarchical_forward.2} parent=1 // loop_header_branch
      %24 = sbr.rel (%p22) target = $region8
    $region5: #{hierarchical_forward.2} parent=1 // loop_body
      %s26 = ssub.s32 %s21, 1
      %s27 = ssub.s32 %s21, 2
      %s34 = sadd.s32 1, %s29
      %p35 = scmp.ge.s32.totalorder %s34, 2
      %s36 = scalar_select %p35, 0, %s34
      %s37 = sadd.s32 1, %s28
      %s38 = scalar_select %p35, %s37, %s28
      %p39 = scmp.ge.s32.totalorder %s38, 2
      %s40 = scalar_select %p39, 0, %s38
      %s41 = ssub.s32 %s29, %s36
      %s42 = ssub.s32 %s28, %s40
      %s43 = sor.u32 %s41, %s42
      %p44 = scmp.eq.s32.totalorder %s43, 0
      %s46 = sadd.s32 %s45, 1
      %s47 = scalar_select %p44, %s45, %s46
      %p50 = pneg %p44
      %p51 = scmp.eq.s32.totalorder %s21, 3
      %p52 = por %p50, %p51
      %p53 = scmp.ne.s32.totalorder %s45, %s48
      %p54 = scmp.eq.s32.totalorder %s21, 0
      %p55 = por %p53, %p54
      %p56 = scmp.ne.s32.totalorder %s45, %s48
      %p57 = scmp.eq.s32.totalorder %s26, 3
      %p58 = por %p56, %p57
      %p59 = scmp.ne.s32.totalorder %s48, %s49
      %p60 = scmp.eq.s32.totalorder %s26, 0
      %p61 = por %p59, %p60
      %p62 = scmp.ne.s32.totalorder %s48, %s49
      %p63 = scmp.eq.s32.totalorder %s27, 3
      %p64 = por %p62, %p63
      %p66 = scmp.ne.s32.totalorder %s49, %s65
      %p67 = scmp.eq.s32.totalorder %s27, 0
      %p68 = por %p66, %p67
      %s69 = ssub.s32 %s28, %s40
      %p70 = scmp.eq.s32.totalorder %s69, 0
      %s72 = sadd.s32 %s71, 1
      %s73 = scalar_select %p70, %s71, %s72
      %p76 = pneg %p70
      %p77 = scmp.eq.s32.totalorder %s21, 3
      %p78 = por %p76, %p77
      %p79 = scmp.ne.s32.totalorder %s71, %s74
      %p80 = scmp.eq.s32.totalorder %s21, 0
      %p81 = por %p79, %p80
      %p82 = scmp.ne.s32.totalorder %s71, %s74
      %p83 = scmp.eq.s32.totalorder %s26, 3
      %p84 = por %p82, %p83
      %p85 = scmp.ne.s32.totalorder %s74, %s75
      %p86 = scmp.eq.s32.totalorder %s26, 0
      %p87 = por %p85, %p86
      %p88 = scmp.ne.s32.totalorder %s74, %s75
      %p89 = scmp.eq.s32.totalorder %s27, 3
      %p90 = por %p88, %p89
      %p92 = scmp.ne.s32.totalorder %s75, %s91
      %p93 = scmp.eq.s32.totalorder %s27, 0
      %p94 = por %p92, %p93
      %s96 = sadd.s32 %s95, 1
      %p99 = scmp.eq.s32.totalorder %s21, 3
      %p100 = scmp.ne.s32.totalorder %s95, %s97
      %p101 = scmp.eq.s32.totalorder %s21, 0
      %p102 = por %p100, %p101
      %p103 = scmp.ne.s32.totalorder %s95, %s97
      %p104 = scmp.eq.s32.totalorder %s26, 3
      %p105 = por %p103, %p104
      %p106 = scmp.ne.s32.totalorder %s97, %s98
      %p107 = scmp.eq.s32.totalorder %s26, 0
      %p108 = por %p106, %p107
      %p109 = scmp.ne.s32.totalorder %s97, %s98
      %p110 = scmp.eq.s32.totalorder %s27, 3
      %p111 = por %p109, %p110
      %p113 = scmp.ne.s32.totalorder %s98, %s112
      %p114 = scmp.eq.s32.totalorder %s27, 0
      %p115 = por %p113, %p114
      %s117 = sadd.s32 %s116, 1
      %p120 = scmp.eq.s32.totalorder %s21, 3
      %p121 = scmp.ne.s32.totalorder %s116, %s118
      %p122 = scmp.eq.s32.totalorder %s21, 0
      %p123 = por %p121, %p122
      %p124 = scmp.ne.s32.totalorder %s116, %s118
      %p125 = scmp.eq.s32.totalorder %s26, 3
      %p126 = por %p124, %p125
      %p127 = scmp.ne.s32.totalorder %s118, %s119
      %p128 = scmp.eq.s32.totalorder %s26, 0
      %p129 = por %p127, %p128
      %p130 = scmp.ne.s32.totalorder %s118, %s119
      %p131 = scmp.eq.s32.totalorder %s27, 3
      %p132 = por %p130, %p131
      %p134 = scmp.ne.s32.totalorder %s119, %s133
      %p135 = scmp.eq.s32.totalorder %s27, 0
      %p136 = por %p134, %p135
      %s138 = sadd.s32 %s137, 1
      %p141 = scmp.eq.s32.totalorder %s21, 3
      %p142 = scmp.ne.s32.totalorder %s137, %s139
      %p143 = scmp.eq.s32.totalorder %s21, 0
      %p144 = por %p142, %p143
      %p145 = scmp.ne.s32.totalorder %s137, %s139
      %p146 = scmp.eq.s32.totalorder %s26, 3
      %p147 = por %p145, %p146
      %p148 = scmp.ne.s32.totalorder %s139, %s140
      %p149 = scmp.eq.s32.totalorder %s26, 0
      %p150 = por %p148, %p149
      %p151 = scmp.ne.s32.totalorder %s139, %s140
      %p152 = scmp.eq.s32.totalorder %s27, 3
      %p153 = por %p151, %p152
      %p155 = scmp.ne.s32.totalorder %s140, %s154
      %p156 = scmp.eq.s32.totalorder %s27, 0
      %p157 = por %p155, %p156
      %s158 = ssub.s32 %s28, %s40
      %p159 = scmp.eq.s32.totalorder %s158, 0
      %s161 = sadd.s32 %s160, 1
      %s162 = scalar_select %p159, %s160, %s161
      %p165 = pneg %p159
      %p166 = scmp.eq.s32.totalorder %s21, 3
      %p167 = por %p165, %p166
      %p168 = scmp.ne.s32.totalorder %s160, %s163
      %p169 = scmp.eq.s32.totalorder %s21, 0
      %p170 = por %p168, %p169
      %p171 = scmp.ne.s32.totalorder %s160, %s163
      %p172 = scmp.eq.s32.totalorder %s26, 3
      %p173 = por %p171, %p172
      %p174 = scmp.ne.s32.totalorder %s163, %s164
      %p175 = scmp.eq.s32.totalorder %s26, 0
      %p176 = por %p174, %p175
      %p177 = scmp.ne.s32.totalorder %s163, %s164
      %p178 = scmp.eq.s32.totalorder %s27, 3
      %p179 = por %p177, %p178
      %p181 = scmp.ne.s32.totalorder %s164, %s180
      %p182 = scmp.eq.s32.totalorder %s27, 0
      %p183 = por %p181, %p182
      %p184 = scmp.le.s32.totalorder 1, %s21
      %p185 = scmp.lt.s32.totalorder %s21, 5
      %p186 = pnand %p184, %p185
      %p187 = pneg %p186
      // Predicated region
      $region9: #{hierarchical_forward.2} parent=5 // pred_check
        _
      $region10: #{hierarchical_forward.2} parent=5 // pred_check_branch
        %189 = sbr.rel (%p186) target = $region12
      $region11: #{hierarchical_forward.2} parent=5 // pred_region
        %s190 = ssub.s32 %s21, 1
        // Predicated region
        $region13: #{hierarchical_forward.2} parent=11 // pred_check
          %p191 = pneg %p108
        $region14: #{hierarchical_forward.2} parent=11 // pred_check_branch
          %193 = sbr.rel (%p191) target = $region16
        $region15: #{hierarchical_forward.2} parent=11 // pred_region
          %s195 = ssub.s32 128, 128
          %196 = vsyncadd [#allocation10], %s195
          %s197 = sshll.u32 [#allocation11], 4
          %s198 = int_to_ptr.vmem [resolvable:$true] %s197
          %203 = dma.hbm_to_vmem [thread:$0]  %s2, 128, %s198, [#allocation10], 64, 64, 4
        $region16: #{hierarchical_forward.2} parent=11 // pred_fallthru
          _
        // Predicated region
        $region17: #{hierarchical_forward.2} parent=11 // pred_check
          %p204 = pneg %p129
        $region18: #{hierarchical_forward.2} parent=11 // pred_check_branch
          %206 = sbr.rel (%p204) target = $region20
        $region19: #{hierarchical_forward.2} parent=11 // pred_region
          %s208 = ssub.s32 256, 256
          %209 = vsyncadd [#allocation13], %s208
          %s210 = sshll.u32 [#allocation12], 4
          %s211 = int_to_ptr.vmem [resolvable:$true] %s210
          %216 = dma.hbm_to_vmem [thread:$0]  %s3, 256, %s211, [#allocation13], 64, 64, 4
        $region20: #{hierarchical_forward.2} parent=11 // pred_fallthru
          _
        // Predicated region
        $region21: #{hierarchical_forward.2} parent=11 // pred_check
          %p217 = pneg %p150
        $region22: #{hierarchical_forward.2} parent=11 // pred_check_branch
          %219 = sbr.rel (%p217) target = $region24
        $region23: #{hierarchical_forward.2} parent=11 // pred_region
          %s221 = ssub.s32 16, 16
          %222 = vsyncadd [#allocation13], %s221
          %s224 = sshll.u32 [#allocation14], 4
          %s225 = int_to_ptr.vmem [resolvable:$true] %s224
          %227 = dma.hbm_to_vmem [thread:$0]  %s4, 16, %s225, [#allocation13]
        $region24: #{hierarchical_forward.2} parent=11 // pred_fallthru
          _
      $region12: #{hierarchical_forward.2} parent=5 // pred_fallthru
        _
      %p228 = scmp.lt.s32.totalorder %s21, 4
      // Predicated region
      $region25: #{hierarchical_forward.2} parent=5 // pred_check
        %p229 = pneg %p228
      $region26: #{hierarchical_forward.2} parent=5 // pred_check_branch
        %231 = sbr.rel (%p229) target = $region28
      $region27: #{hierarchical_forward.2} parent=5 // pred_region
        // Predicated region
        $region29: #{hierarchical_forward.2} parent=27 // pred_check
          %p232 = pneg %p55
        $region30: #{hierarchical_forward.2} parent=27 // pred_check_branch
          %234 = sbr.rel (%p232) target = $region32
        $region31: #{hierarchical_forward.2} parent=27 // pred_region
          #allocation17 [shape = 'u32[6]{0}', space=smem, size = 0x18, scoped, tag = 'DMA stride descriptor']
          %s235 = sand.u32 %s45, 1
          %s236 = scalar_lea.sflag [#allocation7], %s235
          %s237 = sand.u32 %s45, 1
          %s238 = smul.addr %s237, 64
          %s239 = scalar_lea.vmem [#allocation6], %s238
          %s240 = smul.u32 8, %s29
          %s241 = smul.u32 2, %s28
          %s243 = ssub.s32 1024, 1024
          %244 = vsyncadd %s236, %s243
          %s245 = smul.addr %s240, 4
          %s246 = sadd.s32 %s241, %s245
          %s247 = smul.addr %s246, 64
          %s248 = scalar_lea.hbm %s0, %s247
          %s250 = sshll.u32 1, 14
          %s251 = sxor.u32 4294967295, %s250
          %s253 = sld [smem:[#allocation0]]
          %s254 = sadd.s32 2, %s253
          %s256 = sshll.u32 7, 26
          %s257 = sxor.u32 4294967295, %s256
          %s258 = sand.u32 0, %s257
          %s259 = sshll.u32 %s254, 26
          %s260 = sor.u32 %s258, %s259
          %s261 = sshll.u32 %s239, 4
          %s262 = int_to_ptr.vmem [resolvable:$true] %s261
          %268 = sst [smem:[#allocation17]] 256
          %s269 = scalar_lea.smem [#allocation17], 1
          %270 = sst [smem:[%s269]] 128
          %s271 = scalar_lea.smem [#allocation17], 2
          %272 = sst [smem:[%s271]] 2
          %s273 = scalar_lea.smem [#allocation17], 3
          %274 = sst [smem:[%s273]] 64
          %s275 = scalar_lea.smem [#allocation17], 4
          %276 = sst [smem:[%s275]] 64
          %s277 = scalar_lea.smem [#allocation17], 5
          %278 = sst [smem:[%s277]] 4
          %280 = dma.general %s248, 1024, %s262, %s236, [#allocation16], [#allocation17], %s260, 0
        $region32: #{hierarchical_forward.2} parent=27 // pred_fallthru
          _
        // Predicated region
        $region33: #{hierarchical_forward.2} parent=27 // pred_check
          %p281 = pneg %p81
        $region34: #{hierarchical_forward.2} parent=27 // pred_check_branch
          %283 = sbr.rel (%p281) target = $region36
        $region35: #{hierarchical_forward.2} parent=27 // pred_region
          %s284 = sand.u32 %s21, 1
          %s285 = scalar_lea.sflag [#allocation10], %s284
          %s286 = sand.u32 %s71, 1
          %s287 = smul.addr %s286, 16
          %s288 = scalar_lea.vmem [#allocation9], %s287
          %s289 = smul.u32 2, %s28
          %s291 = ssub.s32 256, 256
          %292 = vsyncadd %s285, %s291
          %s293 = smul.addr %s289, 128
          %s294 = scalar_lea.hbm %s1, %s293
          %s295 = sshll.u32 %s288, 4
          %s296 = int_to_ptr.vmem [resolvable:$true] %s295
          %301 = dma.hbm_to_vmem [thread:$0]  %s294, 256, %s296, %s285, 128, 128, 8
        $region36: #{hierarchical_forward.2} parent=27 // pred_fallthru
          _
      $region28: #{hierarchical_forward.2} parent=5 // pred_fallthru
        _
      %p302 = scmp.le.s32.totalorder 1, %s21
      %p303 = scmp.lt.s32.totalorder %s21, 5
      %p304 = pnand %p302, %p303
      %p305 = pneg %p304
      // Predicated region
      $region37: #{hierarchical_forward.2} parent=5 // pred_check
        _
      $region38: #{hierarchical_forward.2} parent=5 // pred_check_branch
        %307 = sbr.rel (%p304) target = $region40
      $region39: #{hierarchical_forward.2} parent=5 // pred_region
        %s308 = ssub.s32 %s21, 1
        %s309 = sand.u32 %s48, 1
        %s310 = scalar_lea.sflag [#allocation7], %s309
        %s311 = sand.u32 %s48, 1
        %s312 = smul.addr %s311, 64
        %s313 = scalar_lea.vmem [#allocation6], %s312
        // Predicated region
        $region41: #{hierarchical_forward.2} parent=39 // pred_check
          %p314 = pneg %p61
        $region42: #{hierarchical_forward.2} parent=39 // pred_check_branch
          %316 = sbr.rel (%p314) target = $region44
        $region43: #{hierarchical_forward.2} parent=39 // pred_region
          %317 = dma.done %s310, 1024
        $region44: #{hierarchical_forward.2} parent=39 // pred_fallthru
          _
        %s318 = sand.u32 %s26, 1
        %s319 = scalar_lea.sflag [#allocation10], %s318
        %s320 = sand.u32 %s74, 1
        %s321 = smul.addr %s320, 16
        %s322 = scalar_lea.vmem [#allocation9], %s321
        // Predicated region
        $region45: #{hierarchical_forward.2} parent=39 // pred_check
          %p323 = pneg %p87
        $region46: #{hierarchical_forward.2} parent=39 // pred_check_branch
          %325 = sbr.rel (%p323) target = $region48
        $region47: #{hierarchical_forward.2} parent=39 // pred_region
          %326 = dma.done %s319, 256
        $region48: #{hierarchical_forward.2} parent=39 // pred_fallthru
          _
        // Predicated region
        $region49: #{hierarchical_forward.2} parent=39 // pred_check
          %p327 = pneg %p108
        $region50: #{hierarchical_forward.2} parent=39 // pred_check_branch
          %329 = sbr.rel (%p327) target = $region52
        $region51: #{hierarchical_forward.2} parent=39 // pred_region
          %330 = dma.done [#allocation10], 128
        $region52: #{hierarchical_forward.2} parent=39 // pred_fallthru
          _
        // Predicated region
        $region53: #{hierarchical_forward.2} parent=39 // pred_check
          %p331 = pneg %p129
        $region54: #{hierarchical_forward.2} parent=39 // pred_check_branch
          %333 = sbr.rel (%p331) target = $region56
        $region55: #{hierarchical_forward.2} parent=39 // pred_region
          %334 = dma.done [#allocation13], 256
        $region56: #{hierarchical_forward.2} parent=39 // pred_fallthru
          _
        // Predicated region
        $region57: #{hierarchical_forward.2} parent=39 // pred_check
          %p335 = pneg %p150
        $region58: #{hierarchical_forward.2} parent=39 // pred_check_branch
          %337 = sbr.rel (%p335) target = $region60
        $region59: #{hierarchical_forward.2} parent=39 // pred_region
          %338 = dma.done [#allocation13], 16
        $region60: #{hierarchical_forward.2} parent=39 // pred_fallthru
          _
        %s339 = sand.u32 %s48, 1
        %s340 = scalar_lea.sflag [#allocation7], %s339
        %s341 = sand.u32 %s48, 1
        %s342 = smul.addr %s341, 64
        %s343 = scalar_lea.vmem [#allocation6], %s342
        %p344 = pneg %p61
        %p345 = pneg %p58
        %s346 = sand.u32 %s26, 1
        %s347 = scalar_lea.sflag [#allocation10], %s346
        %s348 = sand.u32 %s74, 1
        %s349 = smul.addr %s348, 16
        %s350 = scalar_lea.vmem [#allocation9], %s349
        %p351 = pneg %p87
        %p352 = pneg %p84
        %p353 = pneg %p108
        %p354 = pneg %p105
        %p355 = pneg %p129
        %p356 = pneg %p126
        %p357 = pneg %p150
        %p358 = pneg %p147
        %p359 = pneg %p176
        %p360 = pneg %p173
        %s361 = sand.u32 %s163, 1
        %s362 = scalar_lea.sflag [#allocation8], %s361
        %s363 = sand.u32 %s163, 1
        %s364 = smul.addr %s363, 16
        %s365 = scalar_lea.vmem [#allocation15], %s364
        %s366 = smul.u32 8, %s31
        %s367 = smul.u32 2, %s30
        %s368 = smul.u32 2, %s30
        %s369 = smul.u32 2, %s30
        %p371 = scmp.eq.s32.totalorder %s31, 0
        // Predicated region
        $region61: #{hierarchical_forward.2} parent=39 // pred_check
          %p372 = pneg %p371
        $region62: #{hierarchical_forward.2} parent=39 // pred_check_branch
          %374 = sbr.rel (%p372) target = $region64
        $region63: #{hierarchical_forward.2} parent=39 // pred_region
          %vm375 = vcmask 261120
          %376 = vst.msk [vmem:[#allocation2] sm:$0xff] %vm375, 0.0
          %377 = vst.msk [vmem:[#allocation2 + $0x8] sm:$0xff] %vm375, 0.0
          %378 = vst.msk [vmem:[#allocation3] sm:$0xff] %vm375, 0.0
          %379 = vst.msk [vmem:[#allocation3 + $0x8] sm:$0xff] %vm375, 0.0
          %380 = vst.msk [vmem:[#allocation4] sm:$0xff] %vm375, 0.0
          %381 = vst.msk [vmem:[#allocation4 + $0x8] sm:$0xff] %vm375, 0.0
        $region64: #{hierarchical_forward.2} parent=39 // pred_fallthru
          _
        %v382 = vld [vmem:[%s313] sm:$0xf]
        %v383 = vld [vmem:[%s313 + $0x4] sm:$0xf]
        %v384 = vld [vmem:[%s313 + $0x8] sm:$0xf]
        %v385 = vld [vmem:[%s313 + $0xc] sm:$0xf]
        %v386 = vld [vmem:[%s313 + $0x10] sm:$0xf]
        %v387 = vld [vmem:[%s313 + $0x14] sm:$0xf]
        %v388 = vld [vmem:[%s313 + $0x18] sm:$0xf]
        %v389 = vld [vmem:[%s313 + $0x1c] sm:$0xf]
        %v390 = vld [vmem:[%s313 + $0x20] sm:$0xf]
        %v391 = vld [vmem:[%s313 + $0x24] sm:$0xf]
        %v392 = vld [vmem:[%s313 + $0x28] sm:$0xf]
        %v393 = vld [vmem:[%s313 + $0x2c] sm:$0xf]
        %v394 = vld [vmem:[%s313 + $0x30] sm:$0xf]
        %v395 = vld [vmem:[%s313 + $0x34] sm:$0xf]
        %v396 = vld [vmem:[%s313 + $0x38] sm:$0xf]
        %v397 = vld [vmem:[%s313 + $0x3c] sm:$0xf]
        %v398 = vld [vmem:[#allocation11] sm:$0xf]
        %v399 = vld [vmem:[#allocation11 + $0x4] sm:$0xf]
        %v400 = vld [vmem:[#allocation14] sm:$0x1]
        %v402 = vlaneseq
        %v403 = vshrl.u32 %v402, 7
        %v404 = vsub.s32 0, %v403
        %v405 = vrot.slane %v400, %v404
        %v423 = vunpack.c.l.b16 %v382
        %v424 = vunpack.c.l.b16 %v383
        %v425 = vunpack.c.l.b16 %v384
        %v426 = vunpack.c.l.b16 %v385
        %v427 = vunpack.c.l.b16 %v386
        %v428 = vunpack.c.l.b16 %v387
        %v429 = vunpack.c.l.b16 %v388
        %v430 = vunpack.c.l.b16 %v389
        %v431 = vunpack.c.l.b16 %v390
        %v432 = vunpack.c.l.b16 %v391
        %v433 = vunpack.c.l.b16 %v392
        %v434 = vunpack.c.l.b16 %v393
        %v435 = vunpack.c.l.b16 %v394
        %v436 = vunpack.c.l.b16 %v395
        %v437 = vunpack.c.l.b16 %v396
        %v438 = vunpack.c.l.b16 %v397
        %v439 = vpack.c.b16 %v424, %v423
        %v440 = vpack.c.b16 %v426, %v425
        %v441 = vpack.c.b16 %v428, %v427
        %v442 = vpack.c.b16 %v430, %v429
        %v443 = vpack.c.b16 %v432, %v431
        %v444 = vpack.c.b16 %v434, %v433
        %v445 = vpack.c.b16 %v436, %v435
        %v446 = vpack.c.b16 %v438, %v437
        %v449 = vunpack.c.l.b16 %v398
        %v450 = vunpack.c.l.b16 %v399
        %v451 = vpack.c.b16 %v450, %v449
        %vm453 = vcmask 130048
        %v455 = vsel %vm453, %v439, 0
        %v458 = vsel %vm453, %v440, 0
        %v461 = vsel %vm453, %v441, 0
        %v464 = vsel %vm453, %v442, 0
        %v467 = vsel %vm453, %v443, 0
        %v470 = vsel %vm453, %v444, 0
        %v473 = vsel %vm453, %v445, 0
        %v476 = vsel %vm453, %v446, 0
        %478 = vmatprep.subr.bf16.mxu0 0
        %479 = vmatpush1.bf16.msra.mxu0 %v451
        %480 = vmatprep.subr.bf16.mxu0 0
        %481 = vmatpush1.bf16.msra.mxu0 0
        %482 = vmatprep.subr.bf16.mxu0 0
        %483 = vmatpush1.bf16.msra.mxu0 0
        %484 = vmatprep.subr.bf16.mxu0 0
        %485 = vmatpush1.bf16.msra.mxu0 0
        %486 = vmatprep.subr.bf16.mxu0 0
        %487 = vmatpush1.bf16.msra.mxu0 0
        %488 = vmatprep.subr.bf16.mxu0 0
        %489 = vmatpush1.bf16.msra.mxu0 0
        %490 = vmatprep.subr.bf16.mxu0 0
        %491 = vmatpush1.bf16.msra.mxu0 0
        %492 = vmatprep.subr.bf16.mxu0 0
        %493 = vmatpush1.bf16.msra.mxu0 0
        %494 = vmatprep.subr.bf16.mxu0 0
        %495 = vmatpush1.bf16.msra.mxu0 0
        %496 = vmatprep.subr.bf16.mxu0 0
        %497 = vmatpush1.bf16.msra.mxu0 0
        %498 = vmatprep.subr.bf16.mxu0 0
        %499 = vmatpush1.bf16.msra.mxu0 0
        %500 = vmatprep.subr.bf16.mxu0 0
        %501 = vmatpush1.bf16.msra.mxu0 0
        %502 = vmatprep.subr.bf16.mxu0 0
        %503 = vmatpush1.bf16.msra.mxu0 0
        %504 = vmatprep.subr.bf16.mxu0 0
        %505 = vmatpush1.bf16.msra.mxu0 0
        %506 = vmatprep.subr.bf16.mxu0 0
        %507 = vmatpush1.bf16.msra.mxu0 0
        %508 = vmatprep.subr.bf16.mxu0 0
        %509 = vmatpush1.bf16.msra.mxu0 0
        %510 = vmatprep.mubr.bf16.mxu0 0
        %511 = vmatmul.mubr.bf16.gmra.mrb[0].mxu0 %v455
        %v512 = vpop.f32.mrb[0].mxu0
        %v513 = vadd.f32 %v405, %v512
        %v514 = vpop.f32.mrb[0].mxu0
        %v515 = vpop.f32.mrb[0].mxu0
        %v516 = vadd.f32 %v405, %v515
        %v517 = vpop.f32.mrb[0].mxu0
        %518 = vmatprep.mubr.bf16.mxu0 0
        %519 = vmatmul.mubr.bf16.gmra.mrb[0].mxu0 %v458
        %v520 = vpop.f32.mrb[0].mxu0
        %v521 = vadd.f32 %v405, %v520
        %v522 = vpop.f32.mrb[0].mxu0
        %v523 = vpop.f32.mrb[0].mxu0
        %v524 = vadd.f32 %v405, %v523
        %v525 = vpop.f32.mrb[0].mxu0
        %526 = vmatprep.mubr.bf16.mxu0 0
        %527 = vmatmul.mubr.bf16.gmra.mrb[0].mxu0 %v461
        %v528 = vpop.f32.mrb[0].mxu0
        %v529 = vadd.f32 %v405, %v528
        %v530 = vpop.f32.mrb[0].mxu0
        %v531 = vpop.f32.mrb[0].mxu0
        %v532 = vadd.f32 %v405, %v531
        %v533 = vpop.f32.mrb[0].mxu0
        %534 = vmatprep.mubr.bf16.mxu0 0
        %535 = vmatmul.mubr.bf16.gmra.mrb[0].mxu0 %v464
        %v536 = vpop.f32.mrb[0].mxu0
        %v537 = vadd.f32 %v405, %v536
        %v538 = vpop.f32.mrb[0].mxu0
        %v539 = vpop.f32.mrb[0].mxu0
        %v540 = vadd.f32 %v405, %v539
        %v541 = vpop.f32.mrb[0].mxu0
        %542 = vmatprep.mubr.bf16.mxu0 0
        %543 = vmatmul.mubr.bf16.gmra.mrb[0].mxu0 %v467
        %v544 = vpop.f32.mrb[0].mxu0
        %v545 = vadd.f32 %v405, %v544
        %v546 = vpop.f32.mrb[0].mxu0
        %v547 = vpop.f32.mrb[0].mxu0
        %v548 = vadd.f32 %v405, %v547
        %v549 = vpop.f32.mrb[0].mxu0
        %550 = vmatprep.mubr.bf16.mxu0 0
        %551 = vmatmul.mubr.bf16.gmra.mrb[0].mxu0 %v470
        %v552 = vpop.f32.mrb[0].mxu0
        %v553 = vadd.f32 %v405, %v552
        %v554 = vpop.f32.mrb[0].mxu0
        %v555 = vpop.f32.mrb[0].mxu0
        %v556 = vadd.f32 %v405, %v555
        %v557 = vpop.f32.mrb[0].mxu0
        %558 = vmatprep.mubr.bf16.mxu0 0
        %559 = vmatmul.mubr.bf16.gmra.mrb[0].mxu0 %v473
        %v560 = vpop.f32.mrb[0].mxu0
        %v561 = vadd.f32 %v405, %v560
        %v562 = vpop.f32.mrb[0].mxu0
        %v563 = vpop.f32.mrb[0].mxu0
        %v564 = vadd.f32 %v405, %v563
        %v565 = vpop.f32.mrb[0].mxu0
        %566 = vmatprep.mubr.bf16.mxu0 0
        %567 = vmatmul.mubr.bf16.gmra.mrb[0].mxu0 %v476
        %v568 = vpop.f32.mrb[0].mxu0
        %v569 = vadd.f32 %v405, %v568
        %v570 = vpop.f32.mrb[0].mxu0
        %v571 = vpop.f32.mrb[0].mxu0
        %v572 = vadd.f32 %v405, %v571
        %v573 = vpop.f32.mrb[0].mxu0
        %574 = vdwg.mxu0
        %575 = vst [vmem:[#allocation5] sm:$0xff] %v513
        %576 = vst [vmem:[#allocation5 + $0x8] sm:$0xff] %v516
        %577 = vst [vmem:[#allocation5 + $0x10] sm:$0xff] %v521
        %578 = vst [vmem:[#allocation5 + $0x18] sm:$0xff] %v524
        %579 = vst [vmem:[#allocation5 + $0x20] sm:$0xff] %v529
        %580 = vst [vmem:[#allocation5 + $0x28] sm:$0xff] %v532
        %581 = vst [vmem:[#allocation5 + $0x30] sm:$0xff] %v537
        %582 = vst [vmem:[#allocation5 + $0x38] sm:$0xff] %v540
        %583 = vst [vmem:[#allocation5 + $0x40] sm:$0xff] %v545
        %584 = vst [vmem:[#allocation5 + $0x48] sm:$0xff] %v548
        %585 = vst [vmem:[#allocation5 + $0x50] sm:$0xff] %v553
        %586 = vst [vmem:[#allocation5 + $0x58] sm:$0xff] %v556
        %587 = vst [vmem:[#allocation5 + $0x60] sm:$0xff] %v561
        %588 = vst [vmem:[#allocation5 + $0x68] sm:$0xff] %v564
        %589 = vst [vmem:[#allocation5 + $0x70] sm:$0xff] %v569
        %590 = vst [vmem:[#allocation5 + $0x78] sm:$0xff] %v572
        %v591 = vld [vmem:[%s322] sm:$0xff]
        %v592 = vld [vmem:[%s322 + $0x8] sm:$0xff]
        %v593 = vld [vmem:[#allocation12] sm:$0xf]
        %v594 = vld [vmem:[#allocation12 + $0x4] sm:$0xf]
        %v595 = vld [vmem:[#allocation12 + $0x8] sm:$0xf]
        %v596 = vld [vmem:[#allocation12 + $0xc] sm:$0xf]
        %s597 = smul.u32 %s31, 8
        %v598 = vld [vmem:[#allocation2] sm:$0xff]
        %v599 = vld [vmem:[#allocation2 + $0x8] sm:$0xff]
        %v600 = vld [vmem:[#allocation3] sm:$0xff]
        %v601 = vld [vmem:[#allocation3 + $0x8] sm:$0xff]
        %v602 = vld [vmem:[#allocation4] sm:$0xff]
        %v603 = vld [vmem:[#allocation4 + $0x8] sm:$0xff]
        %v604 = vld [vmem:[#allocation5] sm:$0xff]
        %v605 = vld [vmem:[#allocation5 + $0x8] sm:$0xff]
        %v606 = vpack.c.bf16 %v599, %v598
        %v611 = vunpack.c.l.b16 %v593
        %v612 = vunpack.c.l.b16 %v594
        %v613 = vunpack.c.l.b16 %v595
        %v614 = vunpack.c.l.b16 %v596
        %v615 = vpack.c.b16 %v612, %v611
        %v616 = vpack.c.b16 %v614, %v613
        %vm619 = vcmask 261120
        %v621 = vsel %vm619, %v606, 0
        %623 = vmatprep.subr.bf16.mxu0 0
        %624 = vmatpush1.bf16.msra.mxu0 %v615
        %625 = vmatprep.subr.bf16.mxu0 0
        %626 = vmatpush1.bf16.msra.mxu0 %v616
        %627 = vmatprep.subr.bf16.mxu0 0
        %628 = vmatpush1.bf16.msra.mxu0 0
        %629 = vmatprep.subr.bf16.mxu0 0
        %630 = vmatpush1.bf16.msra.mxu0 0
        %631 = vmatprep.subr.bf16.mxu0 0
        %632 = vmatpush1.bf16.msra.mxu0 0
        %633 = vmatprep.subr.bf16.mxu0 0
        %634 = vmatpush1.bf16.msra.mxu0 0
        %635 = vmatprep.subr.bf16.mxu0 0
        %636 = vmatpush1.bf16.msra.mxu0 0
        %637 = vmatprep.subr.bf16.mxu0 0
        %638 = vmatpush1.bf16.msra.mxu0 0
        %639 = vmatprep.subr.bf16.mxu0 0
        %640 = vmatpush1.bf16.msra.mxu0 0
        %641 = vmatprep.subr.bf16.mxu0 0
        %642 = vmatpush1.bf16.msra.mxu0 0
        %643 = vmatprep.subr.bf16.mxu0 0
        %644 = vmatpush1.bf16.msra.mxu0 0
        %645 = vmatprep.subr.bf16.mxu0 0
        %646 = vmatpush1.bf16.msra.mxu0 0
        %647 = vmatprep.subr.bf16.mxu0 0
        %648 = vmatpush1.bf16.msra.mxu0 0
        %649 = vmatprep.subr.bf16.mxu0 0
        %650 = vmatpush1.bf16.msra.mxu0 0
        %651 = vmatprep.subr.bf16.mxu0 0
        %652 = vmatpush1.bf16.msra.mxu0 0
        %653 = vmatprep.subr.bf16.mxu0 0
        %654 = vmatpush1.bf16.msra.mxu0 0
        %655 = vmatprep.mubr.bf16.mxu0 0
        %656 = vmatmul.mubr.bf16.gmra.mrb[0].mxu0 %v621
        %v657 = vpop.f32.mrb[0].mxu0
        %v658 = vadd.f32 0.0, %v657
        %v659 = vpop.f32.mrb[0].mxu0
        %v660 = vpop.f32.mrb[0].mxu0
        %v661 = vadd.f32 0.0, %v660
        %v662 = vpop.f32.mrb[0].mxu0
        %663 = vdwg.mxu0
        %v664 = vadd.f32 %v604, %v658
        %v665 = vadd.f32 %v605, %v661
        %v666 = vxor.u32 %v664, 2147483648
        %v667 = vxor.u32 %v665, 2147483648
        %v668 = vmul.f32 %v666, 1.442695
        %v669 = vpow.pop %v668
        %v670 = vmul.f32 %v667, 1.442695
        %v671 = vpow.pop %v670
        %v672 = vadd.f32 %v669, 1.0
        %v673 = vadd.f32 %v671, 1.0
        %v674 = vrcp.pop %v672
        %v675 = vmul.f32 1.0, %v674
        %v676 = vrcp.pop %v673
        %v677 = vmul.f32 1.0, %v676
        %v678 = vtanh.pop %v664
        %v679 = vtanh.pop %v665
        %682 = vrot.lane.b32.xlu0 %v600, 32
        %v683 = vpop.permute.xlu0 %682
        %684 = vrot.lane.b32.xlu0 %v601, 32
        %v685 = vpop.permute.xlu0 %684
        %v688 = vmul.f32 %v675, %v683
        %v689 = vmul.f32 %v677, %v685
        %692 = vrot.lane.b32.xlu0 %v678, 32
        %v693 = vpop.permute.xlu0 %692
        %694 = vrot.lane.b32.xlu0 %v679, 32
        %v695 = vpop.permute.xlu0 %694
        %v698 = vmul.f32 %v675, %v693
        %v699 = vmul.f32 %v677, %v695
        %702 = vrot.lane.b32.xlu0 %v698, 32
        %v703 = vpop.permute.xlu0 %702
        %704 = vrot.lane.b32.xlu0 %v699, 32
        %v705 = vpop.permute.xlu0 %704
        %v708 = vadd.f32 %v688, %v703
        %v709 = vadd.f32 %v689, %v705
        %v710 = vtanh.pop %v708
        %v711 = vtanh.pop %v709
        %714 = vrot.lane.b32.xlu0 %v710, 32
        %v715 = vpop.permute.xlu0 %714
        %716 = vrot.lane.b32.xlu0 %v711, 32
        %v717 = vpop.permute.xlu0 %716
        %v720 = vmul.f32 %v675, %v715
        %v721 = vmul.f32 %v677, %v717
        %s722 = sadd.s32 %s597, 1
        %v723 = vstv %s722
        %vm724 = vcmp.eq.s32.totalorder %v591, %v723
        %vm725 = vcmp.eq.s32.totalorder %v592, %v723
        %v726 = vsel %vm724, 1, 0
        %v727 = vsel %vm725, 1, 0
        %728 = vset.pattern.permute.xlu0 0
        %729 = vperm.xlu0 %728, %v726
        %v730 = vpop.permute.xlu0 %729
        %731 = vset.pattern.permute.xlu0 0
        %732 = vperm.xlu0 %731, %v727
        %v733 = vpop.permute.xlu0 %732
        %vm734 = vcmp.eq.s32.totalorder %v730, 1
        %vm735 = vcmp.eq.s32.totalorder %v733, 1
        %738 = vrot.lane.b32.xlu0 %v602, 64
        %v739 = vpop.permute.xlu0 %738
        %740 = vrot.lane.b32.xlu0 %v603, 64
        %v741 = vpop.permute.xlu0 %740
        %v744 = vsel %vm734, %v720, %v739
        %v745 = vsel %vm735, %v721, %v741
        %s746 = scalar_lea.vmem [#allocation5], 16
        %v747 = vld [vmem:[%s746] sm:$0xff]
        %v748 = vld [vmem:[%s746 + $0x8] sm:$0xff]
        %v749 = vpack.c.bf16 %v721, %v720
        %751 = vrot.lane.b32.xlu0 %v749, 64
        %v752 = vpop.permute.xlu0 %751
        %v754 = vsel %vm619, %v752, 0
        %756 = vmatprep.subr.bf16.mxu0 0
        %757 = vmatpush1.bf16.msra.mxu0 %v615
        %758 = vmatprep.subr.bf16.mxu0 0
        %759 = vmatpush1.bf16.msra.mxu0 %v616
        %760 = vmatprep.subr.bf16.mxu0 0
        %761 = vmatpush1.bf16.msra.mxu0 0
        %762 = vmatprep.subr.bf16.mxu0 0
        %763 = vmatpush1.bf16.msra.mxu0 0
        %764 = vmatprep.subr.bf16.mxu0 0
        %765 = vmatpush1.bf16.msra.mxu0 0
        %766 = vmatprep.subr.bf16.mxu0 0
        %767 = vmatpush1.bf16.msra.mxu0 0
        %768 = vmatprep.subr.bf16.mxu0 0
        %769 = vmatpush1.bf16.msra.mxu0 0
        %770 = vmatprep.subr.bf16.mxu0 0
        %771 = vmatpush1.bf16.msra.mxu0 0
        %772 = vmatprep.subr.bf16.mxu0 0
        %773 = vmatpush1.bf16.msra.mxu0 0
        %774 = vmatprep.subr.bf16.mxu0 0
        %775 = vmatpush1.bf16.msra.mxu0 0
        %776 = vmatprep.subr.bf16.mxu0 0
        %777 = vmatpush1.bf16.msra.mxu0 0
        %778 = vmatprep.subr.bf16.mxu0 0
        %779 = vmatpush1.bf16.msra.mxu0 0
        %780 = vmatprep.subr.bf16.mxu0 0
        %781 = vmatpush1.bf16.msra.mxu0 0
        %782 = vmatprep.subr.bf16.mxu0 0
        %783 = vmatpush1.bf16.msra.mxu0 0
        %784 = vmatprep.subr.bf16.mxu0 0
        %785 = vmatpush1.bf16.msra.mxu0 0
        %786 = vmatprep.subr.bf16.mxu0 0
        %787 = vmatpush1.bf16.msra.mxu0 0
        %788 = vmatprep.mubr.bf16.mxu0 0
        %789 = vmatmul.mubr.bf16.gmra.mrb[0].mxu0 %v754
        %v790 = vpop.f32.mrb[0].mxu0
        %v791 = vadd.f32 0.0, %v790
        %v792 = vpop.f32.mrb[0].mxu0
        %v793 = vpop.f32.mrb[0].mxu0
        %v794 = vadd.f32 0.0, %v793
        %v795 = vpop.f32.mrb[0].mxu0
        %796 = vdwg.mxu0
        %v797 = vadd.f32 %v747, %v791
        %v798 = vadd.f32 %v748, %v794
        %v799 = vxor.u32 %v797, 2147483648
        %v800 = vxor.u32 %v798, 2147483648
        %v801 = vmul.f32 %v799, 1.442695
        %v802 = vpow.pop %v801
        %v803 = vmul.f32 %v800, 1.442695
        %v804 = vpow.pop %v803
        %v805 = vadd.f32 %v802, 1.0
        %v806 = vadd.f32 %v804, 1.0
        %v807 = vrcp.pop %v805
        %v808 = vmul.f32 1.0, %v807
        %v809 = vrcp.pop %v806
        %v810 = vmul.f32 1.0, %v809
        %v811 = vtanh.pop %v797
        %v812 = vtanh.pop %v798
        %v813 = vmul.f32 %v808, %v708
        %v814 = vmul.f32 %v810, %v709
        %817 = vrot.lane.b32.xlu0 %v811, 32
        %v818 = vpop.permute.xlu0 %817
        %819 = vrot.lane.b32.xlu0 %v812, 32
        %v820 = vpop.permute.xlu0 %819
        %v823 = vmul.f32 %v808, %v818
        %v824 = vmul.f32 %v810, %v820
        %827 = vrot.lane.b32.xlu0 %v823, 32
        %v828 = vpop.permute.xlu0 %827
        %829 = vrot.lane.b32.xlu0 %v824, 32
        %v830 = vpop.permute.xlu0 %829
        %v833 = vadd.f32 %v813, %v828
        %v834 = vadd.f32 %v814, %v830
        %v835 = vtanh.pop %v833
        %v836 = vtanh.pop %v834
        %839 = vrot.lane.b32.xlu0 %v835, 32
        %v840 = vpop.permute.xlu0 %839
        %841 = vrot.lane.b32.xlu0 %v836, 32
        %v842 = vpop.permute.xlu0 %841
        %v845 = vmul.f32 %v808, %v840
        %v846 = vmul.f32 %v810, %v842
        %s847 = sadd.s32 %s597, 2
        %v848 = vstv %s847
        %vm849 = vcmp.eq.s32.totalorder %v591, %v848
        %vm850 = vcmp.eq.s32.totalorder %v592, %v848
        %v851 = vsel %vm849, 1, 0
        %v852 = vsel %vm850, 1, 0
        %853 = vset.pattern.permute.xlu0 0
        %854 = vperm.xlu0 %853, %v851
        %v855 = vpop.permute.xlu0 %854
        %856 = vset.pattern.permute.xlu0 0
        %857 = vperm.xlu0 %856, %v852
        %v858 = vpop.permute.xlu0 %857
        %vm859 = vcmp.eq.s32.totalorder %v855, 1
        %vm860 = vcmp.eq.s32.totalorder %v858, 1
        %v861 = vsel %vm859, %v845, %v744
        %v862 = vsel %vm860, %v846, %v745
        %s863 = scalar_lea.vmem [#allocation5], 32
        %v864 = vld [vmem:[%s863] sm:$0xff]
        %v865 = vld [vmem:[%s863 + $0x8] sm:$0xff]
        %v866 = vpack.c.bf16 %v846, %v845
        %868 = vrot.lane.b32.xlu0 %v866, 64
        %v869 = vpop.permute.xlu0 %868
        %v871 = vsel %vm619, %v869, 0
        %873 = vmatprep.subr.bf16.mxu0 0
        %874 = vmatpush1.bf16.msra.mxu0 %v615
        %875 = vmatprep.subr.bf16.mxu0 0
        %876 = vmatpush1.bf16.msra.mxu0 %v616
        %877 = vmatprep.subr.bf16.mxu0 0
        %878 = vmatpush1.bf16.msra.mxu0 0
        %879 = vmatprep.subr.bf16.mxu0 0
        %880 = vmatpush1.bf16.msra.mxu0 0
        %881 = vmatprep.subr.bf16.mxu0 0
        %882 = vmatpush1.bf16.msra.mxu0 0
        %883 = vmatprep.subr.bf16.mxu0 0
        %884 = vmatpush1.bf16.msra.mxu0 0
        %885 = vmatprep.subr.bf16.mxu0 0
        %886 = vmatpush1.bf16.msra.mxu0 0
        %887 = vmatprep.subr.bf16.mxu0 0
        %888 = vmatpush1.bf16.msra.mxu0 0
        %889 = vmatprep.subr.bf16.mxu0 0
        %890 = vmatpush1.bf16.msra.mxu0 0
        %891 = vmatprep.subr.bf16.mxu0 0
        %892 = vmatpush1.bf16.msra.mxu0 0
        %893 = vmatprep.subr.bf16.mxu0 0
        %894 = vmatpush1.bf16.msra.mxu0 0
        %895 = vmatprep.subr.bf16.mxu0 0
        %896 = vmatpush1.bf16.msra.mxu0 0
        %897 = vmatprep.subr.bf16.mxu0 0
        %898 = vmatpush1.bf16.msra.mxu0 0
        %899 = vmatprep.subr.bf16.mxu0 0
        %900 = vmatpush1.bf16.msra.mxu0 0
        %901 = vmatprep.subr.bf16.mxu0 0
        %902 = vmatpush1.bf16.msra.mxu0 0
        %903 = vmatprep.subr.bf16.mxu0 0
        %904 = vmatpush1.bf16.msra.mxu0 0
        %905 = vmatprep.mubr.bf16.mxu0 0
        %906 = vmatmul.mubr.bf16.gmra.mrb[0].mxu0 %v871
        %v907 = vpop.f32.mrb[0].mxu0
        %v908 = vadd.f32 0.0, %v907
        %v909 = vpop.f32.mrb[0].mxu0
        %v910 = vpop.f32.mrb[0].mxu0
        %v911 = vadd.f32 0.0, %v910
        %v912 = vpop.f32.mrb[0].mxu0
        %913 = vdwg.mxu0
        %v914 = vadd.f32 %v864, %v908
        %v915 = vadd.f32 %v865, %v911
        %v916 = vxor.u32 %v914, 2147483648
        %v917 = vxor.u32 %v915, 2147483648
        %v918 = vmul.f32 %v916, 1.442695
        %v919 = vpow.pop %v918
        %v920 = vmul.f32 %v917, 1.442695
        %v921 = vpow.pop %v920
        %v922 = vadd.f32 %v919, 1.0
        %v923 = vadd.f32 %v921, 1.0
        %v924 = vrcp.pop %v922
        %v925 = vmul.f32 1.0, %v924
        %v926 = vrcp.pop %v923
        %v927 = vmul.f32 1.0, %v926
        %v928 = vtanh.pop %v914
        %v929 = vtanh.pop %v915
        %v930 = vmul.f32 %v925, %v833
        %v931 = vmul.f32 %v927, %v834
        %934 = vrot.lane.b32.xlu0 %v928, 32
        %v935 = vpop.permute.xlu0 %934
        %936 = vrot.lane.b32.xlu0 %v929, 32
        %v937 = vpop.permute.xlu0 %936
        %v940 = vmul.f32 %v925, %v935
        %v941 = vmul.f32 %v927, %v937
        %944 = vrot.lane.b32.xlu0 %v940, 32
        %v945 = vpop.permute.xlu0 %944
        %946 = vrot.lane.b32.xlu0 %v941, 32
        %v947 = vpop.permute.xlu0 %946
        %v950 = vadd.f32 %v930, %v945
        %v951 = vadd.f32 %v931, %v947
        %v952 = vtanh.pop %v950
        %v953 = vtanh.pop %v951
        %956 = vrot.lane.b32.xlu0 %v952, 32
        %v957 = vpop.permute.xlu0 %956
        %958 = vrot.lane.b32.xlu0 %v953, 32
        %v959 = vpop.permute.xlu0 %958
        %v962 = vmul.f32 %v925, %v957
        %v963 = vmul.f32 %v927, %v959
        %s964 = sadd.s32 %s597, 3
        %v965 = vstv %s964
        %vm966 = vcmp.eq.s32.totalorder %v591, %v965
        %vm967 = vcmp.eq.s32.totalorder %v592, %v965
        %v968 = vsel %vm966, 1, 0
        %v969 = vsel %vm967, 1, 0
        %970 = vset.pattern.permute.xlu0 0
        %971 = vperm.xlu0 %970, %v968
        %v972 = vpop.permute.xlu0 %971
        %973 = vset.pattern.permute.xlu0 0
        %974 = vperm.xlu0 %973, %v969
        %v975 = vpop.permute.xlu0 %974
        %vm976 = vcmp.eq.s32.totalorder %v972, 1
        %vm977 = vcmp.eq.s32.totalorder %v975, 1
        %v978 = vsel %vm976, %v962, %v861
        %v979 = vsel %vm977, %v963, %v862
        %s980 = scalar_lea.vmem [#allocation5], 48
        %v981 = vld [vmem:[%s980] sm:$0xff]
        %v982 = vld [vmem:[%s980 + $0x8] sm:$0xff]
        %v983 = vpack.c.bf16 %v963, %v962
        %985 = vrot.lane.b32.xlu0 %v983, 64
        %v986 = vpop.permute.xlu0 %985
        %v988 = vsel %vm619, %v986, 0
        %990 = vmatprep.subr.bf16.mxu0 0
        %991 = vmatpush1.bf16.msra.mxu0 %v615
        %992 = vmatprep.subr.bf16.mxu0 0
        %993 = vmatpush1.bf16.msra.mxu0 %v616
        %994 = vmatprep.subr.bf16.mxu0 0
        %995 = vmatpush1.bf16.msra.mxu0 0
        %996 = vmatprep.subr.bf16.mxu0 0
        %997 = vmatpush1.bf16.msra.mxu0 0
        %998 = vmatprep.subr.bf16.mxu0 0
        %999 = vmatpush1.bf16.msra.mxu0 0
        %1000 = vmatprep.subr.bf16.mxu0 0
        %1001 = vmatpush1.bf16.msra.mxu0 0
        %1002 = vmatprep.subr.bf16.mxu0 0
        %1003 = vmatpush1.bf16.msra.mxu0 0
        %1004 = vmatprep.subr.bf16.mxu0 0
        %1005 = vmatpush1.bf16.msra.mxu0 0
        %1006 = vmatprep.subr.bf16.mxu0 0
        %1007 = vmatpush1.bf16.msra.mxu0 0
        %1008 = vmatprep.subr.bf16.mxu0 0
        %1009 = vmatpush1.bf16.msra.mxu0 0
        %1010 = vmatprep.subr.bf16.mxu0 0
        %1011 = vmatpush1.bf16.msra.mxu0 0
        %1012 = vmatprep.subr.bf16.mxu0 0
        %1013 = vmatpush1.bf16.msra.mxu0 0
        %1014 = vmatprep.subr.bf16.mxu0 0
        %1015 = vmatpush1.bf16.msra.mxu0 0
        %1016 = vmatprep.subr.bf16.mxu0 0
        %1017 = vmatpush1.bf16.msra.mxu0 0
        %1018 = vmatprep.subr.bf16.mxu0 0
        %1019 = vmatpush1.bf16.msra.mxu0 0
        %1020 = vmatprep.subr.bf16.mxu0 0
        %1021 = vmatpush1.bf16.msra.mxu0 0
        %1022 = vmatprep.mubr.bf16.mxu0 0
        %1023 = vmatmul.mubr.bf16.gmra.mrb[0].mxu0 %v988
        %v1024 = vpop.f32.mrb[0].mxu0
        %v1025 = vadd.f32 0.0, %v1024
        %v1026 = vpop.f32.mrb[0].mxu0
        %v1027 = vpop.f32.mrb[0].mxu0
        %v1028 = vadd.f32 0.0, %v1027
        %v1029 = vpop.f32.mrb[0].mxu0
        %1030 = vdwg.mxu0
        %v1031 = vadd.f32 %v981, %v1025
        %v1032 = vadd.f32 %v982, %v1028
        %v1033 = vxor.u32 %v1031, 2147483648
        %v1034 = vxor.u32 %v1032, 2147483648
        %v1035 = vmul.f32 %v1033, 1.442695
        %v1036 = vpow.pop %v1035
        %v1037 = vmul.f32 %v1034, 1.442695
        %v1038 = vpow.pop %v1037
        %v1039 = vadd.f32 %v1036, 1.0
        %v1040 = vadd.f32 %v1038, 1.0
        %v1041 = vrcp.pop %v1039
        %v1042 = vmul.f32 1.0, %v1041
        %v1043 = vrcp.pop %v1040
        %v1044 = vmul.f32 1.0, %v1043
        %v1045 = vtanh.pop %v1031
        %v1046 = vtanh.pop %v1032
        %v1047 = vmul.f32 %v1042, %v950
        %v1048 = vmul.f32 %v1044, %v951
        %1051 = vrot.lane.b32.xlu0 %v1045, 32
        %v1052 = vpop.permute.xlu0 %1051
        %1053 = vrot.lane.b32.xlu0 %v1046, 32
        %v1054 = vpop.permute.xlu0 %1053
        %v1057 = vmul.f32 %v1042, %v1052
        %v1058 = vmul.f32 %v1044, %v1054
        %1061 = vrot.lane.b32.xlu0 %v1057, 32
        %v1062 = vpop.permute.xlu0 %1061
        %1063 = vrot.lane.b32.xlu0 %v1058, 32
        %v1064 = vpop.permute.xlu0 %1063
        %v1067 = vadd.f32 %v1047, %v1062
        %v1068 = vadd.f32 %v1048, %v1064
        %v1069 = vtanh.pop %v1067
        %v1070 = vtanh.pop %v1068
        %1073 = vrot.lane.b32.xlu0 %v1069, 32
        %v1074 = vpop.permute.xlu0 %1073
        %1075 = vrot.lane.b32.xlu0 %v1070, 32
        %v1076 = vpop.permute.xlu0 %1075
        %v1079 = vmul.f32 %v1042, %v1074
        %v1080 = vmul.f32 %v1044, %v1076
        %s1081 = sadd.s32 %s597, 4
        %v1082 = vstv %s1081
        %vm1083 = vcmp.eq.s32.totalorder %v591, %v1082
        %vm1084 = vcmp.eq.s32.totalorder %v592, %v1082
        %v1085 = vsel %vm1083, 1, 0
        %v1086 = vsel %vm1084, 1, 0
        %1087 = vset.pattern.permute.xlu0 0
        %1088 = vperm.xlu0 %1087, %v1085
        %v1089 = vpop.permute.xlu0 %1088
        %1090 = vset.pattern.permute.xlu0 0
        %1091 = vperm.xlu0 %1090, %v1086
        %v1092 = vpop.permute.xlu0 %1091
        %vm1093 = vcmp.eq.s32.totalorder %v1089, 1
        %vm1094 = vcmp.eq.s32.totalorder %v1092, 1
        %v1095 = vsel %vm1093, %v1079, %v978
        %v1096 = vsel %vm1094, %v1080, %v979
        %s1097 = scalar_lea.vmem [#allocation5], 64
        %v1098 = vld [vmem:[%s1097] sm:$0xff]
        %v1099 = vld [vmem:[%s1097 + $0x8] sm:$0xff]
        %v1100 = vpack.c.bf16 %v1080, %v1079
        %1102 = vrot.lane.b32.xlu0 %v1100, 64
        %v1103 = vpop.permute.xlu0 %1102
        %v1105 = vsel %vm619, %v1103, 0
        %1107 = vmatprep.subr.bf16.mxu0 0
        %1108 = vmatpush1.bf16.msra.mxu0 %v615
        %1109 = vmatprep.subr.bf16.mxu0 0
        %1110 = vmatpush1.bf16.msra.mxu0 %v616
        %1111 = vmatprep.subr.bf16.mxu0 0
        %1112 = vmatpush1.bf16.msra.mxu0 0
        %1113 = vmatprep.subr.bf16.mxu0 0
        %1114 = vmatpush1.bf16.msra.mxu0 0
        %1115 = vmatprep.subr.bf16.mxu0 0
        %1116 = vmatpush1.bf16.msra.mxu0 0
        %1117 = vmatprep.subr.bf16.mxu0 0
        %1118 = vmatpush1.bf16.msra.mxu0 0
        %1119 = vmatprep.subr.bf16.mxu0 0
        %1120 = vmatpush1.bf16.msra.mxu0 0
        %1121 = vmatprep.subr.bf16.mxu0 0
        %1122 = vmatpush1.bf16.msra.mxu0 0
        %1123 = vmatprep.subr.bf16.mxu0 0
        %1124 = vmatpush1.bf16.msra.mxu0 0
        %1125 = vmatprep.subr.bf16.mxu0 0
        %1126 = vmatpush1.bf16.msra.mxu0 0
        %1127 = vmatprep.subr.bf16.mxu0 0
        %1128 = vmatpush1.bf16.msra.mxu0 0
        %1129 = vmatprep.subr.bf16.mxu0 0
        %1130 = vmatpush1.bf16.msra.mxu0 0
        %1131 = vmatprep.subr.bf16.mxu0 0
        %1132 = vmatpush1.bf16.msra.mxu0 0
        %1133 = vmatprep.subr.bf16.mxu0 0
        %1134 = vmatpush1.bf16.msra.mxu0 0
        %1135 = vmatprep.subr.bf16.mxu0 0
        %1136 = vmatpush1.bf16.msra.mxu0 0
        %1137 = vmatprep.subr.bf16.mxu0 0
        %1138 = vmatpush1.bf16.msra.mxu0 0
        %1139 = vmatprep.mubr.bf16.mxu0 0
        %1140 = vmatmul.mubr.bf16.gmra.mrb[0].mxu0 %v1105
        %v1141 = vpop.f32.mrb[0].mxu0
        %v1142 = vadd.f32 0.0, %v1141
        %v1143 = vpop.f32.mrb[0].mxu0
        %v1144 = vpop.f32.mrb[0].mxu0
        %v1145 = vadd.f32 0.0, %v1144
        %v1146 = vpop.f32.mrb[0].mxu0
        %1147 = vdwg.mxu0
        %v1148 = vadd.f32 %v1098, %v1142
        %v1149 = vadd.f32 %v1099, %v1145
        %v1150 = vxor.u32 %v1148, 2147483648
        %v1151 = vxor.u32 %v1149, 2147483648
        %v1152 = vmul.f32 %v1150, 1.442695
        %v1153 = vpow.pop %v1152
        %v1154 = vmul.f32 %v1151, 1.442695
        %v1155 = vpow.pop %v1154
        %v1156 = vadd.f32 %v1153, 1.0
        %v1157 = vadd.f32 %v1155, 1.0
        %v1158 = vrcp.pop %v1156
        %v1159 = vmul.f32 1.0, %v1158
        %v1160 = vrcp.pop %v1157
        %v1161 = vmul.f32 1.0, %v1160
        %v1162 = vtanh.pop %v1148
        %v1163 = vtanh.pop %v1149
        %v1164 = vmul.f32 %v1159, %v1067
        %v1165 = vmul.f32 %v1161, %v1068
        %1168 = vrot.lane.b32.xlu0 %v1162, 32
        %v1169 = vpop.permute.xlu0 %1168
        %1170 = vrot.lane.b32.xlu0 %v1163, 32
        %v1171 = vpop.permute.xlu0 %1170
        %v1174 = vmul.f32 %v1159, %v1169
        %v1175 = vmul.f32 %v1161, %v1171
        %1178 = vrot.lane.b32.xlu0 %v1174, 32
        %v1179 = vpop.permute.xlu0 %1178
        %1180 = vrot.lane.b32.xlu0 %v1175, 32
        %v1181 = vpop.permute.xlu0 %1180
        %v1184 = vadd.f32 %v1164, %v1179
        %v1185 = vadd.f32 %v1165, %v1181
        %v1186 = vtanh.pop %v1184
        %v1187 = vtanh.pop %v1185
        %1190 = vrot.lane.b32.xlu0 %v1186, 32
        %v1191 = vpop.permute.xlu0 %1190
        %1192 = vrot.lane.b32.xlu0 %v1187, 32
        %v1193 = vpop.permute.xlu0 %1192
        %v1196 = vmul.f32 %v1159, %v1191
        %v1197 = vmul.f32 %v1161, %v1193
        %s1198 = sadd.s32 %s597, 5
        %v1199 = vstv %s1198
        %vm1200 = vcmp.eq.s32.totalorder %v591, %v1199
        %vm1201 = vcmp.eq.s32.totalorder %v592, %v1199
        %v1202 = vsel %vm1200, 1, 0
        %v1203 = vsel %vm1201, 1, 0
        %1204 = vset.pattern.permute.xlu0 0
        %1205 = vperm.xlu0 %1204, %v1202
        %v1206 = vpop.permute.xlu0 %1205
        %1207 = vset.pattern.permute.xlu0 0
        %1208 = vperm.xlu0 %1207, %v1203
        %v1209 = vpop.permute.xlu0 %1208
        %vm1210 = vcmp.eq.s32.totalorder %v1206, 1
        %vm1211 = vcmp.eq.s32.totalorder %v1209, 1
        %v1212 = vsel %vm1210, %v1196, %v1095
        %v1213 = vsel %vm1211, %v1197, %v1096
        %s1214 = scalar_lea.vmem [#allocation5], 80
        %v1215 = vld [vmem:[%s1214] sm:$0xff]
        %v1216 = vld [vmem:[%s1214 + $0x8] sm:$0xff]
        %v1217 = vpack.c.bf16 %v1197, %v1196
        %1219 = vrot.lane.b32.xlu0 %v1217, 64
        %v1220 = vpop.permute.xlu0 %1219
        %v1222 = vsel %vm619, %v1220, 0
        %1224 = vmatprep.subr.bf16.mxu0 0
        %1225 = vmatpush1.bf16.msra.mxu0 %v615
        %1226 = vmatprep.subr.bf16.mxu0 0
        %1227 = vmatpush1.bf16.msra.mxu0 %v616
        %1228 = vmatprep.subr.bf16.mxu0 0
        %1229 = vmatpush1.bf16.msra.mxu0 0
        %1230 = vmatprep.subr.bf16.mxu0 0
        %1231 = vmatpush1.bf16.msra.mxu0 0
        %1232 = vmatprep.subr.bf16.mxu0 0
        %1233 = vmatpush1.bf16.msra.mxu0 0
        %1234 = vmatprep.subr.bf16.mxu0 0
        %1235 = vmatpush1.bf16.msra.mxu0 0
        %1236 = vmatprep.subr.bf16.mxu0 0
        %1237 = vmatpush1.bf16.msra.mxu0 0
        %1238 = vmatprep.subr.bf16.mxu0 0
        %1239 = vmatpush1.bf16.msra.mxu0 0
        %1240 = vmatprep.subr.bf16.mxu0 0
        %1241 = vmatpush1.bf16.msra.mxu0 0
        %1242 = vmatprep.subr.bf16.mxu0 0
        %1243 = vmatpush1.bf16.msra.mxu0 0
        %1244 = vmatprep.subr.bf16.mxu0 0
        %1245 = vmatpush1.bf16.msra.mxu0 0
        %1246 = vmatprep.subr.bf16.mxu0 0
        %1247 = vmatpush1.bf16.msra.mxu0 0
        %1248 = vmatprep.subr.bf16.mxu0 0
        %1249 = vmatpush1.bf16.msra.mxu0 0
        %1250 = vmatprep.subr.bf16.mxu0 0
        %1251 = vmatpush1.bf16.msra.mxu0 0
        %1252 = vmatprep.subr.bf16.mxu0 0
        %1253 = vmatpush1.bf16.msra.mxu0 0
        %1254 = vmatprep.subr.bf16.mxu0 0
        %1255 = vmatpush1.bf16.msra.mxu0 0
        %1256 = vmatprep.mubr.bf16.mxu0 0
        %1257 = vmatmul.mubr.bf16.gmra.mrb[0].mxu0 %v1222
        %v1258 = vpop.f32.mrb[0].mxu0
        %v1259 = vadd.f32 0.0, %v1258
        %v1260 = vpop.f32.mrb[0].mxu0
        %v1261 = vpop.f32.mrb[0].mxu0
        %v1262 = vadd.f32 0.0, %v1261
        %v1263 = vpop.f32.mrb[0].mxu0
        %1264 = vdwg.mxu0
        %v1265 = vadd.f32 %v1215, %v1259
        %v1266 = vadd.f32 %v1216, %v1262
        %v1267 = vxor.u32 %v1265, 2147483648
        %v1268 = vxor.u32 %v1266, 2147483648
        %v1269 = vmul.f32 %v1267, 1.442695
        %v1270 = vpow.pop %v1269
        %v1271 = vmul.f32 %v1268, 1.442695
        %v1272 = vpow.pop %v1271
        %v1273 = vadd.f32 %v1270, 1.0
        %v1274 = vadd.f32 %v1272, 1.0
        %v1275 = vrcp.pop %v1273
        %v1276 = vmul.f32 1.0, %v1275
        %v1277 = vrcp.pop %v1274
        %v1278 = vmul.f32 1.0, %v1277
        %v1279 = vtanh.pop %v1265
        %v1280 = vtanh.pop %v1266
        %v1281 = vmul.f32 %v1276, %v1184
        %v1282 = vmul.f32 %v1278, %v1185
        %1285 = vrot.lane.b32.xlu0 %v1279, 32
        %v1286 = vpop.permute.xlu0 %1285
        %1287 = vrot.lane.b32.xlu0 %v1280, 32
        %v1288 = vpop.permute.xlu0 %1287
        %v1291 = vmul.f32 %v1276, %v1286
        %v1292 = vmul.f32 %v1278, %v1288
        %1295 = vrot.lane.b32.xlu0 %v1291, 32
        %v1296 = vpop.permute.xlu0 %1295
        %1297 = vrot.lane.b32.xlu0 %v1292, 32
        %v1298 = vpop.permute.xlu0 %1297
        %v1301 = vadd.f32 %v1281, %v1296
        %v1302 = vadd.f32 %v1282, %v1298
        %v1303 = vtanh.pop %v1301
        %v1304 = vtanh.pop %v1302
        %1307 = vrot.lane.b32.xlu0 %v1303, 32
        %v1308 = vpop.permute.xlu0 %1307
        %1309 = vrot.lane.b32.xlu0 %v1304, 32
        %v1310 = vpop.permute.xlu0 %1309
        %v1313 = vmul.f32 %v1276, %v1308
        %v1314 = vmul.f32 %v1278, %v1310
        %s1315 = sadd.s32 %s597, 6
        %v1316 = vstv %s1315
        %vm1317 = vcmp.eq.s32.totalorder %v591, %v1316
        %vm1318 = vcmp.eq.s32.totalorder %v592, %v1316
        %v1319 = vsel %vm1317, 1, 0
        %v1320 = vsel %vm1318, 1, 0
        %1321 = vset.pattern.permute.xlu0 0
        %1322 = vperm.xlu0 %1321, %v1319
        %v1323 = vpop.permute.xlu0 %1322
        %1324 = vset.pattern.permute.xlu0 0
        %1325 = vperm.xlu0 %1324, %v1320
        %v1326 = vpop.permute.xlu0 %1325
        %vm1327 = vcmp.eq.s32.totalorder %v1323, 1
        %vm1328 = vcmp.eq.s32.totalorder %v1326, 1
        %v1329 = vsel %vm1327, %v1313, %v1212
        %v1330 = vsel %vm1328, %v1314, %v1213
        %s1331 = scalar_lea.vmem [#allocation5], 96
        %v1332 = vld [vmem:[%s1331] sm:$0xff]
        %v1333 = vld [vmem:[%s1331 + $0x8] sm:$0xff]
        %v1334 = vpack.c.bf16 %v1314, %v1313
        %1336 = vrot.lane.b32.xlu0 %v1334, 64
        %v1337 = vpop.permute.xlu0 %1336
        %v1339 = vsel %vm619, %v1337, 0
        %1341 = vmatprep.subr.bf16.mxu0 0
        %1342 = vmatpush1.bf16.msra.mxu0 %v615
        %1343 = vmatprep.subr.bf16.mxu0 0
        %1344 = vmatpush1.bf16.msra.mxu0 %v616
        %1345 = vmatprep.subr.bf16.mxu0 0
        %1346 = vmatpush1.bf16.msra.mxu0 0
        %1347 = vmatprep.subr.bf16.mxu0 0
        %1348 = vmatpush1.bf16.msra.mxu0 0
        %1349 = vmatprep.subr.bf16.mxu0 0
        %1350 = vmatpush1.bf16.msra.mxu0 0
        %1351 = vmatprep.subr.bf16.mxu0 0
        %1352 = vmatpush1.bf16.msra.mxu0 0
        %1353 = vmatprep.subr.bf16.mxu0 0
        %1354 = vmatpush1.bf16.msra.mxu0 0
        %1355 = vmatprep.subr.bf16.mxu0 0
        %1356 = vmatpush1.bf16.msra.mxu0 0
        %1357 = vmatprep.subr.bf16.mxu0 0
        %1358 = vmatpush1.bf16.msra.mxu0 0
        %1359 = vmatprep.subr.bf16.mxu0 0
        %1360 = vmatpush1.bf16.msra.mxu0 0
        %1361 = vmatprep.subr.bf16.mxu0 0
        %1362 = vmatpush1.bf16.msra.mxu0 0
        %1363 = vmatprep.subr.bf16.mxu0 0
        %1364 = vmatpush1.bf16.msra.mxu0 0
        %1365 = vmatprep.subr.bf16.mxu0 0
        %1366 = vmatpush1.bf16.msra.mxu0 0
        %1367 = vmatprep.subr.bf16.mxu0 0
        %1368 = vmatpush1.bf16.msra.mxu0 0
        %1369 = vmatprep.subr.bf16.mxu0 0
        %1370 = vmatpush1.bf16.msra.mxu0 0
        %1371 = vmatprep.subr.bf16.mxu0 0
        %1372 = vmatpush1.bf16.msra.mxu0 0
        %1373 = vmatprep.mubr.bf16.mxu0 0
        %1374 = vmatmul.mubr.bf16.gmra.mrb[0].mxu0 %v1339
        %v1375 = vpop.f32.mrb[0].mxu0
        %v1376 = vadd.f32 0.0, %v1375
        %v1377 = vpop.f32.mrb[0].mxu0
        %v1378 = vpop.f32.mrb[0].mxu0
        %v1379 = vadd.f32 0.0, %v1378
        %v1380 = vpop.f32.mrb[0].mxu0
        %1381 = vdwg.mxu0
        %v1382 = vadd.f32 %v1332, %v1376
        %v1383 = vadd.f32 %v1333, %v1379
        %v1384 = vxor.u32 %v1382, 2147483648
        %v1385 = vxor.u32 %v1383, 2147483648
        %v1386 = vmul.f32 %v1384, 1.442695
        %v1387 = vpow.pop %v1386
        %v1388 = vmul.f32 %v1385, 1.442695
        %v1389 = vpow.pop %v1388
        %v1390 = vadd.f32 %v1387, 1.0
        %v1391 = vadd.f32 %v1389, 1.0
        %v1392 = vrcp.pop %v1390
        %v1393 = vmul.f32 1.0, %v1392
        %v1394 = vrcp.pop %v1391
        %v1395 = vmul.f32 1.0, %v1394
        %v1396 = vtanh.pop %v1382
        %v1397 = vtanh.pop %v1383
        %v1398 = vmul.f32 %v1393, %v1301
        %v1399 = vmul.f32 %v1395, %v1302
        %1402 = vrot.lane.b32.xlu0 %v1396, 32
        %v1403 = vpop.permute.xlu0 %1402
        %1404 = vrot.lane.b32.xlu0 %v1397, 32
        %v1405 = vpop.permute.xlu0 %1404
        %v1408 = vmul.f32 %v1393, %v1403
        %v1409 = vmul.f32 %v1395, %v1405
        %1412 = vrot.lane.b32.xlu0 %v1408, 32
        %v1413 = vpop.permute.xlu0 %1412
        %1414 = vrot.lane.b32.xlu0 %v1409, 32
        %v1415 = vpop.permute.xlu0 %1414
        %v1418 = vadd.f32 %v1398, %v1413
        %v1419 = vadd.f32 %v1399, %v1415
        %v1420 = vtanh.pop %v1418
        %v1421 = vtanh.pop %v1419
        %1424 = vrot.lane.b32.xlu0 %v1420, 32
        %v1425 = vpop.permute.xlu0 %1424
        %1426 = vrot.lane.b32.xlu0 %v1421, 32
        %v1427 = vpop.permute.xlu0 %1426
        %v1430 = vmul.f32 %v1393, %v1425
        %v1431 = vmul.f32 %v1395, %v1427
        %s1432 = sadd.s32 %s597, 7
        %v1433 = vstv %s1432
        %vm1434 = vcmp.eq.s32.totalorder %v591, %v1433
        %vm1435 = vcmp.eq.s32.totalorder %v592, %v1433
        %v1436 = vsel %vm1434, 1, 0
        %v1437 = vsel %vm1435, 1, 0
        %1438 = vset.pattern.permute.xlu0 0
        %1439 = vperm.xlu0 %1438, %v1436
        %v1440 = vpop.permute.xlu0 %1439
        %1441 = vset.pattern.permute.xlu0 0
        %1442 = vperm.xlu0 %1441, %v1437
        %v1443 = vpop.permute.xlu0 %1442
        %vm1444 = vcmp.eq.s32.totalorder %v1440, 1
        %vm1445 = vcmp.eq.s32.totalorder %v1443, 1
        %v1446 = vsel %vm1444, %v1430, %v1329
        %v1447 = vsel %vm1445, %v1431, %v1330
        %s1448 = scalar_lea.vmem [#allocation5], 112
        %v1449 = vld [vmem:[%s1448] sm:$0xff]
        %v1450 = vld [vmem:[%s1448 + $0x8] sm:$0xff]
        %v1451 = vpack.c.bf16 %v1431, %v1430
        %1453 = vrot.lane.b32.xlu0 %v1451, 64
        %v1454 = vpop.permute.xlu0 %1453
        %v1456 = vsel %vm619, %v1454, 0
        %1458 = vmatprep.subr.bf16.mxu0 0
        %1459 = vmatpush1.bf16.msra.mxu0 %v615
        %1460 = vmatprep.subr.bf16.mxu0 0
        %1461 = vmatpush1.bf16.msra.mxu0 %v616
        %1462 = vmatprep.subr.bf16.mxu0 0
        %1463 = vmatpush1.bf16.msra.mxu0 0
        %1464 = vmatprep.subr.bf16.mxu0 0
        %1465 = vmatpush1.bf16.msra.mxu0 0
        %1466 = vmatprep.subr.bf16.mxu0 0
        %1467 = vmatpush1.bf16.msra.mxu0 0
        %1468 = vmatprep.subr.bf16.mxu0 0
        %1469 = vmatpush1.bf16.msra.mxu0 0
        %1470 = vmatprep.subr.bf16.mxu0 0
        %1471 = vmatpush1.bf16.msra.mxu0 0
        %1472 = vmatprep.subr.bf16.mxu0 0
        %1473 = vmatpush1.bf16.msra.mxu0 0
        %1474 = vmatprep.subr.bf16.mxu0 0
        %1475 = vmatpush1.bf16.msra.mxu0 0
        %1476 = vmatprep.subr.bf16.mxu0 0
        %1477 = vmatpush1.bf16.msra.mxu0 0
        %1478 = vmatprep.subr.bf16.mxu0 0
        %1479 = vmatpush1.bf16.msra.mxu0 0
        %1480 = vmatprep.subr.bf16.mxu0 0
        %1481 = vmatpush1.bf16.msra.mxu0 0
        %1482 = vmatprep.subr.bf16.mxu0 0
        %1483 = vmatpush1.bf16.msra.mxu0 0
        %1484 = vmatprep.subr.bf16.mxu0 0
        %1485 = vmatpush1.bf16.msra.mxu0 0
        %1486 = vmatprep.subr.bf16.mxu0 0
        %1487 = vmatpush1.bf16.msra.mxu0 0
        %1488 = vmatprep.subr.bf16.mxu0 0
        %1489 = vmatpush1.bf16.msra.mxu0 0
        %1490 = vmatprep.mubr.bf16.mxu0 0
        %1491 = vmatmul.mubr.bf16.gmra.mrb[0].mxu0 %v1456
        %v1492 = vpop.f32.mrb[0].mxu0
        %v1493 = vadd.f32 0.0, %v1492
        %v1494 = vpop.f32.mrb[0].mxu0
        %v1495 = vpop.f32.mrb[0].mxu0
        %v1496 = vadd.f32 0.0, %v1495
        %v1497 = vpop.f32.mrb[0].mxu0
        %1498 = vdwg.mxu0
        %v1499 = vadd.f32 %v1449, %v1493
        %v1500 = vadd.f32 %v1450, %v1496
        %v1501 = vxor.u32 %v1499, 2147483648
        %v1502 = vxor.u32 %v1500, 2147483648
        %v1503 = vmul.f32 %v1501, 1.442695
        %v1504 = vpow.pop %v1503
        %v1505 = vmul.f32 %v1502, 1.442695
        %v1506 = vpow.pop %v1505
        %v1507 = vadd.f32 %v1504, 1.0
        %v1508 = vadd.f32 %v1506, 1.0
        %v1509 = vrcp.pop %v1507
        %v1510 = vmul.f32 1.0, %v1509
        %v1511 = vrcp.pop %v1508
        %v1512 = vmul.f32 1.0, %v1511
        %v1513 = vtanh.pop %v1499
        %v1514 = vtanh.pop %v1500
        %v1515 = vmul.f32 %v1510, %v1418
        %v1516 = vmul.f32 %v1512, %v1419
        %1519 = vrot.lane.b32.xlu0 %v1513, 32
        %v1520 = vpop.permute.xlu0 %1519
        %1521 = vrot.lane.b32.xlu0 %v1514, 32
        %v1522 = vpop.permute.xlu0 %1521
        %v1525 = vmul.f32 %v1510, %v1520
        %v1526 = vmul.f32 %v1512, %v1522
        %1529 = vrot.lane.b32.xlu0 %v1525, 32
        %v1530 = vpop.permute.xlu0 %1529
        %1531 = vrot.lane.b32.xlu0 %v1526, 32
        %v1532 = vpop.permute.xlu0 %1531
        %v1535 = vadd.f32 %v1515, %v1530
        %v1536 = vadd.f32 %v1516, %v1532
        %v1537 = vtanh.pop %v1535
        %v1538 = vtanh.pop %v1536
        %1541 = vrot.lane.b32.xlu0 %v1537, 32
        %v1542 = vpop.permute.xlu0 %1541
        %1543 = vrot.lane.b32.xlu0 %v1538, 32
        %v1544 = vpop.permute.xlu0 %1543
        %v1547 = vmul.f32 %v1510, %v1542
        %v1548 = vmul.f32 %v1512, %v1544
        %s1549 = sadd.s32 %s597, 8
        %v1550 = vstv %s1549
        %vm1551 = vcmp.eq.s32.totalorder %v591, %v1550
        %vm1552 = vcmp.eq.s32.totalorder %v592, %v1550
        %v1553 = vsel %vm1551, 1, 0
        %v1554 = vsel %vm1552, 1, 0
        %1555 = vset.pattern.permute.xlu0 0
        %1556 = vperm.xlu0 %1555, %v1553
        %v1557 = vpop.permute.xlu0 %1556
        %1558 = vset.pattern.permute.xlu0 0
        %1559 = vperm.xlu0 %1558, %v1554
        %v1560 = vpop.permute.xlu0 %1559
        %vm1561 = vcmp.eq.s32.totalorder %v1557, 1
        %vm1562 = vcmp.eq.s32.totalorder %v1560, 1
        %v1563 = vsel %vm1561, %v1547, %v1446
        %v1564 = vsel %vm1562, %v1548, %v1447
        %1567 = vrot.lane.b32.xlu0 %v1547, 64
        %v1568 = vpop.permute.xlu0 %1567
        %1569 = vrot.lane.b32.xlu0 %v1548, 64
        %v1570 = vpop.permute.xlu0 %1569
        %1573 = vst.msk [vmem:[#allocation2] sm:$0xff] %vm619, %v1568
        %1574 = vst.msk [vmem:[#allocation2 + $0x8] sm:$0xff] %vm619, %v1570
        %1577 = vrot.lane.b32.xlu0 %v1535, 96
        %v1578 = vpop.permute.xlu0 %1577
        %1579 = vrot.lane.b32.xlu0 %v1536, 96
        %v1580 = vpop.permute.xlu0 %1579
        %1583 = vst.msk [vmem:[#allocation3] sm:$0xff] %vm619, %v1578
        %1584 = vst.msk [vmem:[#allocation3 + $0x8] sm:$0xff] %vm619, %v1580
        %1587 = vrot.lane.b32.xlu0 %v1563, 64
        %v1588 = vpop.permute.xlu0 %1587
        %1589 = vrot.lane.b32.xlu0 %v1564, 64
        %v1590 = vpop.permute.xlu0 %1589
        %1593 = vst.msk [vmem:[#allocation4] sm:$0xff] %vm619, %v1588
        %1594 = vst.msk [vmem:[#allocation4 + $0x8] sm:$0xff] %vm619, %v1590
        %p1595 = scmp.eq.s32.totalorder %s31, 1
        // Predicated region
        $region65: #{hierarchical_forward.2} parent=39 // pred_check
          %p1596 = pneg %p1595
        $region66: #{hierarchical_forward.2} parent=39 // pred_check_branch
          %1598 = sbr.rel (%p1596) target = $region68
        $region67: #{hierarchical_forward.2} parent=39 // pred_region
          %v1599 = vld [vmem:[#allocation4] sm:$0xff]
          %v1600 = vld [vmem:[#allocation4 + $0x8] sm:$0xff]
          %1601 = vst.msk [vmem:[%s365] sm:$0xff] %vm619, %v1599
          %1602 = vst.msk [vmem:[%s365 + $0x8] sm:$0xff] %vm619, %v1600
        $region68: #{hierarchical_forward.2} parent=39 // pred_fallthru
          _
        %s1603 = sand.u32 %s163, 1
        %s1604 = scalar_lea.sflag [#allocation8], %s1603
        %s1605 = sand.u32 %s163, 1
        %s1606 = smul.addr %s1605, 16
        %s1607 = scalar_lea.vmem [#allocation15], %s1606
        // Predicated region
        $region69: #{hierarchical_forward.2} parent=39 // pred_check
          %p1608 = pneg %p173
        $region70: #{hierarchical_forward.2} parent=39 // pred_check_branch
          %1610 = sbr.rel (%p1608) target = $region72
        $region71: #{hierarchical_forward.2} parent=39 // pred_region
          %s1611 = smul.u32 2, %s30
          %s1613 = ssub.s32 256, 256
          %1614 = vsyncadd %s1604, %s1613
          %s1615 = smul.addr %s1611, 128
          %s1616 = scalar_lea.hbm %s5, %s1615
          %s1617 = sshll.u32 %s1607, 4
          %s1618 = int_to_ptr.vmem [resolvable:$true] %s1617
          %1623 = dma.vmem_to_hbm [thread:$0]  %s1618, 256, %s1616, %s1604, 128, 128, 8
        $region72: #{hierarchical_forward.2} parent=39 // pred_fallthru
          _
      $region40: #{hierarchical_forward.2} parent=5 // pred_fallthru
        _
      %p1624 = scmp.le.s32.totalorder 2, %s21
      // Predicated region
      $region73: #{hierarchical_forward.2} parent=5 // pred_check
        %p1625 = pneg %p1624
      $region74: #{hierarchical_forward.2} parent=5 // pred_check_branch
        %1627 = sbr.rel (%p1625) target = $region76
      $region75: #{hierarchical_forward.2} parent=5 // pred_region
        %s1628 = ssub.s32 %s21, 2
        // Predicated region
        $region77: #{hierarchical_forward.2} parent=75 // pred_check
          %p1629 = pneg %p179
        $region78: #{hierarchical_forward.2} parent=75 // pred_check_branch
          %1631 = sbr.rel (%p1629) target = $region80
        $region79: #{hierarchical_forward.2} parent=75 // pred_region
          %s1632 = sand.u32 %s164, 1
          %s1633 = scalar_lea.sflag [#allocation8], %s1632
          %s1634 = sand.u32 %s164, 1
          %s1635 = smul.addr %s1634, 16
          %s1636 = scalar_lea.vmem [#allocation15], %s1635
          %1637 = dma.done %s1633, 256
        $region80: #{hierarchical_forward.2} parent=75 // pred_fallthru
          _
      $region76: #{hierarchical_forward.2} parent=5 // pred_fallthru
        _
    $region6: #{hierarchical_forward.2} parent=1 // loop_footer
      %s25 = sadd.s32 1, %s21
    $region7: #{hierarchical_forward.2} parent=1 // loop_footer_branch
      %20 = sbr.rel target = $region3
    $region8: #{hierarchical_forward.2} parent=1 // loop_exit
      _
    %1638 = vsyncpa [#allocation7], 1
    %s1639 = scalar_lea.sflag [#allocation7], 1
    %1640 = vsyncpa %s1639, 1
    %1641 = vsyncpa [#allocation10], 1
    %s1642 = scalar_lea.sflag [#allocation10], 1
    %1643 = vsyncpa %s1642, 1
    %1644 = vsyncpa [#allocation13], 1
    %1645 = vsyncpa [#allocation8], 1
    %s1646 = scalar_lea.sflag [#allocation8], 1
    %1647 = vsyncpa %s1646, 1

</llo_original>
